<compile_context>
chip_gen: v6e
topology: v6e:2x2x1
jax: 0.10.0
libtpu: 0.0.40
codegen_flags: <defaults>
</compile_context>

<pallas_src>
import jax
import jax.numpy as jnp
from jax import lax
from jax.experimental import pallas as pl
from jax.experimental.pallas import tpu as pltpu


_LN_EPS = 1e-5
_SQRT_HALF = 0.7071067811865476


def _gelu_exact(h):
    """Exact (erf-based) GELU matching torch.nn.GELU() default.

    erf via Abramowitz & Stegun 7.1.26 rational polynomial (|err| < 1.5e-7 for
    the exact-divide form); the reciprocal goes to the EUP (approx=True) and
    exp also lives on the EUP, keeping the GELU stretch off the VALU critical
    path between the two matmuls.
    """
    z = h * _SQRT_HALF
    za = jnp.abs(z)
    t = pl.reciprocal(1.0 + 0.3275911 * za, approx=True)
    poly = ((((1.061405429 * t - 1.453152027) * t + 1.421413741) * t
             - 0.284496736) * t + 0.254829592) * t
    erf_abs = 1.0 - poly * jnp.exp(-za * za)
    erf_z = jnp.where(z >= 0.0, erf_abs, -erf_abs)
    return 0.5 * h * (1.0 + erf_z)


def _mlp_head_kernel(x_ref, w1_ref, b1_ref, w2_ref, b2_ref, o_ref):
    """One grid step = one block of rows. LN -> matmul1 -> GELU -> matmul2, all in VMEM."""
    x = x_ref[...].astype(jnp.float32)                # (bm, d_in), upcast for LN stats
    inv_d = 1.0 / x.shape[-1]

    # LayerNorm statistics in a single pass over the tile:
    #   var = E[x^2] - mean^2 ; normalize as x*inv_std + (-mean*inv_std).
    s1 = jnp.sum(x, axis=-1, keepdims=True)
    s2 = jnp.sum(x * x, axis=-1, keepdims=True)
    mean = s1 * inv_d
    var = s2 * inv_d - mean * mean
    inv_std = lax.rsqrt(var + _LN_EPS)
    xn = x * inv_std - mean * inv_std                 # gamma/beta folded into W1'/b1'

    # Linear1 (d_in -> d_in//2): bf16 operands on the MXU, f32 accumulation.
    h = jnp.dot(xn.astype(jnp.bfloat16), w1_ref[...],
                preferred_element_type=jnp.float32)
    h = h + b1_ref[...]
    h = _gelu_exact(h)

    # Dropout: identity in eval mode.

    # Linear2 (d_in//2 -> d_out_pad): bf16 operands, f32 accumulation.
    out = jnp.dot(h.astype(jnp.bfloat16), w2_ref[...],
                  preferred_element_type=jnp.float32)
    out = out + b2_ref[...]
    o_ref[...] = out.astype(o_ref.dtype)


def _round_up(n, m):
    return ((n + m - 1) // m) * m


def _cdiv(a, b):
    return -(-a // b)


def mlp_head_forward(x, gamma, beta, w1, b1, w2, b2, *, block_rows=512):
    """Eval-mode MLPHead.forward.

    x:     [..., 1152] (any float dtype; streamed at native dtype)
    gamma: [1152]  LayerNorm weight
    beta:  [1152]  LayerNorm bias
    w1:    [1152, 576]  ([in, out] layout)
    b1:    [576]
    w2:    [576, d_out]
    b2:    [d_out]
    returns [..., d_out] in x.dtype
    """
    d_in = x.shape[-1]
    assert d_in == 1152, "d_in must be 1152"
    d_hidden = w1.shape[1]
    d_out = w2.shape[1]

    x2 = x.reshape(-1, d_in)                          # keep native dtype (halves HBM if bf16)
    n = x2.shape[0]

    # Fold the LayerNorm affine into Linear1 (exact):
    #   (gamma * xhat + beta) @ W1 + b1 = xhat @ (gamma[:,None] * W1) + (beta @ W1 + b1)
    gamma_f = gamma.astype(jnp.float32)
    beta_f = beta.astype(jnp.float32)
    w1_f = w1.astype(jnp.float32)
    w1_eff = (gamma_f[:, None] * w1_f).astype(jnp.bfloat16)          # (1152, 576) bf16
    b1_eff = (beta_f @ w1_f + b1.astype(jnp.float32)).reshape(1, d_hidden)

    # Pad d_out to a multiple of 128 so output stores are lane-dense (no vst.msk)
    # and the second matmul fills the MXU output columns. Padding columns are zero
    # and sliced off after the call.
    d_out_pad = _round_up(d_out, 128)
    w2_eff = jnp.pad(w2.astype(jnp.float32),
                     ((0, 0), (0, d_out_pad - d_out))).astype(jnp.bfloat16)
    b2_eff = jnp.pad(b2.astype(jnp.float32),
                     (0, d_out_pad - d_out)).reshape(1, d_out_pad)

    # Row blocking: bound padding waste by sizing bm to the real row count, and
    # prefer >=2 blocks when rows allow so v7x's two TensorCores both get work.
    block_rows = max(8, _round_up(block_rows, 8))
    n_blocks = _cdiv(n, block_rows)
    if n_blocks == 1 and n >= 256:
        n_blocks = 2
    bm = _round_up(_cdiv(n, n_blocks), 8)
    n_blocks = _cdiv(n, bm)
    n_pad = n_blocks * bm
    if n_pad != n:
        x2 = jnp.pad(x2, ((0, n_pad - n), (0, 0)))

    out = pl.pallas_call(
        _mlp_head_kernel,
        out_shape=jax.ShapeDtypeStruct((n_pad, d_out_pad), jnp.float32),
        grid=(n_blocks,),
        in_specs=[
            pl.BlockSpec((bm, d_in), lambda i: (i, 0)),            # x rows (streamed)
            pl.BlockSpec((d_in, d_hidden), lambda i: (0, 0)),      # W1' (resident, bf16)
            pl.BlockSpec((1, d_hidden), lambda i: (0, 0)),         # b1' (resident, f32)
            pl.BlockSpec((d_hidden, d_out_pad), lambda i: (0, 0)), # W2  (resident, bf16)
            pl.BlockSpec((1, d_out_pad), lambda i: (0, 0)),        # b2  (resident, f32)
        ],
        out_specs=pl.BlockSpec((bm, d_out_pad), lambda i: (i, 0)),
        compiler_params=pltpu.CompilerParams(
            dimension_semantics=("parallel",),
            vmem_limit_bytes=32 * 1024 * 1024),   # explicit: safe on v5e's 16 MiB default too
    )(x2, w1_eff, b1_eff, w2_eff, b2_eff)

    out = out[:n, :d_out].astype(x.dtype)
    return out.reshape(x.shape[:-1] + (d_out,))


def _reference(x, gamma, beta, w1, b1, w2, b2):
    """Pure-JAX reference (exact-erf GELU, full-precision matmuls)."""
    xf = x.astype(jnp.float32)
    mean = xf.mean(-1, keepdims=True)
    var = ((xf - mean) ** 2).mean(-1, keepdims=True)
    xn = (xf - mean) * lax.rsqrt(var + _LN_EPS) * gamma + beta
    h = jnp.dot(xn, w1, precision=lax.Precision.HIGHEST) + b1
    h = jax.nn.gelu(h, approximate=False)
    return jnp.dot(h, w2, precision=lax.Precision.HIGHEST) + b2


if __name__ == "__main__":
    key = jax.random.PRNGKey(0)
    k_x, k_g, k_b, k_w1, k_b1, k_w2, k_b2 = jax.random.split(key, 7)

    # Small shapes consistent with the module: d_in fixed at 1152 by the
    # module's assert; batch=2, seq=8 rows, d_out=16 classes.
    B, S = 2, 8
    D_IN, D_HID, D_OUT = 1152, 1152 // 2, 16

    x = jax.random.normal(k_x, (B, S, D_IN), dtype=jnp.float32)
    gamma = 1.0 + 0.1 * jax.random.normal(k_g, (D_IN,), dtype=jnp.float32)
    beta = 0.1 * jax.random.normal(k_b, (D_IN,), dtype=jnp.float32)

    k1 = 1.0 / (D_IN ** 0.5)
    k2 = 1.0 / (D_HID ** 0.5)
    w1 = jax.random.uniform(k_w1, (D_IN, D_HID), jnp.float32, -k1, k1)
    b1 = jax.random.uniform(k_b1, (D_HID,), jnp.float32, -k1, k1)
    w2 = jax.random.uniform(k_w2, (D_HID, D_OUT), jnp.float32, -k2, k2)
    b2 = jax.random.uniform(k_b2, (D_OUT,), jnp.float32, -k2, k2)

    # Small block_rows so the test exercises a multi-step parallel grid;
    # real workloads use the default 512-row blocks.
    out = mlp_head_forward(x, gamma, beta, w1, b1, w2, b2, block_rows=8)
    out = jax.block_until_ready(out)

    ref = _reference(x, gamma, beta, w1, b1, w2, b2)

    assert out.shape == (B, S, D_OUT) and out.dtype == jnp.float32
    assert jnp.allclose(out, ref, atol=1e-2, rtol=1e-2), "mismatch vs reference"

    print("KERNEL_OK")
</pallas_src>

<mosaic_0001>
module attributes {stable_mosaic.version = 11 : i64} {
  func.func @_mlp_head_kernel(%arg0: i32, %arg1: memref<8x1152xf32, #tpu.memory_space<vmem>>, %arg2: memref<1152x576xbf16, #tpu.memory_space<vmem>>, %arg3: memref<1x576xf32, #tpu.memory_space<vmem>>, %arg4: memref<576x128xbf16, #tpu.memory_space<vmem>>, %arg5: memref<1x128xf32, #tpu.memory_space<vmem>>, %arg6: memref<8x128xf32, #tpu.memory_space<vmem>>) attributes {dimension_semantics = [#tpu.dimension_semantics<parallel>], iteration_bounds = array<i64: 2>, scalar_prefetch = 0 : i64, scratch_operands = 0 : i64, tpu.core_type = #tpu.core_type<tc>, window_params = [{transform_indices = @transform_0, window_bounds = array<i64: 8, 1152>}, {pipeline_mode = #tpu.pipeline_mode<synchronous>, transform_indices = @transform_1, window_bounds = array<i64: 1152, 576>}, {pipeline_mode = #tpu.pipeline_mode<synchronous>, transform_indices = @transform_2, window_bounds = array<i64: 1, 576>}, {pipeline_mode = #tpu.pipeline_mode<synchronous>, transform_indices = @transform_3, window_bounds = array<i64: 576, 128>}, {pipeline_mode = #tpu.pipeline_mode<synchronous>, transform_indices = @transform_4, window_bounds = array<i64: 1, 128>}, {transform_indices = @transform_5, window_bounds = array<i64: 8, 128>}]} {
    %c0 = arith.constant 0 : index
    %c0_0 = arith.constant 0 : index
    %0 = vector.load %arg1[%c0, %c0_0] : memref<8x1152xf32, #tpu.memory_space<vmem>>, vector<8x1152xf32>
    %cst = arith.constant dense<0.000000e+00> : vector<8xf32>
    %1 = vector.multi_reduction <add>, %0, %cst [1] : vector<8x1152xf32> to vector<8xf32>
    %2 = vector.shape_cast %1 : vector<8xf32> to vector<8x1xf32>
    %3 = arith.mulf %0, %0 : vector<8x1152xf32>
    %cst_1 = arith.constant dense<0.000000e+00> : vector<8xf32>
    %4 = vector.multi_reduction <add>, %3, %cst_1 [1] : vector<8x1152xf32> to vector<8xf32>
    %5 = vector.shape_cast %4 : vector<8xf32> to vector<8x1xf32>
    %cst_2 = arith.constant 8.68055562E-4 : f32
    %6 = vector.broadcast %cst_2 : f32 to vector<8x1xf32>
    %7 = arith.mulf %2, %6 : vector<8x1xf32>
    %cst_3 = arith.constant 8.68055562E-4 : f32
    %8 = vector.broadcast %cst_3 : f32 to vector<8x1xf32>
    %9 = arith.mulf %5, %8 : vector<8x1xf32>
    %10 = arith.mulf %7, %7 : vector<8x1xf32>
    %11 = arith.subf %9, %10 : vector<8x1xf32>
    %cst_4 = arith.constant 9.99999974E-6 : f32
    %12 = vector.broadcast %cst_4 : f32 to vector<8x1xf32>
    %13 = arith.addf %11, %12 : vector<8x1xf32>
    %14 = math.rsqrt %13 : vector<8x1xf32>
    %15 = vector.broadcast %14 : vector<8x1xf32> to vector<8x1152xf32>
    %16 = arith.mulf %0, %15 : vector<8x1152xf32>
    %17 = arith.mulf %7, %14 : vector<8x1xf32>
    %18 = vector.broadcast %17 : vector<8x1xf32> to vector<8x1152xf32>
    %19 = arith.subf %16, %18 : vector<8x1152xf32>
    %20 = arith.truncf %19 : vector<8x1152xf32> to vector<8x1152xbf16>
    %c0_5 = arith.constant 0 : index
    %c0_6 = arith.constant 0 : index
    %21 = vector.load %arg2[%c0_5, %c0_6] : memref<1152x576xbf16, #tpu.memory_space<vmem>>, vector<1152x576xbf16>
    %cst_7 = arith.constant dense<0.000000e+00> : vector<8x576xf32>
    %22 = tpu.matmul %20, %21, %cst_7 {dimension_numbers = #tpu.dot_dimension_numbers<[1], [0], [0], [1], [0, 0, 1, 1], [], []>} : vector<8x1152xbf16>, vector<1152x576xbf16>, vector<8x576xf32> -> vector<8x576xf32>
    %c0_8 = arith.constant 0 : index
    %c0_9 = arith.constant 0 : index
    %23 = vector.load %arg3[%c0_8, %c0_9] : memref<1x576xf32, #tpu.memory_space<vmem>>, vector<1x576xf32>
    %24 = vector.broadcast %23 : vector<1x576xf32> to vector<8x576xf32>
    %25 = arith.addf %22, %24 : vector<8x576xf32>
    %cst_10 = arith.constant 0.707106769 : f32
    %26 = vector.broadcast %cst_10 : f32 to vector<8x576xf32>
    %27 = arith.mulf %25, %26 : vector<8x576xf32>
    %28 = math.absf %27 : vector<8x576xf32>
    %cst_11 = arith.constant 0.327591091 : f32
    %29 = vector.broadcast %cst_11 : f32 to vector<8x576xf32>
    %30 = arith.mulf %29, %28 : vector<8x576xf32>
    %cst_12 = arith.constant 1.000000e+00 : f32
    %31 = vector.broadcast %cst_12 : f32 to vector<8x576xf32>
    %32 = arith.addf %31, %30 : vector<8x576xf32>
    %33 = tpu.reciprocal %32 {approx = true} : vector<8x576xf32> -> vector<8x576xf32>
    %cst_13 = arith.constant 1.06140542 : f32
    %34 = vector.broadcast %cst_13 : f32 to vector<8x576xf32>
    %35 = arith.mulf %34, %33 : vector<8x576xf32>
    %cst_14 = arith.constant 1.45315206 : f32
    %36 = vector.broadcast %cst_14 : f32 to vector<8x576xf32>
    %37 = arith.subf %35, %36 : vector<8x576xf32>
    %38 = arith.mulf %37, %33 : vector<8x576xf32>
    %cst_15 = arith.constant 1.42141378 : f32
    %39 = vector.broadcast %cst_15 : f32 to vector<8x576xf32>
    %40 = arith.addf %38, %39 : vector<8x576xf32>
    %41 = arith.mulf %40, %33 : vector<8x576xf32>
    %cst_16 = arith.constant 0.284496725 : f32
    %42 = vector.broadcast %cst_16 : f32 to vector<8x576xf32>
    %43 = arith.subf %41, %42 : vector<8x576xf32>
    %44 = arith.mulf %43, %33 : vector<8x576xf32>
    %cst_17 = arith.constant 0.254829586 : f32
    %45 = vector.broadcast %cst_17 : f32 to vector<8x576xf32>
    %46 = arith.addf %44, %45 : vector<8x576xf32>
    %47 = arith.mulf %46, %33 : vector<8x576xf32>
    %cst_18 = arith.constant 0.000000e+00 : f32
    %48 = vector.broadcast %cst_18 : f32 to vector<8x576xf32>
    %49 = arith.subf %48, %28 : vector<8x576xf32>
    %50 = arith.mulf %49, %28 : vector<8x576xf32>
    %51 = math.exp %50 : vector<8x576xf32>
    %52 = arith.mulf %47, %51 : vector<8x576xf32>
    %cst_19 = arith.constant 1.000000e+00 : f32
    %53 = vector.broadcast %cst_19 : f32 to vector<8x576xf32>
    %54 = arith.subf %53, %52 : vector<8x576xf32>
    %cst_20 = arith.constant 0.000000e+00 : f32
    %55 = vector.broadcast %cst_20 : f32 to vector<8x576xf32>
    %56 = arith.cmpf oge, %27, %55 : vector<8x576xf32>
    %cst_21 = arith.constant 0.000000e+00 : f32
    %57 = vector.broadcast %cst_21 : f32 to vector<8x576xf32>
    %58 = arith.subf %57, %54 : vector<8x576xf32>
    %59 = arith.select %56, %54, %58 : vector<8x576xi1>, vector<8x576xf32>
    %cst_22 = arith.constant 5.000000e-01 : f32
    %60 = vector.broadcast %cst_22 : f32 to vector<8x576xf32>
    %61 = arith.mulf %60, %25 : vector<8x576xf32>
    %cst_23 = arith.constant 1.000000e+00 : f32
    %62 = vector.broadcast %cst_23 : f32 to vector<8x576xf32>
    %63 = arith.addf %62, %59 : vector<8x576xf32>
    %64 = arith.mulf %61, %63 : vector<8x576xf32>
    %65 = arith.truncf %64 : vector<8x576xf32> to vector<8x576xbf16>
    %c0_24 = arith.constant 0 : index
    %c0_25 = arith.constant 0 : index
    %66 = vector.load %arg4[%c0_24, %c0_25] : memref<576x128xbf16, #tpu.memory_space<vmem>>, vector<576x128xbf16>
    %cst_26 = arith.constant dense<0.000000e+00> : vector<8x128xf32>
    %67 = tpu.matmul %65, %66, %cst_26 {dimension_numbers = #tpu.dot_dimension_numbers<[1], [0], [0], [1], [0, 0, 1, 1], [], []>} : vector<8x576xbf16>, vector<576x128xbf16>, vector<8x128xf32> -> vector<8x128xf32>
    %c0_27 = arith.constant 0 : index
    %c0_28 = arith.constant 0 : index
    %68 = vector.load %arg5[%c0_27, %c0_28] : memref<1x128xf32, #tpu.memory_space<vmem>>, vector<1x128xf32>
    %69 = vector.broadcast %68 : vector<1x128xf32> to vector<8x128xf32>
    %70 = arith.addf %67, %69 : vector<8x128xf32>
    %c0_29 = arith.constant 0 : index
    %c0_30 = arith.constant 0 : index
    %71 = vector.load %arg6[%c0_29, %c0_30] : memref<8x128xf32, #tpu.memory_space<vmem>>, vector<8x128xf32>
    tpu.vector_store %arg6[%c0_29, %c0_30], %70 {strides = array<i32>} : memref<8x128xf32, #tpu.memory_space<vmem>>, vector<8x128xf32>,
    return
  }
  func.func @transform_0(%arg0: i32) -> (i32, i32) {
    %c0_i32 = arith.constant 0 : i32
    %c0_i32_0 = arith.constant 0 : i32
    return %arg0, %c0_i32 : i32, i32
  }
  func.func @transform_1(%arg0: i32) -> (i32, i32) {
    %c0_i32 = arith.constant 0 : i32
    %c0_i32_0 = arith.constant 0 : i32
    %c0_i32_1 = arith.constant 0 : i32
    return %c0_i32, %c0_i32_0 : i32, i32
  }
  func.func @transform_2(%arg0: i32) -> (i32, i32) {
    %c0_i32 = arith.constant 0 : i32
    %c0_i32_0 = arith.constant 0 : i32
    %c0_i32_1 = arith.constant 0 : i32
    return %c0_i32, %c0_i32_0 : i32, i32
  }
  func.func @transform_3(%arg0: i32) -> (i32, i32) {
    %c0_i32 = arith.constant 0 : i32
    %c0_i32_0 = arith.constant 0 : i32
    %c0_i32_1 = arith.constant 0 : i32
    return %c0_i32, %c0_i32_0 : i32, i32
  }
  func.func @transform_4(%arg0: i32) -> (i32, i32) {
    %c0_i32 = arith.constant 0 : i32
    %c0_i32_0 = arith.constant 0 : i32
    %c0_i32_1 = arith.constant 0 : i32
    return %c0_i32, %c0_i32_0 : i32, i32
  }
  func.func @transform_5(%arg0: i32) -> (i32, i32) {
    %c0_i32 = arith.constant 0 : i32
    %c0_i32_0 = arith.constant 0 : i32
    return %arg0, %c0_i32 : i32, i32
  }
}

</mosaic_0001>

<llo_original>
// kernel: tpu_custom_call.1
$region0: #{tpu_custom_call.1}
  #allocation0 [shape = 'u32[]', space=smem, size = 0x4, offset = 0x4, fixed_abs, tag = 'smem constant byte address 0x4 - core index']
  #allocation1 [shape = 'u32[144,128]{1,0:T(1,128)}', space=vmem, size = 0x12000, scoped, tag = 'internal scratch']
  %s0 = inlined_call_operand.vmem [shape: f32[16,1152], index: 0, kind: input, shape index: {}]
  %s1 = inlined_call_operand.vmem [shape: bf16[1152,576], index: 1, kind: input, shape index: {}]
  %s2 = inlined_call_operand.vmem [shape: f32[1,576], index: 2, kind: input, shape index: {}]
  %s3 = inlined_call_operand.vmem [shape: bf16[576,128], index: 3, kind: input, shape index: {}]
  %s4 = inlined_call_operand.vmem [shape: f32[1,128], index: 4, kind: input, shape index: {}]
  %s5 = inlined_call_operand.hbm [shape: f32[16,128], index: 5, kind: output, shape index: {}]
  %s6 = sld [smem:[#allocation0]]
  $region53: #{tpu_custom_call.1} parent=0
    _
  %s8 = ssub.s32 1, %s6
  %s9 = scalar_select 0, %s8, %s6
  $region1: #{tpu_custom_call.1} parent=0
    #allocation2 [shape = 'u8[8192]{0}', space=vmem, size = 0x2000, scoped, tag = 'output window, operand 0']
    #allocation3 [shape = 's32[2]{0}', space=sflag, size = 0x8, scoped, tag = 'scoped memory for tpu_custom_call.1']
    %10 = vsyncpa [#allocation3], 0
    %s11 = scalar_lea.sflag [#allocation3], 1
    %12 = vsyncpa %s11, 0
    loop: start=0, step=1, limit=4
    $region2: #{tpu_custom_call.1} parent=1 // loop_pre_header
      _
    $region3: #{tpu_custom_call.1} parent=1 // loop_header
      %s14 = sphi 0, %s18
      %p15 = scmp.ge.s32.totalorder %s14, 4
      %s24 = sphi 0, %s26
      %s27 = sphi 0, %s24
      %s28 = sphi 0, %s27
      %s44 = sphi 0, %s28
      %s48 = sphi 0, %s48
      %s50 = sphi 0, %s48
      %s51 = sphi 0, %s50
      %s65 = sphi 0, %s51
      %s69 = sphi 0, %s69
      %s71 = sphi 0, %s69
      %s72 = sphi 0, %s71
      %s86 = sphi 0, %s72
      %s90 = sphi 0, %s90
      %s92 = sphi 0, %s90
      %s93 = sphi 0, %s92
      %s107 = sphi 0, %s93
      %s111 = sphi 0, %s111
      %s113 = sphi 0, %s111
      %s114 = sphi 0, %s113
      %s128 = sphi 0, %s114
      %s134 = sphi 0, %s136
      %s137 = sphi 0, %s134
      %s138 = sphi 0, %s137
      %s154 = sphi 0, %s138
    $region4: #{tpu_custom_call.1} parent=1 // loop_header_branch
      %17 = sbr.rel (%p15) target = $region8
    $region5: #{tpu_custom_call.1} parent=1 // loop_body
      %s19 = ssub.s32 %s14, 1
      %s20 = ssub.s32 %s14, 2
      %s21 = sadd.s32 %s14, 1
      %s22 = ssub.s32 %s14, %s21
      %p23 = scmp.eq.s32.totalorder %s22, 0
      %s25 = sadd.s32 %s24, 1
      %s26 = scalar_select %p23, %s24, %s25
      %p29 = pneg %p23
      %p30 = scmp.eq.s32.totalorder %s14, 1
      %p31 = por %p29, %p30
      %p32 = scmp.ne.s32.totalorder %s24, %s27
      %p33 = scmp.eq.s32.totalorder %s14, 0
      %p34 = por %p32, %p33
      %p35 = scmp.ne.s32.totalorder %s24, %s27
      %p36 = scmp.eq.s32.totalorder %s19, 1
      %p37 = por %p35, %p36
      %p38 = scmp.ne.s32.totalorder %s27, %s28
      %p39 = scmp.eq.s32.totalorder %s19, 0
      %p40 = por %p38, %p39
      %p41 = scmp.ne.s32.totalorder %s27, %s28
      %p42 = scmp.eq.s32.totalorder %s20, 1
      %p43 = por %p41, %p42
      %p45 = scmp.ne.s32.totalorder %s28, %s44
      %p46 = scmp.eq.s32.totalorder %s20, 0
      %p47 = por %p45, %p46
      %s49 = sadd.s32 %s48, 1
      %p52 = scmp.eq.s32.totalorder %s14, 1
      %p53 = scmp.ne.s32.totalorder %s48, %s50
      %p54 = scmp.eq.s32.totalorder %s14, 0
      %p55 = por %p53, %p54
      %p56 = scmp.ne.s32.totalorder %s48, %s50
      %p57 = scmp.eq.s32.totalorder %s19, 1
      %p58 = por %p56, %p57
      %p59 = scmp.ne.s32.totalorder %s50, %s51
      %p60 = scmp.eq.s32.totalorder %s19, 0
      %p61 = por %p59, %p60
      %p62 = scmp.ne.s32.totalorder %s50, %s51
      %p63 = scmp.eq.s32.totalorder %s20, 1
      %p64 = por %p62, %p63
      %p66 = scmp.ne.s32.totalorder %s51, %s65
      %p67 = scmp.eq.s32.totalorder %s20, 0
      %p68 = por %p66, %p67
      %s70 = sadd.s32 %s69, 1
      %p73 = scmp.eq.s32.totalorder %s14, 1
      %p74 = scmp.ne.s32.totalorder %s69, %s71
      %p75 = scmp.eq.s32.totalorder %s14, 0
      %p76 = por %p74, %p75
      %p77 = scmp.ne.s32.totalorder %s69, %s71
      %p78 = scmp.eq.s32.totalorder %s19, 1
      %p79 = por %p77, %p78
      %p80 = scmp.ne.s32.totalorder %s71, %s72
      %p81 = scmp.eq.s32.totalorder %s19, 0
      %p82 = por %p80, %p81
      %p83 = scmp.ne.s32.totalorder %s71, %s72
      %p84 = scmp.eq.s32.totalorder %s20, 1
      %p85 = por %p83, %p84
      %p87 = scmp.ne.s32.totalorder %s72, %s86
      %p88 = scmp.eq.s32.totalorder %s20, 0
      %p89 = por %p87, %p88
      %s91 = sadd.s32 %s90, 1
      %p94 = scmp.eq.s32.totalorder %s14, 1
      %p95 = scmp.ne.s32.totalorder %s90, %s92
      %p96 = scmp.eq.s32.totalorder %s14, 0
      %p97 = por %p95, %p96
      %p98 = scmp.ne.s32.totalorder %s90, %s92
      %p99 = scmp.eq.s32.totalorder %s19, 1
      %p100 = por %p98, %p99
      %p101 = scmp.ne.s32.totalorder %s92, %s93
      %p102 = scmp.eq.s32.totalorder %s19, 0
      %p103 = por %p101, %p102
      %p104 = scmp.ne.s32.totalorder %s92, %s93
      %p105 = scmp.eq.s32.totalorder %s20, 1
      %p106 = por %p104, %p105
      %p108 = scmp.ne.s32.totalorder %s93, %s107
      %p109 = scmp.eq.s32.totalorder %s20, 0
      %p110 = por %p108, %p109
      %s112 = sadd.s32 %s111, 1
      %p115 = scmp.eq.s32.totalorder %s14, 1
      %p116 = scmp.ne.s32.totalorder %s111, %s113
      %p117 = scmp.eq.s32.totalorder %s14, 0
      %p118 = por %p116, %p117
      %p119 = scmp.ne.s32.totalorder %s111, %s113
      %p120 = scmp.eq.s32.totalorder %s19, 1
      %p121 = por %p119, %p120
      %p122 = scmp.ne.s32.totalorder %s113, %s114
      %p123 = scmp.eq.s32.totalorder %s19, 0
      %p124 = por %p122, %p123
      %p125 = scmp.ne.s32.totalorder %s113, %s114
      %p126 = scmp.eq.s32.totalorder %s20, 1
      %p127 = por %p125, %p126
      %p129 = scmp.ne.s32.totalorder %s114, %s128
      %p130 = scmp.eq.s32.totalorder %s20, 0
      %p131 = por %p129, %p130
      %s132 = ssub.s32 %s14, %s21
      %p133 = scmp.eq.s32.totalorder %s132, 0
      %s135 = sadd.s32 %s134, 1
      %s136 = scalar_select %p133, %s134, %s135
      %p139 = pneg %p133
      %p140 = scmp.eq.s32.totalorder %s14, 1
      %p141 = por %p139, %p140
      %p142 = scmp.ne.s32.totalorder %s134, %s137
      %p143 = scmp.eq.s32.totalorder %s14, 0
      %p144 = por %p142, %p143
      %p145 = scmp.ne.s32.totalorder %s134, %s137
      %p146 = scmp.eq.s32.totalorder %s19, 1
      %p147 = por %p145, %p146
      %p148 = scmp.ne.s32.totalorder %s137, %s138
      %p149 = scmp.eq.s32.totalorder %s19, 0
      %p150 = por %p148, %p149
      %p151 = scmp.ne.s32.totalorder %s137, %s138
      %p152 = scmp.eq.s32.totalorder %s20, 1
      %p153 = por %p151, %p152
      %p155 = scmp.ne.s32.totalorder %s138, %s154
      %p156 = scmp.eq.s32.totalorder %s20, 0
      %p157 = por %p155, %p156
      %p158 = scmp.le.s32.totalorder 1, %s14
      %p159 = scmp.lt.s32.totalorder %s14, 3
      %p160 = pnand %p158, %p159
      %p161 = pneg %p160
      // Predicated region
      $region9: #{tpu_custom_call.1} parent=5 // pred_check
        _
      $region10: #{tpu_custom_call.1} parent=5 // pred_check_branch
        %163 = sbr.rel (%p160) target = $region12
      $region11: #{tpu_custom_call.1} parent=5 // pred_region
        %s164 = ssub.s32 %s14, 1
        // Predicated region
        $region13: #{tpu_custom_call.1} parent=11 // pred_check
          %p165 = pneg %p61
        $region14: #{tpu_custom_call.1} parent=11 // pred_check_branch
          %167 = sbr.rel (%p165) target = $region16
        $region15: #{tpu_custom_call.1} parent=11 // pred_region
          _
        $region16: #{tpu_custom_call.1} parent=11 // pred_fallthru
          _
        // Predicated region
        $region17: #{tpu_custom_call.1} parent=11 // pred_check
          %p168 = pneg %p82
        $region18: #{tpu_custom_call.1} parent=11 // pred_check_branch
          %170 = sbr.rel (%p168) target = $region20
        $region19: #{tpu_custom_call.1} parent=11 // pred_region
          _
        $region20: #{tpu_custom_call.1} parent=11 // pred_fallthru
          _
        // Predicated region
        $region21: #{tpu_custom_call.1} parent=11 // pred_check
          %p171 = pneg %p103
        $region22: #{tpu_custom_call.1} parent=11 // pred_check_branch
          %173 = sbr.rel (%p171) target = $region24
        $region23: #{tpu_custom_call.1} parent=11 // pred_region
          _
        $region24: #{tpu_custom_call.1} parent=11 // pred_fallthru
          _
        // Predicated region
        $region25: #{tpu_custom_call.1} parent=11 // pred_check
          %p174 = pneg %p124
        $region26: #{tpu_custom_call.1} parent=11 // pred_check_branch
          %176 = sbr.rel (%p174) target = $region28
        $region27: #{tpu_custom_call.1} parent=11 // pred_region
          _
        $region28: #{tpu_custom_call.1} parent=11 // pred_fallthru
          _
      $region12: #{tpu_custom_call.1} parent=5 // pred_fallthru
        _
      %p177 = scmp.lt.s32.totalorder %s14, 2
      // Predicated region
      $region29: #{tpu_custom_call.1} parent=5 // pred_check
        %p178 = pneg %p177
      $region30: #{tpu_custom_call.1} parent=5 // pred_check_branch
        %180 = sbr.rel (%p178) target = $region32
      $region31: #{tpu_custom_call.1} parent=5 // pred_region
        // Predicated region
        $region33: #{tpu_custom_call.1} parent=31 // pred_check
          %p181 = pneg %p34
        $region34: #{tpu_custom_call.1} parent=31 // pred_check_branch
          %183 = sbr.rel (%p181) target = $region36
        $region35: #{tpu_custom_call.1} parent=31 // pred_region
          %p184 = scmp.lt.s32.totalorder %s14, 1
          %s185 = scalar_select %p184, %s14, 1
          %s186 = smul.addr %s185, 9
          %s187 = smul.addr %s186, 8
          %s188 = scalar_lea.vmem %s0, %s187
        $region36: #{tpu_custom_call.1} parent=31 // pred_fallthru
          _
      $region32: #{tpu_custom_call.1} parent=5 // pred_fallthru
        _
      %p189 = scmp.le.s32.totalorder 1, %s14
      %p190 = scmp.lt.s32.totalorder %s14, 3
      %p191 = pnand %p189, %p190
      %p192 = pneg %p191
      // Predicated region
      $region37: #{tpu_custom_call.1} parent=5 // pred_check
        _
      $region38: #{tpu_custom_call.1} parent=5 // pred_check_branch
        %194 = sbr.rel (%p191) target = $region40
      $region39: #{tpu_custom_call.1} parent=5 // pred_region
        %s195 = ssub.s32 %s14, 1
        %p196 = scmp.lt.s32.totalorder %s19, 1
        %s197 = scalar_select %p196, %s19, 1
        %s198 = smul.addr %s197, 9
        %s199 = smul.addr %s198, 8
        %s200 = scalar_lea.vmem %s0, %s199
        %p201 = pneg %p40
        %p202 = pneg %p37
        %p203 = pneg %p61
        %p204 = pneg %p58
        %p205 = pneg %p82
        %p206 = pneg %p79
        %p207 = pneg %p103
        %p208 = pneg %p100
        %p209 = pneg %p124
        %p210 = pneg %p121
        %p211 = pneg %p150
        %p212 = pneg %p147
        %s213 = sand.u32 %s137, 1
        %s214 = scalar_lea.sflag [#allocation3], %s213
        %s215 = sand.u32 %s137, 1
        %s216 = smul.addr %s215, 8
        %s217 = scalar_lea.vmem [#allocation2], %s216
        %p218 = scmp.lt.s32.totalorder %s19, 1
        %s219 = scalar_select %p218, %s19, 1
        %s220 = smul.addr %s219, 9
        %s221 = smul.addr %s220, 8
        %s222 = scalar_lea.vmem %s0, %s221
        %v224 = vld [vmem:[%s222] sm:$0xff]
        %v225 = vld [vmem:[%s222 + $0x8] sm:$0xff]
        %v226 = vld [vmem:[%s222 + $0x10] sm:$0xff]
        %v227 = vld [vmem:[%s222 + $0x18] sm:$0xff]
        %v228 = vld [vmem:[%s222 + $0x20] sm:$0xff]
        %v229 = vld [vmem:[%s222 + $0x28] sm:$0xff]
        %v230 = vld [vmem:[%s222 + $0x30] sm:$0xff]
        %v231 = vld [vmem:[%s222 + $0x38] sm:$0xff]
        %v232 = vld [vmem:[%s222 + $0x40] sm:$0xff]
        %v233 = vadd.f32 %v224, %v225
        %v234 = vadd.f32 %v233, %v226
        %v235 = vadd.f32 %v234, %v227
        %v236 = vadd.f32 %v235, %v228
        %v237 = vadd.f32 %v236, %v229
        %v238 = vadd.f32 %v237, %v230
        %v239 = vadd.f32 %v238, %v231
        %v240 = vadd.f32 %v239, %v232
        %241 = vadd.xlane.f32.xlu0 %v240
        %v242 = vpop.xlane.xlu0 %241
        %v243 = vmul.f32 %v224, %v224
        %v244 = vmul.f32 %v225, %v225
        %v245 = vmul.f32 %v226, %v226
        %v246 = vmul.f32 %v227, %v227
        %v247 = vmul.f32 %v228, %v228
        %v248 = vmul.f32 %v229, %v229
        %v249 = vmul.f32 %v230, %v230
        %v250 = vmul.f32 %v231, %v231
        %v251 = vmul.f32 %v232, %v232
        %v252 = vadd.f32 %v243, %v244
        %v253 = vadd.f32 %v252, %v245
        %v254 = vadd.f32 %v253, %v246
        %v255 = vadd.f32 %v254, %v247
        %v256 = vadd.f32 %v255, %v248
        %v257 = vadd.f32 %v256, %v249
        %v258 = vadd.f32 %v257, %v250
        %v259 = vadd.f32 %v258, %v251
        %260 = vadd.xlane.f32.xlu0 %v259
        %v261 = vpop.xlane.xlu0 %260
        %v262 = vmul.f32 %v242, 0.00086805556
        %v263 = vmul.f32 %v261, 0.00086805556
        %v264 = vmul.f32 %v262, %v262
        %v265 = vsub.f32 %v263, %v264
        %v266 = vadd.f32 %v265, 1e-05
        %v267 = vrsqrt.pop %v266
        %v268 = vmul.f32 %v224, %v267
        %v269 = vmul.f32 %v225, %v267
        %v270 = vmul.f32 %v226, %v267
        %v271 = vmul.f32 %v227, %v267
        %v272 = vmul.f32 %v228, %v267
        %v273 = vmul.f32 %v229, %v267
        %v274 = vmul.f32 %v230, %v267
        %v275 = vmul.f32 %v231, %v267
        %v276 = vmul.f32 %v232, %v267
        %v277 = vmul.f32 %v262, %v267
        %v278 = vsub.f32 %v268, %v277
        %v279 = vsub.f32 %v269, %v277
        %v280 = vsub.f32 %v270, %v277
        %v281 = vsub.f32 %v271, %v277
        %v282 = vsub.f32 %v272, %v277
        %v283 = vsub.f32 %v273, %v277
        %v284 = vsub.f32 %v274, %v277
        %v285 = vsub.f32 %v275, %v277
        %v286 = vsub.f32 %v276, %v277
        %v287 = vpack.c.bf16 %v278, %v278
        %v288 = vpack.c.bf16 %v279, %v279
        %v289 = vpack.c.bf16 %v280, %v280
        %v290 = vpack.c.bf16 %v281, %v281
        %v291 = vpack.c.bf16 %v282, %v282
        %v292 = vpack.c.bf16 %v283, %v283
        %v293 = vpack.c.bf16 %v284, %v284
        %v294 = vpack.c.bf16 %v285, %v285
        %v295 = vpack.c.bf16 %v286, %v286
        %v296 = vld [vmem:[%s1] sm:$0xff]
        %v297 = vld [vmem:[%s1 + $0x8] sm:$0xff]
        %v298 = vld [vmem:[%s1 + $0x10] sm:$0xf]
        %v299 = vld [vmem:[%s1 + $0x14] sm:$0xff]
        %v300 = vld [vmem:[%s1 + $0x1c] sm:$0xff]
        %v301 = vld [vmem:[%s1 + $0x24] sm:$0xf]
        %v302 = vld [vmem:[%s1 + $0x28] sm:$0xff]
        %v303 = vld [vmem:[%s1 + $0x30] sm:$0xff]
        %v304 = vld [vmem:[%s1 + $0x38] sm:$0xf]
        %v305 = vld [vmem:[%s1 + $0x3c] sm:$0xff]
        %v306 = vld [vmem:[%s1 + $0x44] sm:$0xff]
        %v307 = vld [vmem:[%s1 + $0x4c] sm:$0xf]
        %v308 = vld [vmem:[%s1 + $0x50] sm:$0xff]
        %v309 = vld [vmem:[%s1 + $0x58] sm:$0xff]
        %v310 = vld [vmem:[%s1 + $0x60] sm:$0xf]
        %v311 = vld [vmem:[%s1 + $0x64] sm:$0xff]
        %v312 = vld [vmem:[%s1 + $0x6c] sm:$0xff]
        %v313 = vld [vmem:[%s1 + $0x74] sm:$0xf]
        %v314 = vld [vmem:[%s1 + $0x78] sm:$0xff]
        %v315 = vld [vmem:[%s1 + $0x80] sm:$0xff]
        %v316 = vld [vmem:[%s1 + $0x88] sm:$0xf]
        %v317 = vld [vmem:[%s1 + $0x8c] sm:$0xff]
        %v318 = vld [vmem:[%s1 + $0x94] sm:$0xff]
        %v319 = vld [vmem:[%s1 + $0x9c] sm:$0xf]
        %v320 = vld [vmem:[%s1 + $0xa0] sm:$0xff]
        %v321 = vld [vmem:[%s1 + $0xa8] sm:$0xff]
        %v322 = vld [vmem:[%s1 + $0xb0] sm:$0xf]
        %v323 = vld [vmem:[%s1 + $0xb4] sm:$0xff]
        %v324 = vld [vmem:[%s1 + $0xbc] sm:$0xff]
        %v325 = vld [vmem:[%s1 + $0xc4] sm:$0xf]
        %v326 = vld [vmem:[%s1 + $0xc8] sm:$0xff]
        %v327 = vld [vmem:[%s1 + $0xd0] sm:$0xff]
        %v328 = vld [vmem:[%s1 + $0xd8] sm:$0xf]
        %v329 = vld [vmem:[%s1 + $0xdc] sm:$0xff]
        %v330 = vld [vmem:[%s1 + $0xe4] sm:$0xff]
        %v331 = vld [vmem:[%s1 + $0xec] sm:$0xf]
        %v332 = vld [vmem:[%s1 + $0xf0] sm:$0xff]
        %v333 = vld [vmem:[%s1 + $0xf8] sm:$0xff]
        %v334 = vld [vmem:[%s1 + $0x100] sm:$0xf]
        %v335 = vld [vmem:[%s1 + $0x104] sm:$0xff]
        %v336 = vld [vmem:[%s1 + $0x10c] sm:$0xff]
        %v337 = vld [vmem:[%s1 + $0x114] sm:$0xf]
        %v338 = vld [vmem:[%s1 + $0x118] sm:$0xff]
        %v339 = vld [vmem:[%s1 + $0x120] sm:$0xff]
        %v340 = vld [vmem:[%s1 + $0x128] sm:$0xf]
        %v341 = vld [vmem:[%s1 + $0x12c] sm:$0xff]
        %v342 = vld [vmem:[%s1 + $0x134] sm:$0xff]
        %v343 = vld [vmem:[%s1 + $0x13c] sm:$0xf]
        %v344 = vld [vmem:[%s1 + $0x140] sm:$0xff]
        %v345 = vld [vmem:[%s1 + $0x148] sm:$0xff]
        %v346 = vld [vmem:[%s1 + $0x150] sm:$0xf]
        %v347 = vld [vmem:[%s1 + $0x154] sm:$0xff]
        %v348 = vld [vmem:[%s1 + $0x15c] sm:$0xff]
        %v349 = vld [vmem:[%s1 + $0x164] sm:$0xf]
        %v350 = vld [vmem:[%s1 + $0x168] sm:$0xff]
        %v351 = vld [vmem:[%s1 + $0x170] sm:$0xff]
        %v352 = vld [vmem:[%s1 + $0x178] sm:$0xf]
        %v353 = vld [vmem:[%s1 + $0x17c] sm:$0xff]
        %v354 = vld [vmem:[%s1 + $0x184] sm:$0xff]
        %v355 = vld [vmem:[%s1 + $0x18c] sm:$0xf]
        %v356 = vld [vmem:[%s1 + $0x190] sm:$0xff]
        %v357 = vld [vmem:[%s1 + $0x198] sm:$0xff]
        %v358 = vld [vmem:[%s1 + $0x1a0] sm:$0xf]
        %v359 = vld [vmem:[%s1 + $0x1a4] sm:$0xff]
        %v360 = vld [vmem:[%s1 + $0x1ac] sm:$0xff]
        %v361 = vld [vmem:[%s1 + $0x1b4] sm:$0xf]
        %v362 = vld [vmem:[%s1 + $0x1b8] sm:$0xff]
        %v363 = vld [vmem:[%s1 + $0x1c0] sm:$0xff]
        %v364 = vld [vmem:[%s1 + $0x1c8] sm:$0xf]
        %v365 = vld [vmem:[%s1 + $0x1cc] sm:$0xff]
        %v366 = vld [vmem:[%s1 + $0x1d4] sm:$0xff]
        %v367 = vld [vmem:[%s1 + $0x1dc] sm:$0xf]
        %v368 = vld [vmem:[%s1 + $0x1e0] sm:$0xff]
        %v369 = vld [vmem:[%s1 + $0x1e8] sm:$0xff]
        %v370 = vld [vmem:[%s1 + $0x1f0] sm:$0xf]
        %v371 = vld [vmem:[%s1 + $0x1f4] sm:$0xff]
        %v372 = vld [vmem:[%s1 + $0x1fc] sm:$0xff]
        %v373 = vld [vmem:[%s1 + $0x204] sm:$0xf]
        %v374 = vld [vmem:[%s1 + $0x208] sm:$0xff]
        %v375 = vld [vmem:[%s1 + $0x210] sm:$0xff]
        %v376 = vld [vmem:[%s1 + $0x218] sm:$0xf]
        %v377 = vld [vmem:[%s1 + $0x21c] sm:$0xff]
        %v378 = vld [vmem:[%s1 + $0x224] sm:$0xff]
        %v379 = vld [vmem:[%s1 + $0x22c] sm:$0xf]
        %v380 = vld [vmem:[%s1 + $0x230] sm:$0xff]
        %v381 = vld [vmem:[%s1 + $0x238] sm:$0xff]
        %v382 = vld [vmem:[%s1 + $0x240] sm:$0xf]
        %v383 = vld [vmem:[%s1 + $0x244] sm:$0xff]
        %v384 = vld [vmem:[%s1 + $0x24c] sm:$0xff]
        %v385 = vld [vmem:[%s1 + $0x254] sm:$0xf]
        %v386 = vld [vmem:[%s1 + $0x258] sm:$0xff]
        %v387 = vld [vmem:[%s1 + $0x260] sm:$0xff]
        %v388 = vld [vmem:[%s1 + $0x268] sm:$0xf]
        %v389 = vld [vmem:[%s1 + $0x26c] sm:$0xff]
        %v390 = vld [vmem:[%s1 + $0x274] sm:$0xff]
        %v391 = vld [vmem:[%s1 + $0x27c] sm:$0xf]
        %v392 = vld [vmem:[%s1 + $0x280] sm:$0xff]
        %v393 = vld [vmem:[%s1 + $0x288] sm:$0xff]
        %v394 = vld [vmem:[%s1 + $0x290] sm:$0xf]
        %v395 = vld [vmem:[%s1 + $0x294] sm:$0xff]
        %v396 = vld [vmem:[%s1 + $0x29c] sm:$0xff]
        %v397 = vld [vmem:[%s1 + $0x2a4] sm:$0xf]
        %v398 = vld [vmem:[%s1 + $0x2a8] sm:$0xff]
        %v399 = vld [vmem:[%s1 + $0x2b0] sm:$0xff]
        %v400 = vld [vmem:[%s1 + $0x2b8] sm:$0xf]
        %v401 = vld [vmem:[%s1 + $0x2bc] sm:$0xff]
        %v402 = vld [vmem:[%s1 + $0x2c4] sm:$0xff]
        %v403 = vld [vmem:[%s1 + $0x2cc] sm:$0xf]
        %v404 = vld [vmem:[%s1 + $0x2d0] sm:$0xff]
        %v405 = vld [vmem:[%s1 + $0x2d8] sm:$0xff]
        %v406 = vld [vmem:[%s1 + $0x2e0] sm:$0xf]
        %v407 = vld [vmem:[%s1 + $0x2e4] sm:$0xff]
        %v408 = vld [vmem:[%s1 + $0x2ec] sm:$0xff]
        %v409 = vld [vmem:[%s1 + $0x2f4] sm:$0xf]
        %v410 = vld [vmem:[%s1 + $0x2f8] sm:$0xff]
        %v411 = vld [vmem:[%s1 + $0x300] sm:$0xff]
        %v412 = vld [vmem:[%s1 + $0x308] sm:$0xf]
        %v413 = vld [vmem:[%s1 + $0x30c] sm:$0xff]
        %v414 = vld [vmem:[%s1 + $0x314] sm:$0xff]
        %v415 = vld [vmem:[%s1 + $0x31c] sm:$0xf]
        %v416 = vld [vmem:[%s1 + $0x320] sm:$0xff]
        %v417 = vld [vmem:[%s1 + $0x328] sm:$0xff]
        %v418 = vld [vmem:[%s1 + $0x330] sm:$0xf]
        %v419 = vld [vmem:[%s1 + $0x334] sm:$0xff]
        %v420 = vld [vmem:[%s1 + $0x33c] sm:$0xff]
        %v421 = vld [vmem:[%s1 + $0x344] sm:$0xf]
        %v422 = vld [vmem:[%s1 + $0x348] sm:$0xff]
        %v423 = vld [vmem:[%s1 + $0x350] sm:$0xff]
        %v424 = vld [vmem:[%s1 + $0x358] sm:$0xf]
        %v425 = vld [vmem:[%s1 + $0x35c] sm:$0xff]
        %v426 = vld [vmem:[%s1 + $0x364] sm:$0xff]
        %v427 = vld [vmem:[%s1 + $0x36c] sm:$0xf]
        %v428 = vld [vmem:[%s1 + $0x370] sm:$0xff]
        %v429 = vld [vmem:[%s1 + $0x378] sm:$0xff]
        %v430 = vld [vmem:[%s1 + $0x380] sm:$0xf]
        %v431 = vld [vmem:[%s1 + $0x384] sm:$0xff]
        %v432 = vld [vmem:[%s1 + $0x38c] sm:$0xff]
        %v433 = vld [vmem:[%s1 + $0x394] sm:$0xf]
        %v434 = vld [vmem:[%s1 + $0x398] sm:$0xff]
        %v435 = vld [vmem:[%s1 + $0x3a0] sm:$0xff]
        %v436 = vld [vmem:[%s1 + $0x3a8] sm:$0xf]
        %v437 = vld [vmem:[%s1 + $0x3ac] sm:$0xff]
        %v438 = vld [vmem:[%s1 + $0x3b4] sm:$0xff]
        %v439 = vld [vmem:[%s1 + $0x3bc] sm:$0xf]
        %v440 = vld [vmem:[%s1 + $0x3c0] sm:$0xff]
        %v441 = vld [vmem:[%s1 + $0x3c8] sm:$0xff]
        %v442 = vld [vmem:[%s1 + $0x3d0] sm:$0xf]
        %v443 = vld [vmem:[%s1 + $0x3d4] sm:$0xff]
        %v444 = vld [vmem:[%s1 + $0x3dc] sm:$0xff]
        %v445 = vld [vmem:[%s1 + $0x3e4] sm:$0xf]
        %v446 = vld [vmem:[%s1 + $0x3e8] sm:$0xff]
        %v447 = vld [vmem:[%s1 + $0x3f0] sm:$0xff]
        %v448 = vld [vmem:[%s1 + $0x3f8] sm:$0xf]
        %v449 = vld [vmem:[%s1 + $0x3fc] sm:$0xff]
        %v450 = vld [vmem:[%s1 + $0x404] sm:$0xff]
        %v451 = vld [vmem:[%s1 + $0x40c] sm:$0xf]
        %v452 = vld [vmem:[%s1 + $0x410] sm:$0xff]
        %v453 = vld [vmem:[%s1 + $0x418] sm:$0xff]
        %v454 = vld [vmem:[%s1 + $0x420] sm:$0xf]
        %v455 = vld [vmem:[%s1 + $0x424] sm:$0xff]
        %v456 = vld [vmem:[%s1 + $0x42c] sm:$0xff]
        %v457 = vld [vmem:[%s1 + $0x434] sm:$0xf]
        %v458 = vld [vmem:[%s1 + $0x438] sm:$0xff]
        %v459 = vld [vmem:[%s1 + $0x440] sm:$0xff]
        %v460 = vld [vmem:[%s1 + $0x448] sm:$0xf]
        %v461 = vld [vmem:[%s1 + $0x44c] sm:$0xff]
        %v462 = vld [vmem:[%s1 + $0x454] sm:$0xff]
        %v463 = vld [vmem:[%s1 + $0x45c] sm:$0xf]
        %v464 = vld [vmem:[%s1 + $0x460] sm:$0xff]
        %v465 = vld [vmem:[%s1 + $0x468] sm:$0xff]
        %v466 = vld [vmem:[%s1 + $0x470] sm:$0xf]
        %v467 = vld [vmem:[%s1 + $0x474] sm:$0xff]
        %v468 = vld [vmem:[%s1 + $0x47c] sm:$0xff]
        %v469 = vld [vmem:[%s1 + $0x484] sm:$0xf]
        %v470 = vld [vmem:[%s1 + $0x488] sm:$0xff]
        %v471 = vld [vmem:[%s1 + $0x490] sm:$0xff]
        %v472 = vld [vmem:[%s1 + $0x498] sm:$0xf]
        %v473 = vld [vmem:[%s1 + $0x49c] sm:$0xff]
        %v474 = vld [vmem:[%s1 + $0x4a4] sm:$0xff]
        %v475 = vld [vmem:[%s1 + $0x4ac] sm:$0xf]
        %v476 = vld [vmem:[%s1 + $0x4b0] sm:$0xff]
        %v477 = vld [vmem:[%s1 + $0x4b8] sm:$0xff]
        %v478 = vld [vmem:[%s1 + $0x4c0] sm:$0xf]
        %v479 = vld [vmem:[%s1 + $0x4c4] sm:$0xff]
        %v480 = vld [vmem:[%s1 + $0x4cc] sm:$0xff]
        %v481 = vld [vmem:[%s1 + $0x4d4] sm:$0xf]
        %v482 = vld [vmem:[%s1 + $0x4d8] sm:$0xff]
        %v483 = vld [vmem:[%s1 + $0x4e0] sm:$0xff]
        %v484 = vld [vmem:[%s1 + $0x4e8] sm:$0xf]
        %v485 = vld [vmem:[%s1 + $0x4ec] sm:$0xff]
        %v486 = vld [vmem:[%s1 + $0x4f4] sm:$0xff]
        %v487 = vld [vmem:[%s1 + $0x4fc] sm:$0xf]
        %v488 = vld [vmem:[%s1 + $0x500] sm:$0xff]
        %v489 = vld [vmem:[%s1 + $0x508] sm:$0xff]
        %v490 = vld [vmem:[%s1 + $0x510] sm:$0xf]
        %v491 = vld [vmem:[%s1 + $0x514] sm:$0xff]
        %v492 = vld [vmem:[%s1 + $0x51c] sm:$0xff]
        %v493 = vld [vmem:[%s1 + $0x524] sm:$0xf]
        %v494 = vld [vmem:[%s1 + $0x528] sm:$0xff]
        %v495 = vld [vmem:[%s1 + $0x530] sm:$0xff]
        %v496 = vld [vmem:[%s1 + $0x538] sm:$0xf]
        %v497 = vld [vmem:[%s1 + $0x53c] sm:$0xff]
        %v498 = vld [vmem:[%s1 + $0x544] sm:$0xff]
        %v499 = vld [vmem:[%s1 + $0x54c] sm:$0xf]
        %v500 = vld [vmem:[%s1 + $0x550] sm:$0xff]
        %v501 = vld [vmem:[%s1 + $0x558] sm:$0xff]
        %v502 = vld [vmem:[%s1 + $0x560] sm:$0xf]
        %v503 = vld [vmem:[%s1 + $0x564] sm:$0xff]
        %v504 = vld [vmem:[%s1 + $0x56c] sm:$0xff]
        %v505 = vld [vmem:[%s1 + $0x574] sm:$0xf]
        %v506 = vld [vmem:[%s1 + $0x578] sm:$0xff]
        %v507 = vld [vmem:[%s1 + $0x580] sm:$0xff]
        %v508 = vld [vmem:[%s1 + $0x588] sm:$0xf]
        %v509 = vld [vmem:[%s1 + $0x58c] sm:$0xff]
        %v510 = vld [vmem:[%s1 + $0x594] sm:$0xff]
        %v511 = vld [vmem:[%s1 + $0x59c] sm:$0xf]
        %v512 = vld [vmem:[%s1 + $0x5a0] sm:$0xff]
        %v513 = vld [vmem:[%s1 + $0x5a8] sm:$0xff]
        %v514 = vld [vmem:[%s1 + $0x5b0] sm:$0xf]
        %v515 = vld [vmem:[%s1 + $0x5b4] sm:$0xff]
        %v516 = vld [vmem:[%s1 + $0x5bc] sm:$0xff]
        %v517 = vld [vmem:[%s1 + $0x5c4] sm:$0xf]
        %v518 = vld [vmem:[%s1 + $0x5c8] sm:$0xff]
        %v519 = vld [vmem:[%s1 + $0x5d0] sm:$0xff]
        %v520 = vld [vmem:[%s1 + $0x5d8] sm:$0xf]
        %v521 = vld [vmem:[%s1 + $0x5dc] sm:$0xff]
        %v522 = vld [vmem:[%s1 + $0x5e4] sm:$0xff]
        %v523 = vld [vmem:[%s1 + $0x5ec] sm:$0xf]
        %v524 = vld [vmem:[%s1 + $0x5f0] sm:$0xff]
        %v525 = vld [vmem:[%s1 + $0x5f8] sm:$0xff]
        %v526 = vld [vmem:[%s1 + $0x600] sm:$0xf]
        %v527 = vld [vmem:[%s1 + $0x604] sm:$0xff]
        %v528 = vld [vmem:[%s1 + $0x60c] sm:$0xff]
        %v529 = vld [vmem:[%s1 + $0x614] sm:$0xf]
        %v530 = vld [vmem:[%s1 + $0x618] sm:$0xff]
        %v531 = vld [vmem:[%s1 + $0x620] sm:$0xff]
        %v532 = vld [vmem:[%s1 + $0x628] sm:$0xf]
        %v533 = vld [vmem:[%s1 + $0x62c] sm:$0xff]
        %v534 = vld [vmem:[%s1 + $0x634] sm:$0xff]
        %v535 = vld [vmem:[%s1 + $0x63c] sm:$0xf]
        %v536 = vld [vmem:[%s1 + $0x640] sm:$0xff]
        %v537 = vld [vmem:[%s1 + $0x648] sm:$0xff]
        %v538 = vld [vmem:[%s1 + $0x650] sm:$0xf]
        %v539 = vld [vmem:[%s1 + $0x654] sm:$0xff]
        %v540 = vld [vmem:[%s1 + $0x65c] sm:$0xff]
        %v541 = vld [vmem:[%s1 + $0x664] sm:$0xf]
        %v542 = vld [vmem:[%s1 + $0x668] sm:$0xff]
        %v543 = vld [vmem:[%s1 + $0x670] sm:$0xff]
        %v544 = vld [vmem:[%s1 + $0x678] sm:$0xf]
        %v545 = vld [vmem:[%s1 + $0x67c] sm:$0xff]
        %v546 = vld [vmem:[%s1 + $0x684] sm:$0xff]
        %v547 = vld [vmem:[%s1 + $0x68c] sm:$0xf]
        %v548 = vld [vmem:[%s1 + $0x690] sm:$0xff]
        %v549 = vld [vmem:[%s1 + $0x698] sm:$0xff]
        %v550 = vld [vmem:[%s1 + $0x6a0] sm:$0xf]
        %v551 = vld [vmem:[%s1 + $0x6a4] sm:$0xff]
        %v552 = vld [vmem:[%s1 + $0x6ac] sm:$0xff]
        %v553 = vld [vmem:[%s1 + $0x6b4] sm:$0xf]
        %v554 = vld [vmem:[%s1 + $0x6b8] sm:$0xff]
        %v555 = vld [vmem:[%s1 + $0x6c0] sm:$0xff]
        %v556 = vld [vmem:[%s1 + $0x6c8] sm:$0xf]
        %v557 = vld [vmem:[%s1 + $0x6cc] sm:$0xff]
        %v558 = vld [vmem:[%s1 + $0x6d4] sm:$0xff]
        %v559 = vld [vmem:[%s1 + $0x6dc] sm:$0xf]
        %v560 = vld [vmem:[%s1 + $0x6e0] sm:$0xff]
        %v561 = vld [vmem:[%s1 + $0x6e8] sm:$0xff]
        %v562 = vld [vmem:[%s1 + $0x6f0] sm:$0xf]
        %v563 = vld [vmem:[%s1 + $0x6f4] sm:$0xff]
        %v564 = vld [vmem:[%s1 + $0x6fc] sm:$0xff]
        %v565 = vld [vmem:[%s1 + $0x704] sm:$0xf]
        %v566 = vld [vmem:[%s1 + $0x708] sm:$0xff]
        %v567 = vld [vmem:[%s1 + $0x710] sm:$0xff]
        %v568 = vld [vmem:[%s1 + $0x718] sm:$0xf]
        %v569 = vld [vmem:[%s1 + $0x71c] sm:$0xff]
        %v570 = vld [vmem:[%s1 + $0x724] sm:$0xff]
        %v571 = vld [vmem:[%s1 + $0x72c] sm:$0xf]
        %v572 = vld [vmem:[%s1 + $0x730] sm:$0xff]
        %v573 = vld [vmem:[%s1 + $0x738] sm:$0xff]
        %v574 = vld [vmem:[%s1 + $0x740] sm:$0xf]
        %v575 = vld [vmem:[%s1 + $0x744] sm:$0xff]
        %v576 = vld [vmem:[%s1 + $0x74c] sm:$0xff]
        %v577 = vld [vmem:[%s1 + $0x754] sm:$0xf]
        %v578 = vld [vmem:[%s1 + $0x758] sm:$0xff]
        %v579 = vld [vmem:[%s1 + $0x760] sm:$0xff]
        %v580 = vld [vmem:[%s1 + $0x768] sm:$0xf]
        %v581 = vld [vmem:[%s1 + $0x76c] sm:$0xff]
        %v582 = vld [vmem:[%s1 + $0x774] sm:$0xff]
        %v583 = vld [vmem:[%s1 + $0x77c] sm:$0xf]
        %v584 = vld [vmem:[%s1 + $0x780] sm:$0xff]
        %v585 = vld [vmem:[%s1 + $0x788] sm:$0xff]
        %v586 = vld [vmem:[%s1 + $0x790] sm:$0xf]
        %v587 = vld [vmem:[%s1 + $0x794] sm:$0xff]
        %v588 = vld [vmem:[%s1 + $0x79c] sm:$0xff]
        %v589 = vld [vmem:[%s1 + $0x7a4] sm:$0xf]
        %v590 = vld [vmem:[%s1 + $0x7a8] sm:$0xff]
        %v591 = vld [vmem:[%s1 + $0x7b0] sm:$0xff]
        %v592 = vld [vmem:[%s1 + $0x7b8] sm:$0xf]
        %v593 = vld [vmem:[%s1 + $0x7bc] sm:$0xff]
        %v594 = vld [vmem:[%s1 + $0x7c4] sm:$0xff]
        %v595 = vld [vmem:[%s1 + $0x7cc] sm:$0xf]
        %v596 = vld [vmem:[%s1 + $0x7d0] sm:$0xff]
        %v597 = vld [vmem:[%s1 + $0x7d8] sm:$0xff]
        %v598 = vld [vmem:[%s1 + $0x7e0] sm:$0xf]
        %v599 = vld [vmem:[%s1 + $0x7e4] sm:$0xff]
        %v600 = vld [vmem:[%s1 + $0x7ec] sm:$0xff]
        %v601 = vld [vmem:[%s1 + $0x7f4] sm:$0xf]
        %v602 = vld [vmem:[%s1 + $0x7f8] sm:$0xff]
        %v603 = vld [vmem:[%s1 + $0x800] sm:$0xff]
        %v604 = vld [vmem:[%s1 + $0x808] sm:$0xf]
        %v605 = vld [vmem:[%s1 + $0x80c] sm:$0xff]
        %v606 = vld [vmem:[%s1 + $0x814] sm:$0xff]
        %v607 = vld [vmem:[%s1 + $0x81c] sm:$0xf]
        %v608 = vld [vmem:[%s1 + $0x820] sm:$0xff]
        %v609 = vld [vmem:[%s1 + $0x828] sm:$0xff]
        %v610 = vld [vmem:[%s1 + $0x830] sm:$0xf]
        %v611 = vld [vmem:[%s1 + $0x834] sm:$0xff]
        %v612 = vld [vmem:[%s1 + $0x83c] sm:$0xff]
        %v613 = vld [vmem:[%s1 + $0x844] sm:$0xf]
        %v614 = vld [vmem:[%s1 + $0x848] sm:$0xff]
        %v615 = vld [vmem:[%s1 + $0x850] sm:$0xff]
        %v616 = vld [vmem:[%s1 + $0x858] sm:$0xf]
        %v617 = vld [vmem:[%s1 + $0x85c] sm:$0xff]
        %v618 = vld [vmem:[%s1 + $0x864] sm:$0xff]
        %v619 = vld [vmem:[%s1 + $0x86c] sm:$0xf]
        %v620 = vld [vmem:[%s1 + $0x870] sm:$0xff]
        %v621 = vld [vmem:[%s1 + $0x878] sm:$0xff]
        %v622 = vld [vmem:[%s1 + $0x880] sm:$0xf]
        %v623 = vld [vmem:[%s1 + $0x884] sm:$0xff]
        %v624 = vld [vmem:[%s1 + $0x88c] sm:$0xff]
        %v625 = vld [vmem:[%s1 + $0x894] sm:$0xf]
        %v626 = vld [vmem:[%s1 + $0x898] sm:$0xff]
        %v627 = vld [vmem:[%s1 + $0x8a0] sm:$0xff]
        %v628 = vld [vmem:[%s1 + $0x8a8] sm:$0xf]
        %v629 = vld [vmem:[%s1 + $0x8ac] sm:$0xff]
        %v630 = vld [vmem:[%s1 + $0x8b4] sm:$0xff]
        %v631 = vld [vmem:[%s1 + $0x8bc] sm:$0xf]
        %v632 = vld [vmem:[%s1 + $0x8c0] sm:$0xff]
        %v633 = vld [vmem:[%s1 + $0x8c8] sm:$0xff]
        %v634 = vld [vmem:[%s1 + $0x8d0] sm:$0xf]
        %v635 = vld [vmem:[%s1 + $0x8d4] sm:$0xff]
        %v636 = vld [vmem:[%s1 + $0x8dc] sm:$0xff]
        %v637 = vld [vmem:[%s1 + $0x8e4] sm:$0xf]
        %v638 = vld [vmem:[%s1 + $0x8e8] sm:$0xff]
        %v639 = vld [vmem:[%s1 + $0x8f0] sm:$0xff]
        %v640 = vld [vmem:[%s1 + $0x8f8] sm:$0xf]
        %v641 = vld [vmem:[%s1 + $0x8fc] sm:$0xff]
        %v642 = vld [vmem:[%s1 + $0x904] sm:$0xff]
        %v643 = vld [vmem:[%s1 + $0x90c] sm:$0xf]
        %v644 = vld [vmem:[%s1 + $0x910] sm:$0xff]
        %v645 = vld [vmem:[%s1 + $0x918] sm:$0xff]
        %v646 = vld [vmem:[%s1 + $0x920] sm:$0xf]
        %v647 = vld [vmem:[%s1 + $0x924] sm:$0xff]
        %v648 = vld [vmem:[%s1 + $0x92c] sm:$0xff]
        %v649 = vld [vmem:[%s1 + $0x934] sm:$0xf]
        %v650 = vld [vmem:[%s1 + $0x938] sm:$0xff]
        %v651 = vld [vmem:[%s1 + $0x940] sm:$0xff]
        %v652 = vld [vmem:[%s1 + $0x948] sm:$0xf]
        %v653 = vld [vmem:[%s1 + $0x94c] sm:$0xff]
        %v654 = vld [vmem:[%s1 + $0x954] sm:$0xff]
        %v655 = vld [vmem:[%s1 + $0x95c] sm:$0xf]
        %v656 = vld [vmem:[%s1 + $0x960] sm:$0xff]
        %v657 = vld [vmem:[%s1 + $0x968] sm:$0xff]
        %v658 = vld [vmem:[%s1 + $0x970] sm:$0xf]
        %v659 = vld [vmem:[%s1 + $0x974] sm:$0xff]
        %v660 = vld [vmem:[%s1 + $0x97c] sm:$0xff]
        %v661 = vld [vmem:[%s1 + $0x984] sm:$0xf]
        %v662 = vld [vmem:[%s1 + $0x988] sm:$0xff]
        %v663 = vld [vmem:[%s1 + $0x990] sm:$0xff]
        %v664 = vld [vmem:[%s1 + $0x998] sm:$0xf]
        %v665 = vld [vmem:[%s1 + $0x99c] sm:$0xff]
        %v666 = vld [vmem:[%s1 + $0x9a4] sm:$0xff]
        %v667 = vld [vmem:[%s1 + $0x9ac] sm:$0xf]
        %v668 = vld [vmem:[%s1 + $0x9b0] sm:$0xff]
        %v669 = vld [vmem:[%s1 + $0x9b8] sm:$0xff]
        %v670 = vld [vmem:[%s1 + $0x9c0] sm:$0xf]
        %v671 = vld [vmem:[%s1 + $0x9c4] sm:$0xff]
        %v672 = vld [vmem:[%s1 + $0x9cc] sm:$0xff]
        %v673 = vld [vmem:[%s1 + $0x9d4] sm:$0xf]
        %v674 = vld [vmem:[%s1 + $0x9d8] sm:$0xff]
        %v675 = vld [vmem:[%s1 + $0x9e0] sm:$0xff]
        %v676 = vld [vmem:[%s1 + $0x9e8] sm:$0xf]
        %v677 = vld [vmem:[%s1 + $0x9ec] sm:$0xff]
        %v678 = vld [vmem:[%s1 + $0x9f4] sm:$0xff]
        %v679 = vld [vmem:[%s1 + $0x9fc] sm:$0xf]
        %v680 = vld [vmem:[%s1 + $0xa00] sm:$0xff]
        %v681 = vld [vmem:[%s1 + $0xa08] sm:$0xff]
        %v682 = vld [vmem:[%s1 + $0xa10] sm:$0xf]
        %v683 = vld [vmem:[%s1 + $0xa14] sm:$0xff]
        %v684 = vld [vmem:[%s1 + $0xa1c] sm:$0xff]
        %v685 = vld [vmem:[%s1 + $0xa24] sm:$0xf]
        %v686 = vld [vmem:[%s1 + $0xa28] sm:$0xff]
        %v687 = vld [vmem:[%s1 + $0xa30] sm:$0xff]
        %v688 = vld [vmem:[%s1 + $0xa38] sm:$0xf]
        %v689 = vld [vmem:[%s1 + $0xa3c] sm:$0xff]
        %v690 = vld [vmem:[%s1 + $0xa44] sm:$0xff]
        %v691 = vld [vmem:[%s1 + $0xa4c] sm:$0xf]
        %v692 = vld [vmem:[%s1 + $0xa50] sm:$0xff]
        %v693 = vld [vmem:[%s1 + $0xa58] sm:$0xff]
        %v694 = vld [vmem:[%s1 + $0xa60] sm:$0xf]
        %v695 = vld [vmem:[%s1 + $0xa64] sm:$0xff]
        %v696 = vld [vmem:[%s1 + $0xa6c] sm:$0xff]
        %v697 = vld [vmem:[%s1 + $0xa74] sm:$0xf]
        %v698 = vld [vmem:[%s1 + $0xa78] sm:$0xff]
        %v699 = vld [vmem:[%s1 + $0xa80] sm:$0xff]
        %v700 = vld [vmem:[%s1 + $0xa88] sm:$0xf]
        %v701 = vld [vmem:[%s1 + $0xa8c] sm:$0xff]
        %v702 = vld [vmem:[%s1 + $0xa94] sm:$0xff]
        %v703 = vld [vmem:[%s1 + $0xa9c] sm:$0xf]
        %v704 = vld [vmem:[%s1 + $0xaa0] sm:$0xff]
        %v705 = vld [vmem:[%s1 + $0xaa8] sm:$0xff]
        %v706 = vld [vmem:[%s1 + $0xab0] sm:$0xf]
        %v707 = vld [vmem:[%s1 + $0xab4] sm:$0xff]
        %v708 = vld [vmem:[%s1 + $0xabc] sm:$0xff]
        %v709 = vld [vmem:[%s1 + $0xac4] sm:$0xf]
        %v710 = vld [vmem:[%s1 + $0xac8] sm:$0xff]
        %v711 = vld [vmem:[%s1 + $0xad0] sm:$0xff]
        %v712 = vld [vmem:[%s1 + $0xad8] sm:$0xf]
        %v713 = vld [vmem:[%s1 + $0xadc] sm:$0xff]
        %v714 = vld [vmem:[%s1 + $0xae4] sm:$0xff]
        %v715 = vld [vmem:[%s1 + $0xaec] sm:$0xf]
        %v716 = vld [vmem:[%s1 + $0xaf0] sm:$0xff]
        %v717 = vld [vmem:[%s1 + $0xaf8] sm:$0xff]
        %v718 = vld [vmem:[%s1 + $0xb00] sm:$0xf]
        %v719 = vld [vmem:[%s1 + $0xb04] sm:$0xff]
        %v720 = vld [vmem:[%s1 + $0xb0c] sm:$0xff]
        %v721 = vld [vmem:[%s1 + $0xb14] sm:$0xf]
        %v722 = vld [vmem:[%s1 + $0xb18] sm:$0xff]
        %v723 = vld [vmem:[%s1 + $0xb20] sm:$0xff]
        %v724 = vld [vmem:[%s1 + $0xb28] sm:$0xf]
        %v725 = vld [vmem:[%s1 + $0xb2c] sm:$0xff]
        %v726 = vld [vmem:[%s1 + $0xb34] sm:$0xff]
        %v727 = vld [vmem:[%s1 + $0xb3c] sm:$0xf]
        %v728 = vld [vmem:[%s2] sm:$0x1f]
        %v730 = vlaneseq
        %v731 = vshrl.u32 %v730, 7
        %v732 = vsub.s32 0, %v731
        %v733 = vrot.slane %v728, %v732
        %v734 = vlaneseq
        %v735 = vshrl.u32 %v734, 7
        %v736 = vsub.s32 1, %v735
        %v737 = vrot.slane %v728, %v736
        %v738 = vlaneseq
        %v739 = vshrl.u32 %v738, 7
        %v740 = vsub.s32 2, %v739
        %v741 = vrot.slane %v728, %v740
        %v742 = vlaneseq
        %v743 = vshrl.u32 %v742, 7
        %v744 = vsub.s32 3, %v743
        %v745 = vrot.slane %v728, %v744
        %v746 = vlaneseq
        %v747 = vshrl.u32 %v746, 7
        %v748 = vsub.s32 4, %v747
        %v749 = vrot.slane %v728, %v748
        %v1187 = vunpack.c.l.b16 %v296
        %v1188 = vunpack.c.h.b16 %v296
        %v1189 = vunpack.c.l.b16 %v297
        %v1190 = vunpack.c.h.b16 %v297
        %v1191 = vunpack.c.l.b16 %v298
        %v1192 = vunpack.c.l.b16 %v299
        %v1193 = vunpack.c.h.b16 %v299
        %v1194 = vunpack.c.l.b16 %v300
        %v1195 = vunpack.c.h.b16 %v300
        %v1196 = vunpack.c.l.b16 %v301
        %v1197 = vunpack.c.l.b16 %v302
        %v1198 = vunpack.c.h.b16 %v302
        %v1199 = vunpack.c.l.b16 %v303
        %v1200 = vunpack.c.h.b16 %v303
        %v1201 = vunpack.c.l.b16 %v304
        %v1202 = vunpack.c.l.b16 %v305
        %v1203 = vunpack.c.h.b16 %v305
        %v1204 = vunpack.c.l.b16 %v306
        %v1205 = vunpack.c.h.b16 %v306
        %v1206 = vunpack.c.l.b16 %v307
        %v1207 = vunpack.c.l.b16 %v308
        %v1208 = vunpack.c.h.b16 %v308
        %v1209 = vunpack.c.l.b16 %v309
        %v1210 = vunpack.c.h.b16 %v309
        %v1211 = vunpack.c.l.b16 %v310
        %v1212 = vunpack.c.l.b16 %v311
        %v1213 = vunpack.c.h.b16 %v311
        %v1214 = vunpack.c.l.b16 %v312
        %v1215 = vunpack.c.h.b16 %v312
        %v1216 = vunpack.c.l.b16 %v313
        %v1217 = vunpack.c.l.b16 %v314
        %v1218 = vunpack.c.h.b16 %v314
        %v1219 = vunpack.c.l.b16 %v315
        %v1220 = vunpack.c.h.b16 %v315
        %v1221 = vunpack.c.l.b16 %v316
        %v1222 = vunpack.c.l.b16 %v317
        %v1223 = vunpack.c.h.b16 %v317
        %v1224 = vunpack.c.l.b16 %v318
        %v1225 = vunpack.c.h.b16 %v318
        %v1226 = vunpack.c.l.b16 %v319
        %v1227 = vunpack.c.l.b16 %v320
        %v1228 = vunpack.c.h.b16 %v320
        %v1229 = vunpack.c.l.b16 %v321
        %v1230 = vunpack.c.h.b16 %v321
        %v1231 = vunpack.c.l.b16 %v322
        %v1232 = vunpack.c.l.b16 %v323
        %v1233 = vunpack.c.h.b16 %v323
        %v1234 = vunpack.c.l.b16 %v324
        %v1235 = vunpack.c.h.b16 %v324
        %v1236 = vunpack.c.l.b16 %v325
        %v1237 = vunpack.c.l.b16 %v326
        %v1238 = vunpack.c.h.b16 %v326
        %v1239 = vunpack.c.l.b16 %v327
        %v1240 = vunpack.c.h.b16 %v327
        %v1241 = vunpack.c.l.b16 %v328
        %v1242 = vunpack.c.l.b16 %v329
        %v1243 = vunpack.c.h.b16 %v329
        %v1244 = vunpack.c.l.b16 %v330
        %v1245 = vunpack.c.h.b16 %v330
        %v1246 = vunpack.c.l.b16 %v331
        %v1247 = vunpack.c.l.b16 %v332
        %v1248 = vunpack.c.h.b16 %v332
        %v1249 = vunpack.c.l.b16 %v333
        %v1250 = vunpack.c.h.b16 %v333
        %v1251 = vunpack.c.l.b16 %v334
        %v1252 = vunpack.c.l.b16 %v335
        %v1253 = vunpack.c.h.b16 %v335
        %v1254 = vunpack.c.l.b16 %v336
        %v1255 = vunpack.c.h.b16 %v336
        %v1256 = vunpack.c.l.b16 %v337
        %v1257 = vunpack.c.l.b16 %v338
        %v1258 = vunpack.c.h.b16 %v338
        %v1259 = vunpack.c.l.b16 %v339
        %v1260 = vunpack.c.h.b16 %v339
        %v1261 = vunpack.c.l.b16 %v340
        %v1262 = vunpack.c.l.b16 %v341
        %v1263 = vunpack.c.h.b16 %v341
        %v1264 = vunpack.c.l.b16 %v342
        %v1265 = vunpack.c.h.b16 %v342
        %v1266 = vunpack.c.l.b16 %v343
        %v1267 = vunpack.c.l.b16 %v344
        %v1268 = vunpack.c.h.b16 %v344
        %v1269 = vunpack.c.l.b16 %v345
        %v1270 = vunpack.c.h.b16 %v345
        %v1271 = vunpack.c.l.b16 %v346
        %v1272 = vunpack.c.l.b16 %v347
        %v1273 = vunpack.c.h.b16 %v347
        %v1274 = vunpack.c.l.b16 %v348
        %v1275 = vunpack.c.h.b16 %v348
        %v1276 = vunpack.c.l.b16 %v349
        %v1277 = vunpack.c.l.b16 %v350
        %v1278 = vunpack.c.h.b16 %v350
        %v1279 = vunpack.c.l.b16 %v351
        %v1280 = vunpack.c.h.b16 %v351
        %v1281 = vunpack.c.l.b16 %v352
        %v1282 = vunpack.c.l.b16 %v353
        %v1283 = vunpack.c.h.b16 %v353
        %v1284 = vunpack.c.l.b16 %v354
        %v1285 = vunpack.c.h.b16 %v354
        %v1286 = vunpack.c.l.b16 %v355
        %v1287 = vunpack.c.l.b16 %v356
        %v1288 = vunpack.c.h.b16 %v356
        %v1289 = vunpack.c.l.b16 %v357
        %v1290 = vunpack.c.h.b16 %v357
        %v1291 = vunpack.c.l.b16 %v358
        %v1292 = vunpack.c.l.b16 %v359
        %v1293 = vunpack.c.h.b16 %v359
        %v1294 = vunpack.c.l.b16 %v360
        %v1295 = vunpack.c.h.b16 %v360
        %v1296 = vunpack.c.l.b16 %v361
        %v1297 = vunpack.c.l.b16 %v362
        %v1298 = vunpack.c.h.b16 %v362
        %v1299 = vunpack.c.l.b16 %v363
        %v1300 = vunpack.c.h.b16 %v363
        %v1301 = vunpack.c.l.b16 %v364
        %v1302 = vunpack.c.l.b16 %v365
        %v1303 = vunpack.c.h.b16 %v365
        %v1304 = vunpack.c.l.b16 %v366
        %v1305 = vunpack.c.h.b16 %v366
        %v1306 = vunpack.c.l.b16 %v367
        %v1307 = vunpack.c.l.b16 %v368
        %v1308 = vunpack.c.h.b16 %v368
        %v1309 = vunpack.c.l.b16 %v369
        %v1310 = vunpack.c.h.b16 %v369
        %v1311 = vunpack.c.l.b16 %v370
        %v1312 = vunpack.c.l.b16 %v371
        %v1313 = vunpack.c.h.b16 %v371
        %v1314 = vunpack.c.l.b16 %v372
        %v1315 = vunpack.c.h.b16 %v372
        %v1316 = vunpack.c.l.b16 %v373
        %v1317 = vunpack.c.l.b16 %v374
        %v1318 = vunpack.c.h.b16 %v374
        %v1319 = vunpack.c.l.b16 %v375
        %v1320 = vunpack.c.h.b16 %v375
        %v1321 = vunpack.c.l.b16 %v376
        %v1322 = vunpack.c.l.b16 %v377
        %v1323 = vunpack.c.h.b16 %v377
        %v1324 = vunpack.c.l.b16 %v378
        %v1325 = vunpack.c.h.b16 %v378
        %v1326 = vunpack.c.l.b16 %v379
        %v1327 = vunpack.c.l.b16 %v380
        %v1328 = vunpack.c.h.b16 %v380
        %v1329 = vunpack.c.l.b16 %v381
        %v1330 = vunpack.c.h.b16 %v381
        %v1331 = vunpack.c.l.b16 %v382
        %v1332 = vunpack.c.l.b16 %v383
        %v1333 = vunpack.c.h.b16 %v383
        %v1334 = vunpack.c.l.b16 %v384
        %v1335 = vunpack.c.h.b16 %v384
        %v1336 = vunpack.c.l.b16 %v385
        %v1337 = vunpack.c.l.b16 %v386
        %v1338 = vunpack.c.h.b16 %v386
        %v1339 = vunpack.c.l.b16 %v387
        %v1340 = vunpack.c.h.b16 %v387
        %v1341 = vunpack.c.l.b16 %v388
        %v1342 = vunpack.c.l.b16 %v389
        %v1343 = vunpack.c.h.b16 %v389
        %v1344 = vunpack.c.l.b16 %v390
        %v1345 = vunpack.c.h.b16 %v390
        %v1346 = vunpack.c.l.b16 %v391
        %v1347 = vunpack.c.l.b16 %v392
        %v1348 = vunpack.c.h.b16 %v392
        %v1349 = vunpack.c.l.b16 %v393
        %v1350 = vunpack.c.h.b16 %v393
        %v1351 = vunpack.c.l.b16 %v394
        %v1352 = vunpack.c.l.b16 %v395
        %v1353 = vunpack.c.h.b16 %v395
        %v1354 = vunpack.c.l.b16 %v396
        %v1355 = vunpack.c.h.b16 %v396
        %v1356 = vunpack.c.l.b16 %v397
        %v1357 = vunpack.c.l.b16 %v398
        %v1358 = vunpack.c.h.b16 %v398
        %v1359 = vunpack.c.l.b16 %v399
        %v1360 = vunpack.c.h.b16 %v399
        %v1361 = vunpack.c.l.b16 %v400
        %v1362 = vunpack.c.l.b16 %v401
        %v1363 = vunpack.c.h.b16 %v401
        %v1364 = vunpack.c.l.b16 %v402
        %v1365 = vunpack.c.h.b16 %v402
        %v1366 = vunpack.c.l.b16 %v403
        %v1367 = vunpack.c.l.b16 %v404
        %v1368 = vunpack.c.h.b16 %v404
        %v1369 = vunpack.c.l.b16 %v405
        %v1370 = vunpack.c.h.b16 %v405
        %v1371 = vunpack.c.l.b16 %v406
        %v1372 = vunpack.c.l.b16 %v407
        %v1373 = vunpack.c.h.b16 %v407
        %v1374 = vunpack.c.l.b16 %v408
        %v1375 = vunpack.c.h.b16 %v408
        %v1376 = vunpack.c.l.b16 %v409
        %v1377 = vunpack.c.l.b16 %v410
        %v1378 = vunpack.c.h.b16 %v410
        %v1379 = vunpack.c.l.b16 %v411
        %v1380 = vunpack.c.h.b16 %v411
        %v1381 = vunpack.c.l.b16 %v412
        %v1382 = vunpack.c.l.b16 %v413
        %v1383 = vunpack.c.h.b16 %v413
        %v1384 = vunpack.c.l.b16 %v414
        %v1385 = vunpack.c.h.b16 %v414
        %v1386 = vunpack.c.l.b16 %v415
        %v1387 = vunpack.c.l.b16 %v416
        %v1388 = vunpack.c.h.b16 %v416
        %v1389 = vunpack.c.l.b16 %v417
        %v1390 = vunpack.c.h.b16 %v417
        %v1391 = vunpack.c.l.b16 %v418
        %v1392 = vunpack.c.l.b16 %v419
        %v1393 = vunpack.c.h.b16 %v419
        %v1394 = vunpack.c.l.b16 %v420
        %v1395 = vunpack.c.h.b16 %v420
        %v1396 = vunpack.c.l.b16 %v421
        %v1397 = vunpack.c.l.b16 %v422
        %v1398 = vunpack.c.h.b16 %v422
        %v1399 = vunpack.c.l.b16 %v423
        %v1400 = vunpack.c.h.b16 %v423
        %v1401 = vunpack.c.l.b16 %v424
        %v1402 = vunpack.c.l.b16 %v425
        %v1403 = vunpack.c.h.b16 %v425
        %v1404 = vunpack.c.l.b16 %v426
        %v1405 = vunpack.c.h.b16 %v426
        %v1406 = vunpack.c.l.b16 %v427
        %v1407 = vunpack.c.l.b16 %v428
        %v1408 = vunpack.c.h.b16 %v428
        %v1409 = vunpack.c.l.b16 %v429
        %v1410 = vunpack.c.h.b16 %v429
        %v1411 = vunpack.c.l.b16 %v430
        %v1412 = vunpack.c.l.b16 %v431
        %v1413 = vunpack.c.h.b16 %v431
        %v1414 = vunpack.c.l.b16 %v432
        %v1415 = vunpack.c.h.b16 %v432
        %v1416 = vunpack.c.l.b16 %v433
        %v1417 = vunpack.c.l.b16 %v434
        %v1418 = vunpack.c.h.b16 %v434
        %v1419 = vunpack.c.l.b16 %v435
        %v1420 = vunpack.c.h.b16 %v435
        %v1421 = vunpack.c.l.b16 %v436
        %v1422 = vunpack.c.l.b16 %v437
        %v1423 = vunpack.c.h.b16 %v437
        %v1424 = vunpack.c.l.b16 %v438
        %v1425 = vunpack.c.h.b16 %v438
        %v1426 = vunpack.c.l.b16 %v439
        %v1427 = vunpack.c.l.b16 %v440
        %v1428 = vunpack.c.h.b16 %v440
        %v1429 = vunpack.c.l.b16 %v441
        %v1430 = vunpack.c.h.b16 %v441
        %v1431 = vunpack.c.l.b16 %v442
        %v1432 = vunpack.c.l.b16 %v443
        %v1433 = vunpack.c.h.b16 %v443
        %v1434 = vunpack.c.l.b16 %v444
        %v1435 = vunpack.c.h.b16 %v444
        %v1436 = vunpack.c.l.b16 %v445
        %v1437 = vunpack.c.l.b16 %v446
        %v1438 = vunpack.c.h.b16 %v446
        %v1439 = vunpack.c.l.b16 %v447
        %v1440 = vunpack.c.h.b16 %v447
        %v1441 = vunpack.c.l.b16 %v448
        %v1442 = vunpack.c.l.b16 %v449
        %v1443 = vunpack.c.h.b16 %v449
        %v1444 = vunpack.c.l.b16 %v450
        %v1445 = vunpack.c.h.b16 %v450
        %v1446 = vunpack.c.l.b16 %v451
        %v1447 = vunpack.c.l.b16 %v452
        %v1448 = vunpack.c.h.b16 %v452
        %v1449 = vunpack.c.l.b16 %v453
        %v1450 = vunpack.c.h.b16 %v453
        %v1451 = vunpack.c.l.b16 %v454
        %v1452 = vunpack.c.l.b16 %v455
        %v1453 = vunpack.c.h.b16 %v455
        %v1454 = vunpack.c.l.b16 %v456
        %v1455 = vunpack.c.h.b16 %v456
        %v1456 = vunpack.c.l.b16 %v457
        %v1457 = vunpack.c.l.b16 %v458
        %v1458 = vunpack.c.h.b16 %v458
        %v1459 = vunpack.c.l.b16 %v459
        %v1460 = vunpack.c.h.b16 %v459
        %v1461 = vunpack.c.l.b16 %v460
        %v1462 = vunpack.c.l.b16 %v461
        %v1463 = vunpack.c.h.b16 %v461
        %v1464 = vunpack.c.l.b16 %v462
        %v1465 = vunpack.c.h.b16 %v462
        %v1466 = vunpack.c.l.b16 %v463
        %v1467 = vunpack.c.l.b16 %v464
        %v1468 = vunpack.c.h.b16 %v464
        %v1469 = vunpack.c.l.b16 %v465
        %v1470 = vunpack.c.h.b16 %v465
        %v1471 = vunpack.c.l.b16 %v466
        %v1472 = vunpack.c.l.b16 %v467
        %v1473 = vunpack.c.h.b16 %v467
        %v1474 = vunpack.c.l.b16 %v468
        %v1475 = vunpack.c.h.b16 %v468
        %v1476 = vunpack.c.l.b16 %v469
        %v1477 = vunpack.c.l.b16 %v470
        %v1478 = vunpack.c.h.b16 %v470
        %v1479 = vunpack.c.l.b16 %v471
        %v1480 = vunpack.c.h.b16 %v471
        %v1481 = vunpack.c.l.b16 %v472
        %v1482 = vunpack.c.l.b16 %v473
        %v1483 = vunpack.c.h.b16 %v473
        %v1484 = vunpack.c.l.b16 %v474
        %v1485 = vunpack.c.h.b16 %v474
        %v1486 = vunpack.c.l.b16 %v475
        %v1487 = vunpack.c.l.b16 %v476
        %v1488 = vunpack.c.h.b16 %v476
        %v1489 = vunpack.c.l.b16 %v477
        %v1490 = vunpack.c.h.b16 %v477
        %v1491 = vunpack.c.l.b16 %v478
        %v1492 = vunpack.c.l.b16 %v479
        %v1493 = vunpack.c.h.b16 %v479
        %v1494 = vunpack.c.l.b16 %v480
        %v1495 = vunpack.c.h.b16 %v480
        %v1496 = vunpack.c.l.b16 %v481
        %v1497 = vunpack.c.l.b16 %v482
        %v1498 = vunpack.c.h.b16 %v482
        %v1499 = vunpack.c.l.b16 %v483
        %v1500 = vunpack.c.h.b16 %v483
        %v1501 = vunpack.c.l.b16 %v484
        %v1502 = vunpack.c.l.b16 %v485
        %v1503 = vunpack.c.h.b16 %v485
        %v1504 = vunpack.c.l.b16 %v486
        %v1505 = vunpack.c.h.b16 %v486
        %v1506 = vunpack.c.l.b16 %v487
        %v1507 = vunpack.c.l.b16 %v488
        %v1508 = vunpack.c.h.b16 %v488
        %v1509 = vunpack.c.l.b16 %v489
        %v1510 = vunpack.c.h.b16 %v489
        %v1511 = vunpack.c.l.b16 %v490
        %v1512 = vunpack.c.l.b16 %v491
        %v1513 = vunpack.c.h.b16 %v491
        %v1514 = vunpack.c.l.b16 %v492
        %v1515 = vunpack.c.h.b16 %v492
        %v1516 = vunpack.c.l.b16 %v493
        %v1517 = vunpack.c.l.b16 %v494
        %v1518 = vunpack.c.h.b16 %v494
        %v1519 = vunpack.c.l.b16 %v495
        %v1520 = vunpack.c.h.b16 %v495
        %v1521 = vunpack.c.l.b16 %v496
        %v1522 = vunpack.c.l.b16 %v497
        %v1523 = vunpack.c.h.b16 %v497
        %v1524 = vunpack.c.l.b16 %v498
        %v1525 = vunpack.c.h.b16 %v498
        %v1526 = vunpack.c.l.b16 %v499
        %v1527 = vunpack.c.l.b16 %v500
        %v1528 = vunpack.c.h.b16 %v500
        %v1529 = vunpack.c.l.b16 %v501
        %v1530 = vunpack.c.h.b16 %v501
        %v1531 = vunpack.c.l.b16 %v502
        %v1532 = vunpack.c.l.b16 %v503
        %v1533 = vunpack.c.h.b16 %v503
        %v1534 = vunpack.c.l.b16 %v504
        %v1535 = vunpack.c.h.b16 %v504
        %v1536 = vunpack.c.l.b16 %v505
        %v1537 = vunpack.c.l.b16 %v506
        %v1538 = vunpack.c.h.b16 %v506
        %v1539 = vunpack.c.l.b16 %v507
        %v1540 = vunpack.c.h.b16 %v507
        %v1541 = vunpack.c.l.b16 %v508
        %v1542 = vunpack.c.l.b16 %v509
        %v1543 = vunpack.c.h.b16 %v509
        %v1544 = vunpack.c.l.b16 %v510
        %v1545 = vunpack.c.h.b16 %v510
        %v1546 = vunpack.c.l.b16 %v511
        %v1547 = vunpack.c.l.b16 %v512
        %v1548 = vunpack.c.h.b16 %v512
        %v1549 = vunpack.c.l.b16 %v513
        %v1550 = vunpack.c.h.b16 %v513
        %v1551 = vunpack.c.l.b16 %v514
        %v1552 = vunpack.c.l.b16 %v515
        %v1553 = vunpack.c.h.b16 %v515
        %v1554 = vunpack.c.l.b16 %v516
        %v1555 = vunpack.c.h.b16 %v516
        %v1556 = vunpack.c.l.b16 %v517
        %v1557 = vunpack.c.l.b16 %v518
        %v1558 = vunpack.c.h.b16 %v518
        %v1559 = vunpack.c.l.b16 %v519
        %v1560 = vunpack.c.h.b16 %v519
        %v1561 = vunpack.c.l.b16 %v520
        %v1562 = vunpack.c.l.b16 %v521
        %v1563 = vunpack.c.h.b16 %v521
        %v1564 = vunpack.c.l.b16 %v522
        %v1565 = vunpack.c.h.b16 %v522
        %v1566 = vunpack.c.l.b16 %v523
        %v1567 = vunpack.c.l.b16 %v524
        %v1568 = vunpack.c.h.b16 %v524
        %v1569 = vunpack.c.l.b16 %v525
        %v1570 = vunpack.c.h.b16 %v525
        %v1571 = vunpack.c.l.b16 %v526
        %v1572 = vunpack.c.l.b16 %v527
        %v1573 = vunpack.c.h.b16 %v527
        %v1574 = vunpack.c.l.b16 %v528
        %v1575 = vunpack.c.h.b16 %v528
        %v1576 = vunpack.c.l.b16 %v529
        %v1577 = vunpack.c.l.b16 %v530
        %v1578 = vunpack.c.h.b16 %v530
        %v1579 = vunpack.c.l.b16 %v531
        %v1580 = vunpack.c.h.b16 %v531
        %v1581 = vunpack.c.l.b16 %v532
        %v1582 = vunpack.c.l.b16 %v533
        %v1583 = vunpack.c.h.b16 %v533
        %v1584 = vunpack.c.l.b16 %v534
        %v1585 = vunpack.c.h.b16 %v534
        %v1586 = vunpack.c.l.b16 %v535
        %v1587 = vunpack.c.l.b16 %v536
        %v1588 = vunpack.c.h.b16 %v536
        %v1589 = vunpack.c.l.b16 %v537
        %v1590 = vunpack.c.h.b16 %v537
        %v1591 = vunpack.c.l.b16 %v538
        %v1592 = vunpack.c.l.b16 %v539
        %v1593 = vunpack.c.h.b16 %v539
        %v1594 = vunpack.c.l.b16 %v540
        %v1595 = vunpack.c.h.b16 %v540
        %v1596 = vunpack.c.l.b16 %v541
        %v1597 = vunpack.c.l.b16 %v542
        %v1598 = vunpack.c.h.b16 %v542
        %v1599 = vunpack.c.l.b16 %v543
        %v1600 = vunpack.c.h.b16 %v543
        %v1601 = vunpack.c.l.b16 %v544
        %v1602 = vunpack.c.l.b16 %v545
        %v1603 = vunpack.c.h.b16 %v545
        %v1604 = vunpack.c.l.b16 %v546
        %v1605 = vunpack.c.h.b16 %v546
        %v1606 = vunpack.c.l.b16 %v547
        %v1607 = vunpack.c.l.b16 %v548
        %v1608 = vunpack.c.h.b16 %v548
        %v1609 = vunpack.c.l.b16 %v549
        %v1610 = vunpack.c.h.b16 %v549
        %v1611 = vunpack.c.l.b16 %v550
        %v1612 = vunpack.c.l.b16 %v551
        %v1613 = vunpack.c.h.b16 %v551
        %v1614 = vunpack.c.l.b16 %v552
        %v1615 = vunpack.c.h.b16 %v552
        %v1616 = vunpack.c.l.b16 %v553
        %v1617 = vunpack.c.l.b16 %v554
        %v1618 = vunpack.c.h.b16 %v554
        %v1619 = vunpack.c.l.b16 %v555
        %v1620 = vunpack.c.h.b16 %v555
        %v1621 = vunpack.c.l.b16 %v556
        %v1622 = vunpack.c.l.b16 %v557
        %v1623 = vunpack.c.h.b16 %v557
        %v1624 = vunpack.c.l.b16 %v558
        %v1625 = vunpack.c.h.b16 %v558
        %v1626 = vunpack.c.l.b16 %v559
        %v1627 = vunpack.c.l.b16 %v560
        %v1628 = vunpack.c.h.b16 %v560
        %v1629 = vunpack.c.l.b16 %v561
        %v1630 = vunpack.c.h.b16 %v561
        %v1631 = vunpack.c.l.b16 %v562
        %v1632 = vunpack.c.l.b16 %v563
        %v1633 = vunpack.c.h.b16 %v563
        %v1634 = vunpack.c.l.b16 %v564
        %v1635 = vunpack.c.h.b16 %v564
        %v1636 = vunpack.c.l.b16 %v565
        %v1637 = vunpack.c.l.b16 %v566
        %v1638 = vunpack.c.h.b16 %v566
        %v1639 = vunpack.c.l.b16 %v567
        %v1640 = vunpack.c.h.b16 %v567
        %v1641 = vunpack.c.l.b16 %v568
        %v1642 = vunpack.c.l.b16 %v569
        %v1643 = vunpack.c.h.b16 %v569
        %v1644 = vunpack.c.l.b16 %v570
        %v1645 = vunpack.c.h.b16 %v570
        %v1646 = vunpack.c.l.b16 %v571
        %v1647 = vunpack.c.l.b16 %v572
        %v1648 = vunpack.c.h.b16 %v572
        %v1649 = vunpack.c.l.b16 %v573
        %v1650 = vunpack.c.h.b16 %v573
        %v1651 = vunpack.c.l.b16 %v574
        %v1652 = vunpack.c.l.b16 %v575
        %v1653 = vunpack.c.h.b16 %v575
        %v1654 = vunpack.c.l.b16 %v576
        %v1655 = vunpack.c.h.b16 %v576
        %v1656 = vunpack.c.l.b16 %v577
        %v1657 = vunpack.c.l.b16 %v578
        %v1658 = vunpack.c.h.b16 %v578
        %v1659 = vunpack.c.l.b16 %v579
        %v1660 = vunpack.c.h.b16 %v579
        %v1661 = vunpack.c.l.b16 %v580
        %v1662 = vunpack.c.l.b16 %v581
        %v1663 = vunpack.c.h.b16 %v581
        %v1664 = vunpack.c.l.b16 %v582
        %v1665 = vunpack.c.h.b16 %v582
        %v1666 = vunpack.c.l.b16 %v583
        %v1667 = vunpack.c.l.b16 %v584
        %v1668 = vunpack.c.h.b16 %v584
        %v1669 = vunpack.c.l.b16 %v585
        %v1670 = vunpack.c.h.b16 %v585
        %v1671 = vunpack.c.l.b16 %v586
        %v1672 = vunpack.c.l.b16 %v587
        %v1673 = vunpack.c.h.b16 %v587
        %v1674 = vunpack.c.l.b16 %v588
        %v1675 = vunpack.c.h.b16 %v588
        %v1676 = vunpack.c.l.b16 %v589
        %v1677 = vunpack.c.l.b16 %v590
        %v1678 = vunpack.c.h.b16 %v590
        %v1679 = vunpack.c.l.b16 %v591
        %v1680 = vunpack.c.h.b16 %v591
        %v1681 = vunpack.c.l.b16 %v592
        %v1682 = vunpack.c.l.b16 %v593
        %v1683 = vunpack.c.h.b16 %v593
        %v1684 = vunpack.c.l.b16 %v594
        %v1685 = vunpack.c.h.b16 %v594
        %v1686 = vunpack.c.l.b16 %v595
        %v1687 = vunpack.c.l.b16 %v596
        %v1688 = vunpack.c.h.b16 %v596
        %v1689 = vunpack.c.l.b16 %v597
        %v1690 = vunpack.c.h.b16 %v597
        %v1691 = vunpack.c.l.b16 %v598
        %v1692 = vunpack.c.l.b16 %v599
        %v1693 = vunpack.c.h.b16 %v599
        %v1694 = vunpack.c.l.b16 %v600
        %v1695 = vunpack.c.h.b16 %v600
        %v1696 = vunpack.c.l.b16 %v601
        %v1697 = vunpack.c.l.b16 %v602
        %v1698 = vunpack.c.h.b16 %v602
        %v1699 = vunpack.c.l.b16 %v603
        %v1700 = vunpack.c.h.b16 %v603
        %v1701 = vunpack.c.l.b16 %v604
        %v1702 = vunpack.c.l.b16 %v605
        %v1703 = vunpack.c.h.b16 %v605
        %v1704 = vunpack.c.l.b16 %v606
        %v1705 = vunpack.c.h.b16 %v606
        %v1706 = vunpack.c.l.b16 %v607
        %v1707 = vunpack.c.l.b16 %v608
        %v1708 = vunpack.c.h.b16 %v608
        %v1709 = vunpack.c.l.b16 %v609
        %v1710 = vunpack.c.h.b16 %v609
        %v1711 = vunpack.c.l.b16 %v610
        %v1712 = vunpack.c.l.b16 %v611
        %v1713 = vunpack.c.h.b16 %v611
        %v1714 = vunpack.c.l.b16 %v612
        %v1715 = vunpack.c.h.b16 %v612
        %v1716 = vunpack.c.l.b16 %v613
        %v1717 = vunpack.c.l.b16 %v614
        %v1718 = vunpack.c.h.b16 %v614
        %v1719 = vunpack.c.l.b16 %v615
        %v1720 = vunpack.c.h.b16 %v615
        %v1721 = vunpack.c.l.b16 %v616
        %v1722 = vunpack.c.l.b16 %v617
        %v1723 = vunpack.c.h.b16 %v617
        %v1724 = vunpack.c.l.b16 %v618
        %v1725 = vunpack.c.h.b16 %v618
        %v1726 = vunpack.c.l.b16 %v619
        %v1727 = vunpack.c.l.b16 %v620
        %v1728 = vunpack.c.h.b16 %v620
        %v1729 = vunpack.c.l.b16 %v621
        %v1730 = vunpack.c.h.b16 %v621
        %v1731 = vunpack.c.l.b16 %v622
        %v1732 = vunpack.c.l.b16 %v623
        %v1733 = vunpack.c.h.b16 %v623
        %v1734 = vunpack.c.l.b16 %v624
        %v1735 = vunpack.c.h.b16 %v624
        %v1736 = vunpack.c.l.b16 %v625
        %v1737 = vunpack.c.l.b16 %v626
        %v1738 = vunpack.c.h.b16 %v626
        %v1739 = vunpack.c.l.b16 %v627
        %v1740 = vunpack.c.h.b16 %v627
        %v1741 = vunpack.c.l.b16 %v628
        %v1742 = vunpack.c.l.b16 %v629
        %v1743 = vunpack.c.h.b16 %v629
        %v1744 = vunpack.c.l.b16 %v630
        %v1745 = vunpack.c.h.b16 %v630
        %v1746 = vunpack.c.l.b16 %v631
        %v1747 = vunpack.c.l.b16 %v632
        %v1748 = vunpack.c.h.b16 %v632
        %v1749 = vunpack.c.l.b16 %v633
        %v1750 = vunpack.c.h.b16 %v633
        %v1751 = vunpack.c.l.b16 %v634
        %v1752 = vunpack.c.l.b16 %v635
        %v1753 = vunpack.c.h.b16 %v635
        %v1754 = vunpack.c.l.b16 %v636
        %v1755 = vunpack.c.h.b16 %v636
        %v1756 = vunpack.c.l.b16 %v637
        %v1757 = vunpack.c.l.b16 %v638
        %v1758 = vunpack.c.h.b16 %v638
        %v1759 = vunpack.c.l.b16 %v639
        %v1760 = vunpack.c.h.b16 %v639
        %v1761 = vunpack.c.l.b16 %v640
        %v1762 = vunpack.c.l.b16 %v641
        %v1763 = vunpack.c.h.b16 %v641
        %v1764 = vunpack.c.l.b16 %v642
        %v1765 = vunpack.c.h.b16 %v642
        %v1766 = vunpack.c.l.b16 %v643
        %v1767 = vunpack.c.l.b16 %v644
        %v1768 = vunpack.c.h.b16 %v644
        %v1769 = vunpack.c.l.b16 %v645
        %v1770 = vunpack.c.h.b16 %v645
        %v1771 = vunpack.c.l.b16 %v646
        %v1772 = vunpack.c.l.b16 %v647
        %v1773 = vunpack.c.h.b16 %v647
        %v1774 = vunpack.c.l.b16 %v648
        %v1775 = vunpack.c.h.b16 %v648
        %v1776 = vunpack.c.l.b16 %v649
        %v1777 = vunpack.c.l.b16 %v650
        %v1778 = vunpack.c.h.b16 %v650
        %v1779 = vunpack.c.l.b16 %v651
        %v1780 = vunpack.c.h.b16 %v651
        %v1781 = vunpack.c.l.b16 %v652
        %v1782 = vunpack.c.l.b16 %v653
        %v1783 = vunpack.c.h.b16 %v653
        %v1784 = vunpack.c.l.b16 %v654
        %v1785 = vunpack.c.h.b16 %v654
        %v1786 = vunpack.c.l.b16 %v655
        %v1787 = vunpack.c.l.b16 %v656
        %v1788 = vunpack.c.h.b16 %v656
        %v1789 = vunpack.c.l.b16 %v657
        %v1790 = vunpack.c.h.b16 %v657
        %v1791 = vunpack.c.l.b16 %v658
        %v1792 = vunpack.c.l.b16 %v659
        %v1793 = vunpack.c.h.b16 %v659
        %v1794 = vunpack.c.l.b16 %v660
        %v1795 = vunpack.c.h.b16 %v660
        %v1796 = vunpack.c.l.b16 %v661
        %v1797 = vunpack.c.l.b16 %v662
        %v1798 = vunpack.c.h.b16 %v662
        %v1799 = vunpack.c.l.b16 %v663
        %v1800 = vunpack.c.h.b16 %v663
        %v1801 = vunpack.c.l.b16 %v664
        %v1802 = vunpack.c.l.b16 %v665
        %v1803 = vunpack.c.h.b16 %v665
        %v1804 = vunpack.c.l.b16 %v666
        %v1805 = vunpack.c.h.b16 %v666
        %v1806 = vunpack.c.l.b16 %v667
        %v1807 = vunpack.c.l.b16 %v668
        %v1808 = vunpack.c.h.b16 %v668
        %v1809 = vunpack.c.l.b16 %v669
        %v1810 = vunpack.c.h.b16 %v669
        %v1811 = vunpack.c.l.b16 %v670
        %v1812 = vunpack.c.l.b16 %v671
        %v1813 = vunpack.c.h.b16 %v671
        %v1814 = vunpack.c.l.b16 %v672
        %v1815 = vunpack.c.h.b16 %v672
        %v1816 = vunpack.c.l.b16 %v673
        %v1817 = vunpack.c.l.b16 %v674
        %v1818 = vunpack.c.h.b16 %v674
        %v1819 = vunpack.c.l.b16 %v675
        %v1820 = vunpack.c.h.b16 %v675
        %v1821 = vunpack.c.l.b16 %v676
        %v1822 = vunpack.c.l.b16 %v677
        %v1823 = vunpack.c.h.b16 %v677
        %v1824 = vunpack.c.l.b16 %v678
        %v1825 = vunpack.c.h.b16 %v678
        %v1826 = vunpack.c.l.b16 %v679
        %v1827 = vunpack.c.l.b16 %v680
        %v1828 = vunpack.c.h.b16 %v680
        %v1829 = vunpack.c.l.b16 %v681
        %v1830 = vunpack.c.h.b16 %v681
        %v1831 = vunpack.c.l.b16 %v682
        %v1832 = vunpack.c.l.b16 %v683
        %v1833 = vunpack.c.h.b16 %v683
        %v1834 = vunpack.c.l.b16 %v684
        %v1835 = vunpack.c.h.b16 %v684
        %v1836 = vunpack.c.l.b16 %v685
        %v1837 = vunpack.c.l.b16 %v686
        %v1838 = vunpack.c.h.b16 %v686
        %v1839 = vunpack.c.l.b16 %v687
        %v1840 = vunpack.c.h.b16 %v687
        %v1841 = vunpack.c.l.b16 %v688
        %v1842 = vunpack.c.l.b16 %v689
        %v1843 = vunpack.c.h.b16 %v689
        %v1844 = vunpack.c.l.b16 %v690
        %v1845 = vunpack.c.h.b16 %v690
        %v1846 = vunpack.c.l.b16 %v691
        %v1847 = vunpack.c.l.b16 %v692
        %v1848 = vunpack.c.h.b16 %v692
        %v1849 = vunpack.c.l.b16 %v693
        %v1850 = vunpack.c.h.b16 %v693
        %v1851 = vunpack.c.l.b16 %v694
        %v1852 = vunpack.c.l.b16 %v695
        %v1853 = vunpack.c.h.b16 %v695
        %v1854 = vunpack.c.l.b16 %v696
        %v1855 = vunpack.c.h.b16 %v696
        %v1856 = vunpack.c.l.b16 %v697
        %v1857 = vunpack.c.l.b16 %v698
        %v1858 = vunpack.c.h.b16 %v698
        %v1859 = vunpack.c.l.b16 %v699
        %v1860 = vunpack.c.h.b16 %v699
        %v1861 = vunpack.c.l.b16 %v700
        %v1862 = vunpack.c.l.b16 %v701
        %v1863 = vunpack.c.h.b16 %v701
        %v1864 = vunpack.c.l.b16 %v702
        %v1865 = vunpack.c.h.b16 %v702
        %v1866 = vunpack.c.l.b16 %v703
        %v1867 = vunpack.c.l.b16 %v704
        %v1868 = vunpack.c.h.b16 %v704
        %v1869 = vunpack.c.l.b16 %v705
        %v1870 = vunpack.c.h.b16 %v705
        %v1871 = vunpack.c.l.b16 %v706
        %v1872 = vunpack.c.l.b16 %v707
        %v1873 = vunpack.c.h.b16 %v707
        %v1874 = vunpack.c.l.b16 %v708
        %v1875 = vunpack.c.h.b16 %v708
        %v1876 = vunpack.c.l.b16 %v709
        %v1877 = vunpack.c.l.b16 %v710
        %v1878 = vunpack.c.h.b16 %v710
        %v1879 = vunpack.c.l.b16 %v711
        %v1880 = vunpack.c.h.b16 %v711
        %v1881 = vunpack.c.l.b16 %v712
        %v1882 = vunpack.c.l.b16 %v713
        %v1883 = vunpack.c.h.b16 %v713
        %v1884 = vunpack.c.l.b16 %v714
        %v1885 = vunpack.c.h.b16 %v714
        %v1886 = vunpack.c.l.b16 %v715
        %v1887 = vunpack.c.l.b16 %v716
        %v1888 = vunpack.c.h.b16 %v716
        %v1889 = vunpack.c.l.b16 %v717
        %v1890 = vunpack.c.h.b16 %v717
        %v1891 = vunpack.c.l.b16 %v718
        %v1892 = vunpack.c.l.b16 %v719
        %v1893 = vunpack.c.h.b16 %v719
        %v1894 = vunpack.c.l.b16 %v720
        %v1895 = vunpack.c.h.b16 %v720
        %v1896 = vunpack.c.l.b16 %v721
        %v1897 = vunpack.c.l.b16 %v722
        %v1898 = vunpack.c.h.b16 %v722
        %v1899 = vunpack.c.l.b16 %v723
        %v1900 = vunpack.c.h.b16 %v723
        %v1901 = vunpack.c.l.b16 %v724
        %v1902 = vunpack.c.l.b16 %v725
        %v1903 = vunpack.c.h.b16 %v725
        %v1904 = vunpack.c.l.b16 %v726
        %v1905 = vunpack.c.h.b16 %v726
        %v1906 = vunpack.c.l.b16 %v727
        %v1907 = vpack.c.b16 %v1192, %v1187
        %v1908 = vpack.c.b16 %v1193, %v1188
        %v1909 = vpack.c.b16 %v1194, %v1189
        %v1910 = vpack.c.b16 %v1195, %v1190
        %v1911 = vpack.c.b16 %v1196, %v1191
        %v1912 = vpack.c.b16 %v1202, %v1197
        %v1913 = vpack.c.b16 %v1203, %v1198
        %v1914 = vpack.c.b16 %v1204, %v1199
        %v1915 = vpack.c.b16 %v1205, %v1200
        %v1916 = vpack.c.b16 %v1206, %v1201
        %v1917 = vpack.c.b16 %v1212, %v1207
        %v1918 = vpack.c.b16 %v1213, %v1208
        %v1919 = vpack.c.b16 %v1214, %v1209
        %v1920 = vpack.c.b16 %v1215, %v1210
        %v1921 = vpack.c.b16 %v1216, %v1211
        %v1922 = vpack.c.b16 %v1222, %v1217
        %v1923 = vpack.c.b16 %v1223, %v1218
        %v1924 = vpack.c.b16 %v1224, %v1219
        %v1925 = vpack.c.b16 %v1225, %v1220
        %v1926 = vpack.c.b16 %v1226, %v1221
        %v1927 = vpack.c.b16 %v1232, %v1227
        %v1928 = vpack.c.b16 %v1233, %v1228
        %v1929 = vpack.c.b16 %v1234, %v1229
        %v1930 = vpack.c.b16 %v1235, %v1230
        %v1931 = vpack.c.b16 %v1236, %v1231
        %v1932 = vpack.c.b16 %v1242, %v1237
        %v1933 = vpack.c.b16 %v1243, %v1238
        %v1934 = vpack.c.b16 %v1244, %v1239
        %v1935 = vpack.c.b16 %v1245, %v1240
        %v1936 = vpack.c.b16 %v1246, %v1241
        %v1937 = vpack.c.b16 %v1252, %v1247
        %v1938 = vpack.c.b16 %v1253, %v1248
        %v1939 = vpack.c.b16 %v1254, %v1249
        %v1940 = vpack.c.b16 %v1255, %v1250
        %v1941 = vpack.c.b16 %v1256, %v1251
        %v1942 = vpack.c.b16 %v1262, %v1257
        %v1943 = vpack.c.b16 %v1263, %v1258
        %v1944 = vpack.c.b16 %v1264, %v1259
        %v1945 = vpack.c.b16 %v1265, %v1260
        %v1946 = vpack.c.b16 %v1266, %v1261
        %v1947 = vpack.c.b16 %v1272, %v1267
        %v1948 = vpack.c.b16 %v1273, %v1268
        %v1949 = vpack.c.b16 %v1274, %v1269
        %v1950 = vpack.c.b16 %v1275, %v1270
        %v1951 = vpack.c.b16 %v1276, %v1271
        %v1952 = vpack.c.b16 %v1282, %v1277
        %v1953 = vpack.c.b16 %v1283, %v1278
        %v1954 = vpack.c.b16 %v1284, %v1279
        %v1955 = vpack.c.b16 %v1285, %v1280
        %v1956 = vpack.c.b16 %v1286, %v1281
        %v1957 = vpack.c.b16 %v1292, %v1287
        %v1958 = vpack.c.b16 %v1293, %v1288
        %v1959 = vpack.c.b16 %v1294, %v1289
        %v1960 = vpack.c.b16 %v1295, %v1290
        %v1961 = vpack.c.b16 %v1296, %v1291
        %v1962 = vpack.c.b16 %v1302, %v1297
        %v1963 = vpack.c.b16 %v1303, %v1298
        %v1964 = vpack.c.b16 %v1304, %v1299
        %v1965 = vpack.c.b16 %v1305, %v1300
        %v1966 = vpack.c.b16 %v1306, %v1301
        %v1967 = vpack.c.b16 %v1312, %v1307
        %v1968 = vpack.c.b16 %v1313, %v1308
        %v1969 = vpack.c.b16 %v1314, %v1309
        %v1970 = vpack.c.b16 %v1315, %v1310
        %v1971 = vpack.c.b16 %v1316, %v1311
        %v1972 = vpack.c.b16 %v1322, %v1317
        %v1973 = vpack.c.b16 %v1323, %v1318
        %v1974 = vpack.c.b16 %v1324, %v1319
        %v1975 = vpack.c.b16 %v1325, %v1320
        %v1976 = vpack.c.b16 %v1326, %v1321
        %v1977 = vpack.c.b16 %v1332, %v1327
        %v1978 = vpack.c.b16 %v1333, %v1328
        %v1979 = vpack.c.b16 %v1334, %v1329
        %v1980 = vpack.c.b16 %v1335, %v1330
        %v1981 = vpack.c.b16 %v1336, %v1331
        %v1982 = vpack.c.b16 %v1342, %v1337
        %v1983 = vpack.c.b16 %v1343, %v1338
        %v1984 = vpack.c.b16 %v1344, %v1339
        %v1985 = vpack.c.b16 %v1345, %v1340
        %v1986 = vpack.c.b16 %v1346, %v1341
        %v1987 = vpack.c.b16 %v1352, %v1347
        %v1988 = vpack.c.b16 %v1353, %v1348
        %v1989 = vpack.c.b16 %v1354, %v1349
        %v1990 = vpack.c.b16 %v1355, %v1350
        %v1991 = vpack.c.b16 %v1356, %v1351
        %v1992 = vpack.c.b16 %v1362, %v1357
        %v1993 = vpack.c.b16 %v1363, %v1358
        %v1994 = vpack.c.b16 %v1364, %v1359
        %v1995 = vpack.c.b16 %v1365, %v1360
        %v1996 = vpack.c.b16 %v1366, %v1361
        %v1997 = vpack.c.b16 %v1372, %v1367
        %v1998 = vpack.c.b16 %v1373, %v1368
        %v1999 = vpack.c.b16 %v1374, %v1369
        %v2000 = vpack.c.b16 %v1375, %v1370
        %v2001 = vpack.c.b16 %v1376, %v1371
        %v2002 = vpack.c.b16 %v1382, %v1377
        %v2003 = vpack.c.b16 %v1383, %v1378
        %v2004 = vpack.c.b16 %v1384, %v1379
        %v2005 = vpack.c.b16 %v1385, %v1380
        %v2006 = vpack.c.b16 %v1386, %v1381
        %v2007 = vpack.c.b16 %v1392, %v1387
        %v2008 = vpack.c.b16 %v1393, %v1388
        %v2009 = vpack.c.b16 %v1394, %v1389
        %v2010 = vpack.c.b16 %v1395, %v1390
        %v2011 = vpack.c.b16 %v1396, %v1391
        %v2012 = vpack.c.b16 %v1402, %v1397
        %v2013 = vpack.c.b16 %v1403, %v1398
        %v2014 = vpack.c.b16 %v1404, %v1399
        %v2015 = vpack.c.b16 %v1405, %v1400
        %v2016 = vpack.c.b16 %v1406, %v1401
        %v2017 = vpack.c.b16 %v1412, %v1407
        %v2018 = vpack.c.b16 %v1413, %v1408
        %v2019 = vpack.c.b16 %v1414, %v1409
        %v2020 = vpack.c.b16 %v1415, %v1410
        %v2021 = vpack.c.b16 %v1416, %v1411
        %v2022 = vpack.c.b16 %v1422, %v1417
        %v2023 = vpack.c.b16 %v1423, %v1418
        %v2024 = vpack.c.b16 %v1424, %v1419
        %v2025 = vpack.c.b16 %v1425, %v1420
        %v2026 = vpack.c.b16 %v1426, %v1421
        %v2027 = vpack.c.b16 %v1432, %v1427
        %v2028 = vpack.c.b16 %v1433, %v1428
        %v2029 = vpack.c.b16 %v1434, %v1429
        %v2030 = vpack.c.b16 %v1435, %v1430
        %v2031 = vpack.c.b16 %v1436, %v1431
        %v2032 = vpack.c.b16 %v1442, %v1437
        %v2033 = vpack.c.b16 %v1443, %v1438
        %v2034 = vpack.c.b16 %v1444, %v1439
        %v2035 = vpack.c.b16 %v1445, %v1440
        %v2036 = vpack.c.b16 %v1446, %v1441
        %v2037 = vpack.c.b16 %v1452, %v1447
        %v2038 = vpack.c.b16 %v1453, %v1448
        %v2039 = vpack.c.b16 %v1454, %v1449
        %v2040 = vpack.c.b16 %v1455, %v1450
        %v2041 = vpack.c.b16 %v1456, %v1451
        %v2042 = vpack.c.b16 %v1462, %v1457
        %v2043 = vpack.c.b16 %v1463, %v1458
        %v2044 = vpack.c.b16 %v1464, %v1459
        %v2045 = vpack.c.b16 %v1465, %v1460
        %v2046 = vpack.c.b16 %v1466, %v1461
        %v2047 = vpack.c.b16 %v1472, %v1467
        %v2048 = vpack.c.b16 %v1473, %v1468
        %v2049 = vpack.c.b16 %v1474, %v1469
        %v2050 = vpack.c.b16 %v1475, %v1470
        %v2051 = vpack.c.b16 %v1476, %v1471
        %v2052 = vpack.c.b16 %v1482, %v1477
        %v2053 = vpack.c.b16 %v1483, %v1478
        %v2054 = vpack.c.b16 %v1484, %v1479
        %v2055 = vpack.c.b16 %v1485, %v1480
        %v2056 = vpack.c.b16 %v1486, %v1481
        %v2057 = vpack.c.b16 %v1492, %v1487
        %v2058 = vpack.c.b16 %v1493, %v1488
        %v2059 = vpack.c.b16 %v1494, %v1489
        %v2060 = vpack.c.b16 %v1495, %v1490
        %v2061 = vpack.c.b16 %v1496, %v1491
        %v2062 = vpack.c.b16 %v1502, %v1497
        %v2063 = vpack.c.b16 %v1503, %v1498
        %v2064 = vpack.c.b16 %v1504, %v1499
        %v2065 = vpack.c.b16 %v1505, %v1500
        %v2066 = vpack.c.b16 %v1506, %v1501
        %v2067 = vpack.c.b16 %v1512, %v1507
        %v2068 = vpack.c.b16 %v1513, %v1508
        %v2069 = vpack.c.b16 %v1514, %v1509
        %v2070 = vpack.c.b16 %v1515, %v1510
        %v2071 = vpack.c.b16 %v1516, %v1511
        %v2072 = vpack.c.b16 %v1522, %v1517
        %v2073 = vpack.c.b16 %v1523, %v1518
        %v2074 = vpack.c.b16 %v1524, %v1519
        %v2075 = vpack.c.b16 %v1525, %v1520
        %v2076 = vpack.c.b16 %v1526, %v1521
        %v2077 = vpack.c.b16 %v1532, %v1527
        %v2078 = vpack.c.b16 %v1533, %v1528
        %v2079 = vpack.c.b16 %v1534, %v1529
        %v2080 = vpack.c.b16 %v1535, %v1530
        %v2081 = vpack.c.b16 %v1536, %v1531
        %v2082 = vpack.c.b16 %v1542, %v1537
        %v2083 = vpack.c.b16 %v1543, %v1538
        %v2084 = vpack.c.b16 %v1544, %v1539
        %v2085 = vpack.c.b16 %v1545, %v1540
        %v2086 = vpack.c.b16 %v1546, %v1541
        %v2087 = vpack.c.b16 %v1552, %v1547
        %v2088 = vpack.c.b16 %v1553, %v1548
        %v2089 = vpack.c.b16 %v1554, %v1549
        %v2090 = vpack.c.b16 %v1555, %v1550
        %v2091 = vpack.c.b16 %v1556, %v1551
        %v2092 = vpack.c.b16 %v1562, %v1557
        %v2093 = vpack.c.b16 %v1563, %v1558
        %v2094 = vpack.c.b16 %v1564, %v1559
        %v2095 = vpack.c.b16 %v1565, %v1560
        %v2096 = vpack.c.b16 %v1566, %v1561
        %v2097 = vpack.c.b16 %v1572, %v1567
        %v2098 = vpack.c.b16 %v1573, %v1568
        %v2099 = vpack.c.b16 %v1574, %v1569
        %v2100 = vpack.c.b16 %v1575, %v1570
        %v2101 = vpack.c.b16 %v1576, %v1571
        %v2102 = vpack.c.b16 %v1582, %v1577
        %v2103 = vpack.c.b16 %v1583, %v1578
        %v2104 = vpack.c.b16 %v1584, %v1579
        %v2105 = vpack.c.b16 %v1585, %v1580
        %v2106 = vpack.c.b16 %v1586, %v1581
        %v2107 = vpack.c.b16 %v1592, %v1587
        %v2108 = vpack.c.b16 %v1593, %v1588
        %v2109 = vpack.c.b16 %v1594, %v1589
        %v2110 = vpack.c.b16 %v1595, %v1590
        %v2111 = vpack.c.b16 %v1596, %v1591
        %v2112 = vpack.c.b16 %v1602, %v1597
        %v2113 = vpack.c.b16 %v1603, %v1598
        %v2114 = vpack.c.b16 %v1604, %v1599
        %v2115 = vpack.c.b16 %v1605, %v1600
        %v2116 = vpack.c.b16 %v1606, %v1601
        %v2117 = vpack.c.b16 %v1612, %v1607
        %v2118 = vpack.c.b16 %v1613, %v1608
        %v2119 = vpack.c.b16 %v1614, %v1609
        %v2120 = vpack.c.b16 %v1615, %v1610
        %v2121 = vpack.c.b16 %v1616, %v1611
        %v2122 = vpack.c.b16 %v1622, %v1617
        %v2123 = vpack.c.b16 %v1623, %v1618
        %v2124 = vpack.c.b16 %v1624, %v1619
        %v2125 = vpack.c.b16 %v1625, %v1620
        %v2126 = vpack.c.b16 %v1626, %v1621
        %v2127 = vpack.c.b16 %v1632, %v1627
        %v2128 = vpack.c.b16 %v1633, %v1628
        %v2129 = vpack.c.b16 %v1634, %v1629
        %v2130 = vpack.c.b16 %v1635, %v1630
        %v2131 = vpack.c.b16 %v1636, %v1631
        %v2132 = vpack.c.b16 %v1642, %v1637
        %v2133 = vpack.c.b16 %v1643, %v1638
        %v2134 = vpack.c.b16 %v1644, %v1639
        %v2135 = vpack.c.b16 %v1645, %v1640
        %v2136 = vpack.c.b16 %v1646, %v1641
        %v2137 = vpack.c.b16 %v1652, %v1647
        %v2138 = vpack.c.b16 %v1653, %v1648
        %v2139 = vpack.c.b16 %v1654, %v1649
        %v2140 = vpack.c.b16 %v1655, %v1650
        %v2141 = vpack.c.b16 %v1656, %v1651
        %v2142 = vpack.c.b16 %v1662, %v1657
        %v2143 = vpack.c.b16 %v1663, %v1658
        %v2144 = vpack.c.b16 %v1664, %v1659
        %v2145 = vpack.c.b16 %v1665, %v1660
        %v2146 = vpack.c.b16 %v1666, %v1661
        %v2147 = vpack.c.b16 %v1672, %v1667
        %v2148 = vpack.c.b16 %v1673, %v1668
        %v2149 = vpack.c.b16 %v1674, %v1669
        %v2150 = vpack.c.b16 %v1675, %v1670
        %v2151 = vpack.c.b16 %v1676, %v1671
        %v2152 = vpack.c.b16 %v1682, %v1677
        %v2153 = vpack.c.b16 %v1683, %v1678
        %v2154 = vpack.c.b16 %v1684, %v1679
        %v2155 = vpack.c.b16 %v1685, %v1680
        %v2156 = vpack.c.b16 %v1686, %v1681
        %v2157 = vpack.c.b16 %v1692, %v1687
        %v2158 = vpack.c.b16 %v1693, %v1688
        %v2159 = vpack.c.b16 %v1694, %v1689
        %v2160 = vpack.c.b16 %v1695, %v1690
        %v2161 = vpack.c.b16 %v1696, %v1691
        %v2162 = vpack.c.b16 %v1702, %v1697
        %v2163 = vpack.c.b16 %v1703, %v1698
        %v2164 = vpack.c.b16 %v1704, %v1699
        %v2165 = vpack.c.b16 %v1705, %v1700
        %v2166 = vpack.c.b16 %v1706, %v1701
        %v2167 = vpack.c.b16 %v1712, %v1707
        %v2168 = vpack.c.b16 %v1713, %v1708
        %v2169 = vpack.c.b16 %v1714, %v1709
        %v2170 = vpack.c.b16 %v1715, %v1710
        %v2171 = vpack.c.b16 %v1716, %v1711
        %v2172 = vpack.c.b16 %v1722, %v1717
        %v2173 = vpack.c.b16 %v1723, %v1718
        %v2174 = vpack.c.b16 %v1724, %v1719
        %v2175 = vpack.c.b16 %v1725, %v1720
        %v2176 = vpack.c.b16 %v1726, %v1721
        %v2177 = vpack.c.b16 %v1732, %v1727
        %v2178 = vpack.c.b16 %v1733, %v1728
        %v2179 = vpack.c.b16 %v1734, %v1729
        %v2180 = vpack.c.b16 %v1735, %v1730
        %v2181 = vpack.c.b16 %v1736, %v1731
        %v2182 = vpack.c.b16 %v1742, %v1737
        %v2183 = vpack.c.b16 %v1743, %v1738
        %v2184 = vpack.c.b16 %v1744, %v1739
        %v2185 = vpack.c.b16 %v1745, %v1740
        %v2186 = vpack.c.b16 %v1746, %v1741
        %v2187 = vpack.c.b16 %v1752, %v1747
        %v2188 = vpack.c.b16 %v1753, %v1748
        %v2189 = vpack.c.b16 %v1754, %v1749
        %v2190 = vpack.c.b16 %v1755, %v1750
        %v2191 = vpack.c.b16 %v1756, %v1751
        %v2192 = vpack.c.b16 %v1762, %v1757
        %v2193 = vpack.c.b16 %v1763, %v1758
        %v2194 = vpack.c.b16 %v1764, %v1759
        %v2195 = vpack.c.b16 %v1765, %v1760
        %v2196 = vpack.c.b16 %v1766, %v1761
        %v2197 = vpack.c.b16 %v1772, %v1767
        %v2198 = vpack.c.b16 %v1773, %v1768
        %v2199 = vpack.c.b16 %v1774, %v1769
        %v2200 = vpack.c.b16 %v1775, %v1770
        %v2201 = vpack.c.b16 %v1776, %v1771
        %v2202 = vpack.c.b16 %v1782, %v1777
        %v2203 = vpack.c.b16 %v1783, %v1778
        %v2204 = vpack.c.b16 %v1784, %v1779
        %v2205 = vpack.c.b16 %v1785, %v1780
        %v2206 = vpack.c.b16 %v1786, %v1781
        %v2207 = vpack.c.b16 %v1792, %v1787
        %v2208 = vpack.c.b16 %v1793, %v1788
        %v2209 = vpack.c.b16 %v1794, %v1789
        %v2210 = vpack.c.b16 %v1795, %v1790
        %v2211 = vpack.c.b16 %v1796, %v1791
        %v2212 = vpack.c.b16 %v1802, %v1797
        %v2213 = vpack.c.b16 %v1803, %v1798
        %v2214 = vpack.c.b16 %v1804, %v1799
        %v2215 = vpack.c.b16 %v1805, %v1800
        %v2216 = vpack.c.b16 %v1806, %v1801
        %v2217 = vpack.c.b16 %v1812, %v1807
        %v2218 = vpack.c.b16 %v1813, %v1808
        %v2219 = vpack.c.b16 %v1814, %v1809
        %v2220 = vpack.c.b16 %v1815, %v1810
        %v2221 = vpack.c.b16 %v1816, %v1811
        %v2222 = vpack.c.b16 %v1822, %v1817
        %v2223 = vpack.c.b16 %v1823, %v1818
        %v2224 = vpack.c.b16 %v1824, %v1819
        %v2225 = vpack.c.b16 %v1825, %v1820
        %v2226 = vpack.c.b16 %v1826, %v1821
        %v2227 = vpack.c.b16 %v1832, %v1827
        %v2228 = vpack.c.b16 %v1833, %v1828
        %v2229 = vpack.c.b16 %v1834, %v1829
        %v2230 = vpack.c.b16 %v1835, %v1830
        %v2231 = vpack.c.b16 %v1836, %v1831
        %v2232 = vpack.c.b16 %v1842, %v1837
        %v2233 = vpack.c.b16 %v1843, %v1838
        %v2234 = vpack.c.b16 %v1844, %v1839
        %v2235 = vpack.c.b16 %v1845, %v1840
        %v2236 = vpack.c.b16 %v1846, %v1841
        %v2237 = vpack.c.b16 %v1852, %v1847
        %v2238 = vpack.c.b16 %v1853, %v1848
        %v2239 = vpack.c.b16 %v1854, %v1849
        %v2240 = vpack.c.b16 %v1855, %v1850
        %v2241 = vpack.c.b16 %v1856, %v1851
        %v2242 = vpack.c.b16 %v1862, %v1857
        %v2243 = vpack.c.b16 %v1863, %v1858
        %v2244 = vpack.c.b16 %v1864, %v1859
        %v2245 = vpack.c.b16 %v1865, %v1860
        %v2246 = vpack.c.b16 %v1866, %v1861
        %v2247 = vpack.c.b16 %v1872, %v1867
        %v2248 = vpack.c.b16 %v1873, %v1868
        %v2249 = vpack.c.b16 %v1874, %v1869
        %v2250 = vpack.c.b16 %v1875, %v1870
        %v2251 = vpack.c.b16 %v1876, %v1871
        %v2252 = vpack.c.b16 %v1882, %v1877
        %v2253 = vpack.c.b16 %v1883, %v1878
        %v2254 = vpack.c.b16 %v1884, %v1879
        %v2255 = vpack.c.b16 %v1885, %v1880
        %v2256 = vpack.c.b16 %v1886, %v1881
        %v2257 = vpack.c.b16 %v1892, %v1887
        %v2258 = vpack.c.b16 %v1893, %v1888
        %v2259 = vpack.c.b16 %v1894, %v1889
        %v2260 = vpack.c.b16 %v1895, %v1890
        %v2261 = vpack.c.b16 %v1896, %v1891
        %v2262 = vpack.c.b16 %v1902, %v1897
        %v2263 = vpack.c.b16 %v1903, %v1898
        %v2264 = vpack.c.b16 %v1904, %v1899
        %v2265 = vpack.c.b16 %v1905, %v1900
        %v2266 = vpack.c.b16 %v1906, %v1901
        %2627 = vmatprep.subr.bf16.mxu0 %v1943
        %2628 = vmatpush1.bf16.msra.mxu0 %v1942
        %2629 = vmatprep.subr.bf16.mxu0 %v1938
        %2630 = vmatpush1.bf16.msra.mxu0 %v1937
        %2631 = vmatprep.subr.bf16.mxu0 %v1933
        %2632 = vmatpush1.bf16.msra.mxu0 %v1932
        %2633 = vmatprep.subr.bf16.mxu0 %v1928
        %2634 = vmatpush1.bf16.msra.mxu0 %v1927
        %2635 = vmatprep.subr.bf16.mxu0 %v1923
        %2636 = vmatpush1.bf16.msra.mxu0 %v1922
        %2637 = vmatprep.subr.bf16.mxu0 %v1918
        %2638 = vmatpush1.bf16.msra.mxu0 %v1917
        %2639 = vmatprep.subr.bf16.mxu0 %v1913
        %2640 = vmatpush1.bf16.msra.mxu0 %v1912
        %2641 = vmatprep.subr.bf16.mxu0 %v1908
        %2642 = vmatpush1.bf16.msra.mxu0 %v1907
        %2643 = vmatprep.subr.bf16.mxu0 %v1983
        %2644 = vmatpush2.bf16.msra.mxu0 %v1982
        %2645 = vmatprep.subr.bf16.mxu0 %v1978
        %2646 = vmatpush2.bf16.msra.mxu0 %v1977
        %2647 = vmatprep.subr.bf16.mxu0 %v1973
        %2648 = vmatpush2.bf16.msra.mxu0 %v1972
        %2649 = vmatprep.subr.bf16.mxu0 %v1968
        %2650 = vmatpush2.bf16.msra.mxu0 %v1967
        %2651 = vmatprep.subr.bf16.mxu0 %v1963
        %2652 = vmatpush2.bf16.msra.mxu0 %v1962
        %2653 = vmatprep.subr.bf16.mxu0 %v1958
        %2654 = vmatpush2.bf16.msra.mxu0 %v1957
        %2655 = vmatprep.subr.bf16.mxu0 %v1953
        %2656 = vmatpush2.bf16.msra.mxu0 %v1952
        %2657 = vmatprep.subr.bf16.mxu0 %v1948
        %2658 = vmatpush2.bf16.msra.mxu0 %v1947
        %2659 = vmatprep.mubr.bf16.mxu0 %v288
        %2660 = vmatmul.mubr.bf16.gmra.mxu0 %v287
        %v2661 = vpop.f32.mrf.mxu0
        %v2662 = vadd.f32 %v733, %v2661
        %v2663 = vpop.f32.mrf.mxu0
        %v2664 = vadd.f32 %v737, %v2663
        %v2665 = vpop.f32.mrf.mxu0
        %v2666 = vpop.f32.mrf.mxu0
        %2667 = vdwg.mxu0
        %2668 = vmatprep.subr.bf16.mxu0 %v2023
        %2669 = vmatpush1.bf16.msra.mxu0 %v2022
        %2670 = vmatprep.subr.bf16.mxu0 %v2018
        %2671 = vmatpush1.bf16.msra.mxu0 %v2017
        %2672 = vmatprep.subr.bf16.mxu0 %v2013
        %2673 = vmatpush1.bf16.msra.mxu0 %v2012
        %2674 = vmatprep.subr.bf16.mxu0 %v2008
        %2675 = vmatpush1.bf16.msra.mxu0 %v2007
        %2676 = vmatprep.subr.bf16.mxu0 %v2003
        %2677 = vmatpush1.bf16.msra.mxu0 %v2002
        %2678 = vmatprep.subr.bf16.mxu0 %v1998
        %2679 = vmatpush1.bf16.msra.mxu0 %v1997
        %2680 = vmatprep.subr.bf16.mxu0 %v1993
        %2681 = vmatpush1.bf16.msra.mxu0 %v1992
        %2682 = vmatprep.subr.bf16.mxu0 %v1988
        %2683 = vmatpush1.bf16.msra.mxu0 %v1987
        %2684 = vmatprep.subr.bf16.mxu0 %v2063
        %2685 = vmatpush2.bf16.msra.mxu0 %v2062
        %2686 = vmatprep.subr.bf16.mxu0 %v2058
        %2687 = vmatpush2.bf16.msra.mxu0 %v2057
        %2688 = vmatprep.subr.bf16.mxu0 %v2053
        %2689 = vmatpush2.bf16.msra.mxu0 %v2052
        %2690 = vmatprep.subr.bf16.mxu0 %v2048
        %2691 = vmatpush2.bf16.msra.mxu0 %v2047
        %2692 = vmatprep.subr.bf16.mxu0 %v2043
        %2693 = vmatpush2.bf16.msra.mxu0 %v2042
        %2694 = vmatprep.subr.bf16.mxu0 %v2038
        %2695 = vmatpush2.bf16.msra.mxu0 %v2037
        %2696 = vmatprep.subr.bf16.mxu0 %v2033
        %2697 = vmatpush2.bf16.msra.mxu0 %v2032
        %2698 = vmatprep.subr.bf16.mxu0 %v2028
        %2699 = vmatpush2.bf16.msra.mxu0 %v2027
        %2700 = vmatprep.mubr.bf16.mxu0 %v290
        %2701 = vmatmul.mubr.bf16.gmra.mxu0 %v289
        %v2702 = vpop.f32.mrf.mxu0
        %v2703 = vadd.f32 %v2662, %v2702
        %v2704 = vpop.f32.mrf.mxu0
        %v2705 = vadd.f32 %v2664, %v2704
        %v2706 = vpop.f32.mrf.mxu0
        %v2707 = vpop.f32.mrf.mxu0
        %2708 = vdwg.mxu0
        %2709 = vmatprep.subr.bf16.mxu0 %v2103
        %2710 = vmatpush1.bf16.msra.mxu0 %v2102
        %2711 = vmatprep.subr.bf16.mxu0 %v2098
        %2712 = vmatpush1.bf16.msra.mxu0 %v2097
        %2713 = vmatprep.subr.bf16.mxu0 %v2093
        %2714 = vmatpush1.bf16.msra.mxu0 %v2092
        %2715 = vmatprep.subr.bf16.mxu0 %v2088
        %2716 = vmatpush1.bf16.msra.mxu0 %v2087
        %2717 = vmatprep.subr.bf16.mxu0 %v2083
        %2718 = vmatpush1.bf16.msra.mxu0 %v2082
        %2719 = vmatprep.subr.bf16.mxu0 %v2078
        %2720 = vmatpush1.bf16.msra.mxu0 %v2077
        %2721 = vmatprep.subr.bf16.mxu0 %v2073
        %2722 = vmatpush1.bf16.msra.mxu0 %v2072
        %2723 = vmatprep.subr.bf16.mxu0 %v2068
        %2724 = vmatpush1.bf16.msra.mxu0 %v2067
        %2725 = vmatprep.subr.bf16.mxu0 %v2143
        %2726 = vmatpush2.bf16.msra.mxu0 %v2142
        %2727 = vmatprep.subr.bf16.mxu0 %v2138
        %2728 = vmatpush2.bf16.msra.mxu0 %v2137
        %2729 = vmatprep.subr.bf16.mxu0 %v2133
        %2730 = vmatpush2.bf16.msra.mxu0 %v2132
        %2731 = vmatprep.subr.bf16.mxu0 %v2128
        %2732 = vmatpush2.bf16.msra.mxu0 %v2127
        %2733 = vmatprep.subr.bf16.mxu0 %v2123
        %2734 = vmatpush2.bf16.msra.mxu0 %v2122
        %2735 = vmatprep.subr.bf16.mxu0 %v2118
        %2736 = vmatpush2.bf16.msra.mxu0 %v2117
        %2737 = vmatprep.subr.bf16.mxu0 %v2113
        %2738 = vmatpush2.bf16.msra.mxu0 %v2112
        %2739 = vmatprep.subr.bf16.mxu0 %v2108
        %2740 = vmatpush2.bf16.msra.mxu0 %v2107
        %2741 = vmatprep.mubr.bf16.mxu0 %v292
        %2742 = vmatmul.mubr.bf16.gmra.mxu0 %v291
        %v2743 = vpop.f32.mrf.mxu0
        %v2744 = vadd.f32 %v2703, %v2743
        %v2745 = vpop.f32.mrf.mxu0
        %v2746 = vadd.f32 %v2705, %v2745
        %v2747 = vpop.f32.mrf.mxu0
        %v2748 = vpop.f32.mrf.mxu0
        %2749 = vdwg.mxu0
        %2750 = vmatprep.subr.bf16.mxu0 %v2183
        %2751 = vmatpush1.bf16.msra.mxu0 %v2182
        %2752 = vmatprep.subr.bf16.mxu0 %v2178
        %2753 = vmatpush1.bf16.msra.mxu0 %v2177
        %2754 = vmatprep.subr.bf16.mxu0 %v2173
        %2755 = vmatpush1.bf16.msra.mxu0 %v2172
        %2756 = vmatprep.subr.bf16.mxu0 %v2168
        %2757 = vmatpush1.bf16.msra.mxu0 %v2167
        %2758 = vmatprep.subr.bf16.mxu0 %v2163
        %2759 = vmatpush1.bf16.msra.mxu0 %v2162
        %2760 = vmatprep.subr.bf16.mxu0 %v2158
        %2761 = vmatpush1.bf16.msra.mxu0 %v2157
        %2762 = vmatprep.subr.bf16.mxu0 %v2153
        %2763 = vmatpush1.bf16.msra.mxu0 %v2152
        %2764 = vmatprep.subr.bf16.mxu0 %v2148
        %2765 = vmatpush1.bf16.msra.mxu0 %v2147
        %2766 = vmatprep.subr.bf16.mxu0 %v2223
        %2767 = vmatpush2.bf16.msra.mxu0 %v2222
        %2768 = vmatprep.subr.bf16.mxu0 %v2218
        %2769 = vmatpush2.bf16.msra.mxu0 %v2217
        %2770 = vmatprep.subr.bf16.mxu0 %v2213
        %2771 = vmatpush2.bf16.msra.mxu0 %v2212
        %2772 = vmatprep.subr.bf16.mxu0 %v2208
        %2773 = vmatpush2.bf16.msra.mxu0 %v2207
        %2774 = vmatprep.subr.bf16.mxu0 %v2203
        %2775 = vmatpush2.bf16.msra.mxu0 %v2202
        %2776 = vmatprep.subr.bf16.mxu0 %v2198
        %2777 = vmatpush2.bf16.msra.mxu0 %v2197
        %2778 = vmatprep.subr.bf16.mxu0 %v2193
        %2779 = vmatpush2.bf16.msra.mxu0 %v2192
        %2780 = vmatprep.subr.bf16.mxu0 %v2188
        %2781 = vmatpush2.bf16.msra.mxu0 %v2187
        %2782 = vmatprep.mubr.bf16.mxu0 %v294
        %2783 = vmatmul.mubr.bf16.gmra.mxu0 %v293
        %v2784 = vpop.f32.mrf.mxu0
        %v2785 = vadd.f32 %v2744, %v2784
        %v2786 = vpop.f32.mrf.mxu0
        %v2787 = vadd.f32 %v2746, %v2786
        %v2788 = vpop.f32.mrf.mxu0
        %v2789 = vpop.f32.mrf.mxu0
        %2790 = vdwg.mxu0
        %2791 = vmatprep.subr.bf16.mxu0 %v2263
        %2792 = vmatpush1.bf16.msra.mxu0 %v2262
        %2793 = vmatprep.subr.bf16.mxu0 %v2258
        %2794 = vmatpush1.bf16.msra.mxu0 %v2257
        %2795 = vmatprep.subr.bf16.mxu0 %v2253
        %2796 = vmatpush1.bf16.msra.mxu0 %v2252
        %2797 = vmatprep.subr.bf16.mxu0 %v2248
        %2798 = vmatpush1.bf16.msra.mxu0 %v2247
        %2799 = vmatprep.subr.bf16.mxu0 %v2243
        %2800 = vmatpush1.bf16.msra.mxu0 %v2242
        %2801 = vmatprep.subr.bf16.mxu0 %v2238
        %2802 = vmatpush1.bf16.msra.mxu0 %v2237
        %2803 = vmatprep.subr.bf16.mxu0 %v2233
        %2804 = vmatpush1.bf16.msra.mxu0 %v2232
        %2805 = vmatprep.subr.bf16.mxu0 %v2228
        %2806 = vmatpush1.bf16.msra.mxu0 %v2227
        %2807 = vmatprep.subr.bf16.mxu0 0
        %2808 = vmatpush2.bf16.msra.mxu0 0
        %2809 = vmatprep.subr.bf16.mxu0 0
        %2810 = vmatpush2.bf16.msra.mxu0 0
        %2811 = vmatprep.subr.bf16.mxu0 0
        %2812 = vmatpush2.bf16.msra.mxu0 0
        %2813 = vmatprep.subr.bf16.mxu0 0
        %2814 = vmatpush2.bf16.msra.mxu0 0
        %2815 = vmatprep.subr.bf16.mxu0 0
        %2816 = vmatpush2.bf16.msra.mxu0 0
        %2817 = vmatprep.subr.bf16.mxu0 0
        %2818 = vmatpush2.bf16.msra.mxu0 0
        %2819 = vmatprep.subr.bf16.mxu0 0
        %2820 = vmatpush2.bf16.msra.mxu0 0
        %2821 = vmatprep.subr.bf16.mxu0 0
        %2822 = vmatpush2.bf16.msra.mxu0 0
        %2823 = vmatprep.mubr.bf16.mxu0 0
        %2824 = vmatmul.mubr.bf16.gmra.mxu0 %v295
        %v2825 = vpop.f32.mrf.mxu0
        %v2826 = vadd.f32 %v2785, %v2825
        %v2827 = vpop.f32.mrf.mxu0
        %v2828 = vadd.f32 %v2787, %v2827
        %v2829 = vpop.f32.mrf.mxu0
        %v2830 = vpop.f32.mrf.mxu0
        %2831 = vdwg.mxu0
        %2832 = vmatprep.subr.bf16.mxu0 %v1945
        %2833 = vmatpush1.bf16.msra.mxu0 %v1944
        %2834 = vmatprep.subr.bf16.mxu0 %v1940
        %2835 = vmatpush1.bf16.msra.mxu0 %v1939
        %2836 = vmatprep.subr.bf16.mxu0 %v1935
        %2837 = vmatpush1.bf16.msra.mxu0 %v1934
        %2838 = vmatprep.subr.bf16.mxu0 %v1930
        %2839 = vmatpush1.bf16.msra.mxu0 %v1929
        %2840 = vmatprep.subr.bf16.mxu0 %v1925
        %2841 = vmatpush1.bf16.msra.mxu0 %v1924
        %2842 = vmatprep.subr.bf16.mxu0 %v1920
        %2843 = vmatpush1.bf16.msra.mxu0 %v1919
        %2844 = vmatprep.subr.bf16.mxu0 %v1915
        %2845 = vmatpush1.bf16.msra.mxu0 %v1914
        %2846 = vmatprep.subr.bf16.mxu0 %v1910
        %2847 = vmatpush1.bf16.msra.mxu0 %v1909
        %2848 = vmatprep.subr.bf16.mxu0 %v1985
        %2849 = vmatpush2.bf16.msra.mxu0 %v1984
        %2850 = vmatprep.subr.bf16.mxu0 %v1980
        %2851 = vmatpush2.bf16.msra.mxu0 %v1979
        %2852 = vmatprep.subr.bf16.mxu0 %v1975
        %2853 = vmatpush2.bf16.msra.mxu0 %v1974
        %2854 = vmatprep.subr.bf16.mxu0 %v1970
        %2855 = vmatpush2.bf16.msra.mxu0 %v1969
        %2856 = vmatprep.subr.bf16.mxu0 %v1965
        %2857 = vmatpush2.bf16.msra.mxu0 %v1964
        %2858 = vmatprep.subr.bf16.mxu0 %v1960
        %2859 = vmatpush2.bf16.msra.mxu0 %v1959
        %2860 = vmatprep.subr.bf16.mxu0 %v1955
        %2861 = vmatpush2.bf16.msra.mxu0 %v1954
        %2862 = vmatprep.subr.bf16.mxu0 %v1950
        %2863 = vmatpush2.bf16.msra.mxu0 %v1949
        %2864 = vmatprep.mubr.bf16.mxu0 %v288
        %2865 = vmatmul.mubr.bf16.gmra.mxu0 %v287
        %v2866 = vpop.f32.mrf.mxu0
        %v2867 = vadd.f32 %v741, %v2866
        %v2868 = vpop.f32.mrf.mxu0
        %v2869 = vadd.f32 %v745, %v2868
        %v2870 = vpop.f32.mrf.mxu0
        %v2871 = vpop.f32.mrf.mxu0
        %2872 = vdwg.mxu0
        %2873 = vmatprep.subr.bf16.mxu0 %v2025
        %2874 = vmatpush1.bf16.msra.mxu0 %v2024
        %2875 = vmatprep.subr.bf16.mxu0 %v2020
        %2876 = vmatpush1.bf16.msra.mxu0 %v2019
        %2877 = vmatprep.subr.bf16.mxu0 %v2015
        %2878 = vmatpush1.bf16.msra.mxu0 %v2014
        %2879 = vmatprep.subr.bf16.mxu0 %v2010
        %2880 = vmatpush1.bf16.msra.mxu0 %v2009
        %2881 = vmatprep.subr.bf16.mxu0 %v2005
        %2882 = vmatpush1.bf16.msra.mxu0 %v2004
        %2883 = vmatprep.subr.bf16.mxu0 %v2000
        %2884 = vmatpush1.bf16.msra.mxu0 %v1999
        %2885 = vmatprep.subr.bf16.mxu0 %v1995
        %2886 = vmatpush1.bf16.msra.mxu0 %v1994
        %2887 = vmatprep.subr.bf16.mxu0 %v1990
        %2888 = vmatpush1.bf16.msra.mxu0 %v1989
        %2889 = vmatprep.subr.bf16.mxu0 %v2065
        %2890 = vmatpush2.bf16.msra.mxu0 %v2064
        %2891 = vmatprep.subr.bf16.mxu0 %v2060
        %2892 = vmatpush2.bf16.msra.mxu0 %v2059
        %2893 = vmatprep.subr.bf16.mxu0 %v2055
        %2894 = vmatpush2.bf16.msra.mxu0 %v2054
        %2895 = vmatprep.subr.bf16.mxu0 %v2050
        %2896 = vmatpush2.bf16.msra.mxu0 %v2049
        %2897 = vmatprep.subr.bf16.mxu0 %v2045
        %2898 = vmatpush2.bf16.msra.mxu0 %v2044
        %2899 = vmatprep.subr.bf16.mxu0 %v2040
        %2900 = vmatpush2.bf16.msra.mxu0 %v2039
        %2901 = vmatprep.subr.bf16.mxu0 %v2035
        %2902 = vmatpush2.bf16.msra.mxu0 %v2034
        %2903 = vmatprep.subr.bf16.mxu0 %v2030
        %2904 = vmatpush2.bf16.msra.mxu0 %v2029
        %2905 = vmatprep.mubr.bf16.mxu0 %v290
        %2906 = vmatmul.mubr.bf16.gmra.mxu0 %v289
        %v2907 = vpop.f32.mrf.mxu0
        %v2908 = vadd.f32 %v2867, %v2907
        %v2909 = vpop.f32.mrf.mxu0
        %v2910 = vadd.f32 %v2869, %v2909
        %v2911 = vpop.f32.mrf.mxu0
        %v2912 = vpop.f32.mrf.mxu0
        %2913 = vdwg.mxu0
        %2914 = vmatprep.subr.bf16.mxu0 %v2105
        %2915 = vmatpush1.bf16.msra.mxu0 %v2104
        %2916 = vmatprep.subr.bf16.mxu0 %v2100
        %2917 = vmatpush1.bf16.msra.mxu0 %v2099
        %2918 = vmatprep.subr.bf16.mxu0 %v2095
        %2919 = vmatpush1.bf16.msra.mxu0 %v2094
        %2920 = vmatprep.subr.bf16.mxu0 %v2090
        %2921 = vmatpush1.bf16.msra.mxu0 %v2089
        %2922 = vmatprep.subr.bf16.mxu0 %v2085
        %2923 = vmatpush1.bf16.msra.mxu0 %v2084
        %2924 = vmatprep.subr.bf16.mxu0 %v2080
        %2925 = vmatpush1.bf16.msra.mxu0 %v2079
        %2926 = vmatprep.subr.bf16.mxu0 %v2075
        %2927 = vmatpush1.bf16.msra.mxu0 %v2074
        %2928 = vmatprep.subr.bf16.mxu0 %v2070
        %2929 = vmatpush1.bf16.msra.mxu0 %v2069
        %2930 = vmatprep.subr.bf16.mxu0 %v2145
        %2931 = vmatpush2.bf16.msra.mxu0 %v2144
        %2932 = vmatprep.subr.bf16.mxu0 %v2140
        %2933 = vmatpush2.bf16.msra.mxu0 %v2139
        %2934 = vmatprep.subr.bf16.mxu0 %v2135
        %2935 = vmatpush2.bf16.msra.mxu0 %v2134
        %2936 = vmatprep.subr.bf16.mxu0 %v2130
        %2937 = vmatpush2.bf16.msra.mxu0 %v2129
        %2938 = vmatprep.subr.bf16.mxu0 %v2125
        %2939 = vmatpush2.bf16.msra.mxu0 %v2124
        %2940 = vmatprep.subr.bf16.mxu0 %v2120
        %2941 = vmatpush2.bf16.msra.mxu0 %v2119
        %2942 = vmatprep.subr.bf16.mxu0 %v2115
        %2943 = vmatpush2.bf16.msra.mxu0 %v2114
        %2944 = vmatprep.subr.bf16.mxu0 %v2110
        %2945 = vmatpush2.bf16.msra.mxu0 %v2109
        %2946 = vmatprep.mubr.bf16.mxu0 %v292
        %2947 = vmatmul.mubr.bf16.gmra.mxu0 %v291
        %v2948 = vpop.f32.mrf.mxu0
        %v2949 = vadd.f32 %v2908, %v2948
        %v2950 = vpop.f32.mrf.mxu0
        %v2951 = vadd.f32 %v2910, %v2950
        %v2952 = vpop.f32.mrf.mxu0
        %v2953 = vpop.f32.mrf.mxu0
        %2954 = vdwg.mxu0
        %2955 = vmatprep.subr.bf16.mxu0 %v2185
        %2956 = vmatpush1.bf16.msra.mxu0 %v2184
        %2957 = vmatprep.subr.bf16.mxu0 %v2180
        %2958 = vmatpush1.bf16.msra.mxu0 %v2179
        %2959 = vmatprep.subr.bf16.mxu0 %v2175
        %2960 = vmatpush1.bf16.msra.mxu0 %v2174
        %2961 = vmatprep.subr.bf16.mxu0 %v2170
        %2962 = vmatpush1.bf16.msra.mxu0 %v2169
        %2963 = vmatprep.subr.bf16.mxu0 %v2165
        %2964 = vmatpush1.bf16.msra.mxu0 %v2164
        %2965 = vmatprep.subr.bf16.mxu0 %v2160
        %2966 = vmatpush1.bf16.msra.mxu0 %v2159
        %2967 = vmatprep.subr.bf16.mxu0 %v2155
        %2968 = vmatpush1.bf16.msra.mxu0 %v2154
        %2969 = vmatprep.subr.bf16.mxu0 %v2150
        %2970 = vmatpush1.bf16.msra.mxu0 %v2149
        %2971 = vmatprep.subr.bf16.mxu0 %v2225
        %2972 = vmatpush2.bf16.msra.mxu0 %v2224
        %2973 = vmatprep.subr.bf16.mxu0 %v2220
        %2974 = vmatpush2.bf16.msra.mxu0 %v2219
        %2975 = vmatprep.subr.bf16.mxu0 %v2215
        %2976 = vmatpush2.bf16.msra.mxu0 %v2214
        %2977 = vmatprep.subr.bf16.mxu0 %v2210
        %2978 = vmatpush2.bf16.msra.mxu0 %v2209
        %2979 = vmatprep.subr.bf16.mxu0 %v2205
        %2980 = vmatpush2.bf16.msra.mxu0 %v2204
        %2981 = vmatprep.subr.bf16.mxu0 %v2200
        %2982 = vmatpush2.bf16.msra.mxu0 %v2199
        %2983 = vmatprep.subr.bf16.mxu0 %v2195
        %2984 = vmatpush2.bf16.msra.mxu0 %v2194
        %2985 = vmatprep.subr.bf16.mxu0 %v2190
        %2986 = vmatpush2.bf16.msra.mxu0 %v2189
        %2987 = vmatprep.mubr.bf16.mxu0 %v294
        %2988 = vmatmul.mubr.bf16.gmra.mxu0 %v293
        %v2989 = vpop.f32.mrf.mxu0
        %v2990 = vadd.f32 %v2949, %v2989
        %v2991 = vpop.f32.mrf.mxu0
        %v2992 = vadd.f32 %v2951, %v2991
        %v2993 = vpop.f32.mrf.mxu0
        %v2994 = vpop.f32.mrf.mxu0
        %2995 = vdwg.mxu0
        %2996 = vmatprep.subr.bf16.mxu0 %v2265
        %2997 = vmatpush1.bf16.msra.mxu0 %v2264
        %2998 = vmatprep.subr.bf16.mxu0 %v2260
        %2999 = vmatpush1.bf16.msra.mxu0 %v2259
        %3000 = vmatprep.subr.bf16.mxu0 %v2255
        %3001 = vmatpush1.bf16.msra.mxu0 %v2254
        %3002 = vmatprep.subr.bf16.mxu0 %v2250
        %3003 = vmatpush1.bf16.msra.mxu0 %v2249
        %3004 = vmatprep.subr.bf16.mxu0 %v2245
        %3005 = vmatpush1.bf16.msra.mxu0 %v2244
        %3006 = vmatprep.subr.bf16.mxu0 %v2240
        %3007 = vmatpush1.bf16.msra.mxu0 %v2239
        %3008 = vmatprep.subr.bf16.mxu0 %v2235
        %3009 = vmatpush1.bf16.msra.mxu0 %v2234
        %3010 = vmatprep.subr.bf16.mxu0 %v2230
        %3011 = vmatpush1.bf16.msra.mxu0 %v2229
        %3012 = vmatprep.subr.bf16.mxu0 0
        %3013 = vmatpush2.bf16.msra.mxu0 0
        %3014 = vmatprep.subr.bf16.mxu0 0
        %3015 = vmatpush2.bf16.msra.mxu0 0
        %3016 = vmatprep.subr.bf16.mxu0 0
        %3017 = vmatpush2.bf16.msra.mxu0 0
        %3018 = vmatprep.subr.bf16.mxu0 0
        %3019 = vmatpush2.bf16.msra.mxu0 0
        %3020 = vmatprep.subr.bf16.mxu0 0
        %3021 = vmatpush2.bf16.msra.mxu0 0
        %3022 = vmatprep.subr.bf16.mxu0 0
        %3023 = vmatpush2.bf16.msra.mxu0 0
        %3024 = vmatprep.subr.bf16.mxu0 0
        %3025 = vmatpush2.bf16.msra.mxu0 0
        %3026 = vmatprep.subr.bf16.mxu0 0
        %3027 = vmatpush2.bf16.msra.mxu0 0
        %3028 = vmatprep.mubr.bf16.mxu0 0
        %3029 = vmatmul.mubr.bf16.gmra.mxu0 %v295
        %v3030 = vpop.f32.mrf.mxu0
        %v3031 = vadd.f32 %v2990, %v3030
        %v3032 = vpop.f32.mrf.mxu0
        %v3033 = vadd.f32 %v2992, %v3032
        %v3034 = vpop.f32.mrf.mxu0
        %v3035 = vpop.f32.mrf.mxu0
        %3036 = vdwg.mxu0
        %3037 = vmatprep.subr.bf16.mxu0 0
        %3038 = vmatpush1.bf16.msra.mxu0 %v1946
        %3039 = vmatprep.subr.bf16.mxu0 0
        %3040 = vmatpush1.bf16.msra.mxu0 %v1941
        %3041 = vmatprep.subr.bf16.mxu0 0
        %3042 = vmatpush1.bf16.msra.mxu0 %v1936
        %3043 = vmatprep.subr.bf16.mxu0 0
        %3044 = vmatpush1.bf16.msra.mxu0 %v1931
        %3045 = vmatprep.subr.bf16.mxu0 0
        %3046 = vmatpush1.bf16.msra.mxu0 %v1926
        %3047 = vmatprep.subr.bf16.mxu0 0
        %3048 = vmatpush1.bf16.msra.mxu0 %v1921
        %3049 = vmatprep.subr.bf16.mxu0 0
        %3050 = vmatpush1.bf16.msra.mxu0 %v1916
        %3051 = vmatprep.subr.bf16.mxu0 0
        %3052 = vmatpush1.bf16.msra.mxu0 %v1911
        %3053 = vmatprep.subr.bf16.mxu0 0
        %3054 = vmatpush2.bf16.msra.mxu0 %v1986
        %3055 = vmatprep.subr.bf16.mxu0 0
        %3056 = vmatpush2.bf16.msra.mxu0 %v1981
        %3057 = vmatprep.subr.bf16.mxu0 0
        %3058 = vmatpush2.bf16.msra.mxu0 %v1976
        %3059 = vmatprep.subr.bf16.mxu0 0
        %3060 = vmatpush2.bf16.msra.mxu0 %v1971
        %3061 = vmatprep.subr.bf16.mxu0 0
        %3062 = vmatpush2.bf16.msra.mxu0 %v1966
        %3063 = vmatprep.subr.bf16.mxu0 0
        %3064 = vmatpush2.bf16.msra.mxu0 %v1961
        %3065 = vmatprep.subr.bf16.mxu0 0
        %3066 = vmatpush2.bf16.msra.mxu0 %v1956
        %3067 = vmatprep.subr.bf16.mxu0 0
        %3068 = vmatpush2.bf16.msra.mxu0 %v1951
        %3069 = vmatprep.mubr.bf16.mxu0 %v288
        %3070 = vmatmul.mubr.bf16.gmra.mxu0 %v287
        %v3071 = vpop.f32.mrf.mxu0
        %v3072 = vadd.f32 %v749, %v3071
        %v3073 = vpop.f32.mrf.mxu0
        %v3074 = vpop.f32.mrf.mxu0
        %v3075 = vpop.f32.mrf.mxu0
        %3076 = vdwg.mxu0
        %3077 = vmatprep.subr.bf16.mxu0 0
        %3078 = vmatpush1.bf16.msra.mxu0 %v2026
        %3079 = vmatprep.subr.bf16.mxu0 0
        %3080 = vmatpush1.bf16.msra.mxu0 %v2021
        %3081 = vmatprep.subr.bf16.mxu0 0
        %3082 = vmatpush1.bf16.msra.mxu0 %v2016
        %3083 = vmatprep.subr.bf16.mxu0 0
        %3084 = vmatpush1.bf16.msra.mxu0 %v2011
        %3085 = vmatprep.subr.bf16.mxu0 0
        %3086 = vmatpush1.bf16.msra.mxu0 %v2006
        %3087 = vmatprep.subr.bf16.mxu0 0
        %3088 = vmatpush1.bf16.msra.mxu0 %v2001
        %3089 = vmatprep.subr.bf16.mxu0 0
        %3090 = vmatpush1.bf16.msra.mxu0 %v1996
        %3091 = vmatprep.subr.bf16.mxu0 0
        %3092 = vmatpush1.bf16.msra.mxu0 %v1991
        %3093 = vmatprep.subr.bf16.mxu0 0
        %3094 = vmatpush2.bf16.msra.mxu0 %v2066
        %3095 = vmatprep.subr.bf16.mxu0 0
        %3096 = vmatpush2.bf16.msra.mxu0 %v2061
        %3097 = vmatprep.subr.bf16.mxu0 0
        %3098 = vmatpush2.bf16.msra.mxu0 %v2056
        %3099 = vmatprep.subr.bf16.mxu0 0
        %3100 = vmatpush2.bf16.msra.mxu0 %v2051
        %3101 = vmatprep.subr.bf16.mxu0 0
        %3102 = vmatpush2.bf16.msra.mxu0 %v2046
        %3103 = vmatprep.subr.bf16.mxu0 0
        %3104 = vmatpush2.bf16.msra.mxu0 %v2041
        %3105 = vmatprep.subr.bf16.mxu0 0
        %3106 = vmatpush2.bf16.msra.mxu0 %v2036
        %3107 = vmatprep.subr.bf16.mxu0 0
        %3108 = vmatpush2.bf16.msra.mxu0 %v2031
        %3109 = vmatprep.mubr.bf16.mxu0 %v290
        %3110 = vmatmul.mubr.bf16.gmra.mxu0 %v289
        %v3111 = vpop.f32.mrf.mxu0
        %v3112 = vadd.f32 %v3072, %v3111
        %v3113 = vpop.f32.mrf.mxu0
        %v3114 = vpop.f32.mrf.mxu0
        %v3115 = vpop.f32.mrf.mxu0
        %3116 = vdwg.mxu0
        %3117 = vmatprep.subr.bf16.mxu0 0
        %3118 = vmatpush1.bf16.msra.mxu0 %v2106
        %3119 = vmatprep.subr.bf16.mxu0 0
        %3120 = vmatpush1.bf16.msra.mxu0 %v2101
        %3121 = vmatprep.subr.bf16.mxu0 0
        %3122 = vmatpush1.bf16.msra.mxu0 %v2096
        %3123 = vmatprep.subr.bf16.mxu0 0
        %3124 = vmatpush1.bf16.msra.mxu0 %v2091
        %3125 = vmatprep.subr.bf16.mxu0 0
        %3126 = vmatpush1.bf16.msra.mxu0 %v2086
        %3127 = vmatprep.subr.bf16.mxu0 0
        %3128 = vmatpush1.bf16.msra.mxu0 %v2081
        %3129 = vmatprep.subr.bf16.mxu0 0
        %3130 = vmatpush1.bf16.msra.mxu0 %v2076
        %3131 = vmatprep.subr.bf16.mxu0 0
        %3132 = vmatpush1.bf16.msra.mxu0 %v2071
        %3133 = vmatprep.subr.bf16.mxu0 0
        %3134 = vmatpush2.bf16.msra.mxu0 %v2146
        %3135 = vmatprep.subr.bf16.mxu0 0
        %3136 = vmatpush2.bf16.msra.mxu0 %v2141
        %3137 = vmatprep.subr.bf16.mxu0 0
        %3138 = vmatpush2.bf16.msra.mxu0 %v2136
        %3139 = vmatprep.subr.bf16.mxu0 0
        %3140 = vmatpush2.bf16.msra.mxu0 %v2131
        %3141 = vmatprep.subr.bf16.mxu0 0
        %3142 = vmatpush2.bf16.msra.mxu0 %v2126
        %3143 = vmatprep.subr.bf16.mxu0 0
        %3144 = vmatpush2.bf16.msra.mxu0 %v2121
        %3145 = vmatprep.subr.bf16.mxu0 0
        %3146 = vmatpush2.bf16.msra.mxu0 %v2116
        %3147 = vmatprep.subr.bf16.mxu0 0
        %3148 = vmatpush2.bf16.msra.mxu0 %v2111
        %3149 = vmatprep.mubr.bf16.mxu0 %v292
        %3150 = vmatmul.mubr.bf16.gmra.mxu0 %v291
        %v3151 = vpop.f32.mrf.mxu0
        %v3152 = vadd.f32 %v3112, %v3151
        %v3153 = vpop.f32.mrf.mxu0
        %v3154 = vpop.f32.mrf.mxu0
        %v3155 = vpop.f32.mrf.mxu0
        %3156 = vdwg.mxu0
        %3157 = vmatprep.subr.bf16.mxu0 0
        %3158 = vmatpush1.bf16.msra.mxu0 %v2186
        %3159 = vmatprep.subr.bf16.mxu0 0
        %3160 = vmatpush1.bf16.msra.mxu0 %v2181
        %3161 = vmatprep.subr.bf16.mxu0 0
        %3162 = vmatpush1.bf16.msra.mxu0 %v2176
        %3163 = vmatprep.subr.bf16.mxu0 0
        %3164 = vmatpush1.bf16.msra.mxu0 %v2171
        %3165 = vmatprep.subr.bf16.mxu0 0
        %3166 = vmatpush1.bf16.msra.mxu0 %v2166
        %3167 = vmatprep.subr.bf16.mxu0 0
        %3168 = vmatpush1.bf16.msra.mxu0 %v2161
        %3169 = vmatprep.subr.bf16.mxu0 0
        %3170 = vmatpush1.bf16.msra.mxu0 %v2156
        %3171 = vmatprep.subr.bf16.mxu0 0
        %3172 = vmatpush1.bf16.msra.mxu0 %v2151
        %3173 = vmatprep.subr.bf16.mxu0 0
        %3174 = vmatpush2.bf16.msra.mxu0 %v2226
        %3175 = vmatprep.subr.bf16.mxu0 0
        %3176 = vmatpush2.bf16.msra.mxu0 %v2221
        %3177 = vmatprep.subr.bf16.mxu0 0
        %3178 = vmatpush2.bf16.msra.mxu0 %v2216
        %3179 = vmatprep.subr.bf16.mxu0 0
        %3180 = vmatpush2.bf16.msra.mxu0 %v2211
        %3181 = vmatprep.subr.bf16.mxu0 0
        %3182 = vmatpush2.bf16.msra.mxu0 %v2206
        %3183 = vmatprep.subr.bf16.mxu0 0
        %3184 = vmatpush2.bf16.msra.mxu0 %v2201
        %3185 = vmatprep.subr.bf16.mxu0 0
        %3186 = vmatpush2.bf16.msra.mxu0 %v2196
        %3187 = vmatprep.subr.bf16.mxu0 0
        %3188 = vmatpush2.bf16.msra.mxu0 %v2191
        %3189 = vmatprep.mubr.bf16.mxu0 %v294
        %3190 = vmatmul.mubr.bf16.gmra.mxu0 %v293
        %v3191 = vpop.f32.mrf.mxu0
        %v3192 = vadd.f32 %v3152, %v3191
        %v3193 = vpop.f32.mrf.mxu0
        %v3194 = vpop.f32.mrf.mxu0
        %v3195 = vpop.f32.mrf.mxu0
        %3196 = vdwg.mxu0
        %3197 = vmatprep.subr.bf16.mxu0 0
        %3198 = vmatpush1.bf16.msra.mxu0 %v2266
        %3199 = vmatprep.subr.bf16.mxu0 0
        %3200 = vmatpush1.bf16.msra.mxu0 %v2261
        %3201 = vmatprep.subr.bf16.mxu0 0
        %3202 = vmatpush1.bf16.msra.mxu0 %v2256
        %3203 = vmatprep.subr.bf16.mxu0 0
        %3204 = vmatpush1.bf16.msra.mxu0 %v2251
        %3205 = vmatprep.subr.bf16.mxu0 0
        %3206 = vmatpush1.bf16.msra.mxu0 %v2246
        %3207 = vmatprep.subr.bf16.mxu0 0
        %3208 = vmatpush1.bf16.msra.mxu0 %v2241
        %3209 = vmatprep.subr.bf16.mxu0 0
        %3210 = vmatpush1.bf16.msra.mxu0 %v2236
        %3211 = vmatprep.subr.bf16.mxu0 0
        %3212 = vmatpush1.bf16.msra.mxu0 %v2231
        %3213 = vmatprep.subr.bf16.mxu0 0
        %3214 = vmatpush2.bf16.msra.mxu0 0
        %3215 = vmatprep.subr.bf16.mxu0 0
        %3216 = vmatpush2.bf16.msra.mxu0 0
        %3217 = vmatprep.subr.bf16.mxu0 0
        %3218 = vmatpush2.bf16.msra.mxu0 0
        %3219 = vmatprep.subr.bf16.mxu0 0
        %3220 = vmatpush2.bf16.msra.mxu0 0
        %3221 = vmatprep.subr.bf16.mxu0 0
        %3222 = vmatpush2.bf16.msra.mxu0 0
        %3223 = vmatprep.subr.bf16.mxu0 0
        %3224 = vmatpush2.bf16.msra.mxu0 0
        %3225 = vmatprep.subr.bf16.mxu0 0
        %3226 = vmatpush2.bf16.msra.mxu0 0
        %3227 = vmatprep.subr.bf16.mxu0 0
        %3228 = vmatpush2.bf16.msra.mxu0 0
        %3229 = vmatprep.mubr.bf16.mxu0 0
        %3230 = vmatmul.mubr.bf16.gmra.mxu0 %v295
        %v3231 = vpop.f32.mrf.mxu0
        %v3232 = vadd.f32 %v3192, %v3231
        %v3233 = vpop.f32.mrf.mxu0
        %v3234 = vpop.f32.mrf.mxu0
        %v3235 = vpop.f32.mrf.mxu0
        %3236 = vdwg.mxu0
        %v3237 = vmul.f32 %v2826, 0.70710677
        %v3238 = vmul.f32 %v2828, 0.70710677
        %v3239 = vmul.f32 %v3031, 0.70710677
        %v3240 = vmul.f32 %v3033, 0.70710677
        %v3241 = vmul.f32 %v3232, 0.70710677
        %v3242 = vand.u32 2147483647, %v3237
        %v3243 = vand.u32 2147483647, %v3238
        %v3244 = vand.u32 2147483647, %v3239
        %v3245 = vand.u32 2147483647, %v3240
        %v3246 = vand.u32 2147483647, %v3241
        %v3247 = vmul.f32 %v3242, 0.3275911
        %v3248 = vmul.f32 %v3243, 0.3275911
        %v3249 = vmul.f32 %v3244, 0.3275911
        %v3250 = vmul.f32 %v3245, 0.3275911
        %v3251 = vmul.f32 %v3246, 0.3275911
        %v3252 = vadd.f32 %v3247, 1.0
        %v3253 = vadd.f32 %v3248, 1.0
        %v3254 = vadd.f32 %v3249, 1.0
        %v3255 = vadd.f32 %v3250, 1.0
        %v3256 = vadd.f32 %v3251, 1.0
        %v3257 = vrcp.pop %v3252
        %v3258 = vrcp.pop %v3253
        %v3259 = vrcp.pop %v3254
        %v3260 = vrcp.pop %v3255
        %v3261 = vrcp.pop %v3256
        %v3262 = vmul.f32 %v3257, 1.0614054
        %v3263 = vmul.f32 %v3258, 1.0614054
        %v3264 = vmul.f32 %v3259, 1.0614054
        %v3265 = vmul.f32 %v3260, 1.0614054
        %v3266 = vmul.f32 %v3261, 1.0614054
        %v3267 = vsub.f32 %v3262, 1.4531521
        %v3268 = vsub.f32 %v3263, 1.4531521
        %v3269 = vsub.f32 %v3264, 1.4531521
        %v3270 = vsub.f32 %v3265, 1.4531521
        %v3271 = vsub.f32 %v3266, 1.4531521
        %v3272 = vmul.f32 %v3267, %v3257
        %v3273 = vmul.f32 %v3268, %v3258
        %v3274 = vmul.f32 %v3269, %v3259
        %v3275 = vmul.f32 %v3270, %v3260
        %v3276 = vmul.f32 %v3271, %v3261
        %v3277 = vadd.f32 %v3272, 1.4214138
        %v3278 = vadd.f32 %v3273, 1.4214138
        %v3279 = vadd.f32 %v3274, 1.4214138
        %v3280 = vadd.f32 %v3275, 1.4214138
        %v3281 = vadd.f32 %v3276, 1.4214138
        %v3282 = vmul.f32 %v3277, %v3257
        %v3283 = vmul.f32 %v3278, %v3258
        %v3284 = vmul.f32 %v3279, %v3259
        %v3285 = vmul.f32 %v3280, %v3260
        %v3286 = vmul.f32 %v3281, %v3261
        %v3287 = vsub.f32 %v3282, 0.28449672
        %v3288 = vsub.f32 %v3283, 0.28449672
        %v3289 = vsub.f32 %v3284, 0.28449672
        %v3290 = vsub.f32 %v3285, 0.28449672
        %v3291 = vsub.f32 %v3286, 0.28449672
        %v3292 = vmul.f32 %v3287, %v3257
        %v3293 = vmul.f32 %v3288, %v3258
        %v3294 = vmul.f32 %v3289, %v3259
        %v3295 = vmul.f32 %v3290, %v3260
        %v3296 = vmul.f32 %v3291, %v3261
        %v3297 = vadd.f32 %v3292, 0.2548296
        %v3298 = vadd.f32 %v3293, 0.2548296
        %v3299 = vadd.f32 %v3294, 0.2548296
        %v3300 = vadd.f32 %v3295, 0.2548296
        %v3301 = vadd.f32 %v3296, 0.2548296
        %v3302 = vmul.f32 %v3297, %v3257
        %v3303 = vmul.f32 %v3298, %v3258
        %v3304 = vmul.f32 %v3299, %v3259
        %v3305 = vmul.f32 %v3300, %v3260
        %v3306 = vmul.f32 %v3301, %v3261
        %v3307 = vsub.f32 0.0, %v3242
        %v3308 = vsub.f32 0.0, %v3243
        %v3309 = vsub.f32 0.0, %v3244
        %v3310 = vsub.f32 0.0, %v3245
        %v3311 = vsub.f32 0.0, %v3246
        %v3312 = vmul.f32 %v3307, %v3242
        %v3313 = vmul.f32 %v3308, %v3243
        %v3314 = vmul.f32 %v3309, %v3244
        %v3315 = vmul.f32 %v3310, %v3245
        %v3316 = vmul.f32 %v3311, %v3246
        %v3317 = vmul.f32 %v3312, 1.442695
        %v3318 = vpow.pop %v3317
        %v3319 = vmul.f32 %v3313, 1.442695
        %v3320 = vpow.pop %v3319
        %v3321 = vmul.f32 %v3314, 1.442695
        %v3322 = vpow.pop %v3321
        %v3323 = vmul.f32 %v3315, 1.442695
        %v3324 = vpow.pop %v3323
        %v3325 = vmul.f32 %v3316, 1.442695
        %v3326 = vpow.pop %v3325
        %v3327 = vmul.f32 %v3302, %v3318
        %v3328 = vmul.f32 %v3303, %v3320
        %v3329 = vmul.f32 %v3304, %v3322
        %v3330 = vmul.f32 %v3305, %v3324
        %v3331 = vmul.f32 %v3306, %v3326
        %v3332 = vsub.f32 1.0, %v3327
        %v3333 = vsub.f32 1.0, %v3328
        %v3334 = vsub.f32 1.0, %v3329
        %v3335 = vsub.f32 1.0, %v3330
        %v3336 = vsub.f32 1.0, %v3331
        %vm3337 = vcmp.ge.f32.partialorder %v3237, 0.0
        %vm3338 = vcmp.ge.f32.partialorder %v3238, 0.0
        %vm3339 = vcmp.ge.f32.partialorder %v3239, 0.0
        %vm3340 = vcmp.ge.f32.partialorder %v3240, 0.0
        %vm3341 = vcmp.ge.f32.partialorder %v3241, 0.0
        %v3342 = vsub.f32 0.0, %v3332
        %v3343 = vsub.f32 0.0, %v3333
        %v3344 = vsub.f32 0.0, %v3334
        %v3345 = vsub.f32 0.0, %v3335
        %v3346 = vsub.f32 0.0, %v3336
        %v3347 = vsel %vm3337, %v3332, %v3342
        %v3348 = vsel %vm3338, %v3333, %v3343
        %v3349 = vsel %vm3339, %v3334, %v3344
        %v3350 = vsel %vm3340, %v3335, %v3345
        %v3351 = vsel %vm3341, %v3336, %v3346
        %v3352 = vmul.f32 %v2826, 0.5
        %v3353 = vmul.f32 %v2828, 0.5
        %v3354 = vmul.f32 %v3031, 0.5
        %v3355 = vmul.f32 %v3033, 0.5
        %v3356 = vmul.f32 %v3232, 0.5
        %v3357 = vadd.f32 %v3347, 1.0
        %v3358 = vadd.f32 %v3348, 1.0
        %v3359 = vadd.f32 %v3349, 1.0
        %v3360 = vadd.f32 %v3350, 1.0
        %v3361 = vadd.f32 %v3351, 1.0
        %v3362 = vmul.f32 %v3352, %v3357
        %v3363 = vmul.f32 %v3353, %v3358
        %v3364 = vmul.f32 %v3354, %v3359
        %v3365 = vmul.f32 %v3355, %v3360
        %v3366 = vmul.f32 %v3356, %v3361
        %v3367 = vpack.c.bf16 %v3362, %v3362
        %v3368 = vpack.c.bf16 %v3363, %v3363
        %v3369 = vpack.c.bf16 %v3364, %v3364
        %v3370 = vpack.c.bf16 %v3365, %v3365
        %v3371 = vpack.c.bf16 %v3366, %v3366
        %v3372 = vld [vmem:[%s3] sm:$0xf]
        %v3373 = vld [vmem:[%s3 + $0x4] sm:$0xf]
        %v3374 = vld [vmem:[%s3 + $0x8] sm:$0xf]
        %v3375 = vld [vmem:[%s3 + $0xc] sm:$0xf]
        %v3376 = vld [vmem:[%s3 + $0x10] sm:$0xf]
        %v3377 = vld [vmem:[%s3 + $0x14] sm:$0xf]
        %v3378 = vld [vmem:[%s3 + $0x18] sm:$0xf]
        %v3379 = vld [vmem:[%s3 + $0x1c] sm:$0xf]
        %v3380 = vld [vmem:[%s3 + $0x20] sm:$0xf]
        %v3381 = vld [vmem:[%s3 + $0x24] sm:$0xf]
        %v3382 = vld [vmem:[%s3 + $0x28] sm:$0xf]
        %v3383 = vld [vmem:[%s3 + $0x2c] sm:$0xf]
        %v3384 = vld [vmem:[%s3 + $0x30] sm:$0xf]
        %v3385 = vld [vmem:[%s3 + $0x34] sm:$0xf]
        %v3386 = vld [vmem:[%s3 + $0x38] sm:$0xf]
        %v3387 = vld [vmem:[%s3 + $0x3c] sm:$0xf]
        %v3388 = vld [vmem:[%s3 + $0x40] sm:$0xf]
        %v3389 = vld [vmem:[%s3 + $0x44] sm:$0xf]
        %v3390 = vld [vmem:[%s3 + $0x48] sm:$0xf]
        %v3391 = vld [vmem:[%s3 + $0x4c] sm:$0xf]
        %v3392 = vld [vmem:[%s3 + $0x50] sm:$0xf]
        %v3393 = vld [vmem:[%s3 + $0x54] sm:$0xf]
        %v3394 = vld [vmem:[%s3 + $0x58] sm:$0xf]
        %v3395 = vld [vmem:[%s3 + $0x5c] sm:$0xf]
        %v3396 = vld [vmem:[%s3 + $0x60] sm:$0xf]
        %v3397 = vld [vmem:[%s3 + $0x64] sm:$0xf]
        %v3398 = vld [vmem:[%s3 + $0x68] sm:$0xf]
        %v3399 = vld [vmem:[%s3 + $0x6c] sm:$0xf]
        %v3400 = vld [vmem:[%s3 + $0x70] sm:$0xf]
        %v3401 = vld [vmem:[%s3 + $0x74] sm:$0xf]
        %v3402 = vld [vmem:[%s3 + $0x78] sm:$0xf]
        %v3403 = vld [vmem:[%s3 + $0x7c] sm:$0xf]
        %v3404 = vld [vmem:[%s3 + $0x80] sm:$0xf]
        %v3405 = vld [vmem:[%s3 + $0x84] sm:$0xf]
        %v3406 = vld [vmem:[%s3 + $0x88] sm:$0xf]
        %v3407 = vld [vmem:[%s3 + $0x8c] sm:$0xf]
        %v3408 = vld [vmem:[%s3 + $0x90] sm:$0xf]
        %v3409 = vld [vmem:[%s3 + $0x94] sm:$0xf]
        %v3410 = vld [vmem:[%s3 + $0x98] sm:$0xf]
        %v3411 = vld [vmem:[%s3 + $0x9c] sm:$0xf]
        %v3412 = vld [vmem:[%s3 + $0xa0] sm:$0xf]
        %v3413 = vld [vmem:[%s3 + $0xa4] sm:$0xf]
        %v3414 = vld [vmem:[%s3 + $0xa8] sm:$0xf]
        %v3415 = vld [vmem:[%s3 + $0xac] sm:$0xf]
        %v3416 = vld [vmem:[%s3 + $0xb0] sm:$0xf]
        %v3417 = vld [vmem:[%s3 + $0xb4] sm:$0xf]
        %v3418 = vld [vmem:[%s3 + $0xb8] sm:$0xf]
        %v3419 = vld [vmem:[%s3 + $0xbc] sm:$0xf]
        %v3420 = vld [vmem:[%s3 + $0xc0] sm:$0xf]
        %v3421 = vld [vmem:[%s3 + $0xc4] sm:$0xf]
        %v3422 = vld [vmem:[%s3 + $0xc8] sm:$0xf]
        %v3423 = vld [vmem:[%s3 + $0xcc] sm:$0xf]
        %v3424 = vld [vmem:[%s3 + $0xd0] sm:$0xf]
        %v3425 = vld [vmem:[%s3 + $0xd4] sm:$0xf]
        %v3426 = vld [vmem:[%s3 + $0xd8] sm:$0xf]
        %v3427 = vld [vmem:[%s3 + $0xdc] sm:$0xf]
        %v3428 = vld [vmem:[%s3 + $0xe0] sm:$0xf]
        %v3429 = vld [vmem:[%s3 + $0xe4] sm:$0xf]
        %v3430 = vld [vmem:[%s3 + $0xe8] sm:$0xf]
        %v3431 = vld [vmem:[%s3 + $0xec] sm:$0xf]
        %v3432 = vld [vmem:[%s3 + $0xf0] sm:$0xf]
        %v3433 = vld [vmem:[%s3 + $0xf4] sm:$0xf]
        %v3434 = vld [vmem:[%s3 + $0xf8] sm:$0xf]
        %v3435 = vld [vmem:[%s3 + $0xfc] sm:$0xf]
        %v3436 = vld [vmem:[%s3 + $0x100] sm:$0xf]
        %v3437 = vld [vmem:[%s3 + $0x104] sm:$0xf]
        %v3438 = vld [vmem:[%s3 + $0x108] sm:$0xf]
        %v3439 = vld [vmem:[%s3 + $0x10c] sm:$0xf]
        %v3440 = vld [vmem:[%s3 + $0x110] sm:$0xf]
        %v3441 = vld [vmem:[%s3 + $0x114] sm:$0xf]
        %v3442 = vld [vmem:[%s3 + $0x118] sm:$0xf]
        %v3443 = vld [vmem:[%s3 + $0x11c] sm:$0xf]
        %v3444 = vld [vmem:[%s4] sm:$0x1]
        %v3446 = vlaneseq
        %v3447 = vshrl.u32 %v3446, 7
        %v3448 = vsub.s32 0, %v3447
        %v3449 = vrot.slane %v3444, %v3448
        %v3523 = vunpack.c.l.b16 %v3372
        %v3524 = vunpack.c.l.b16 %v3373
        %v3525 = vunpack.c.l.b16 %v3374
        %v3526 = vunpack.c.l.b16 %v3375
        %v3527 = vunpack.c.l.b16 %v3376
        %v3528 = vunpack.c.l.b16 %v3377
        %v3529 = vunpack.c.l.b16 %v3378
        %v3530 = vunpack.c.l.b16 %v3379
        %v3531 = vunpack.c.l.b16 %v3380
        %v3532 = vunpack.c.l.b16 %v3381
        %v3533 = vunpack.c.l.b16 %v3382
        %v3534 = vunpack.c.l.b16 %v3383
        %v3535 = vunpack.c.l.b16 %v3384
        %v3536 = vunpack.c.l.b16 %v3385
        %v3537 = vunpack.c.l.b16 %v3386
        %v3538 = vunpack.c.l.b16 %v3387
        %v3539 = vunpack.c.l.b16 %v3388
        %v3540 = vunpack.c.l.b16 %v3389
        %v3541 = vunpack.c.l.b16 %v3390
        %v3542 = vunpack.c.l.b16 %v3391
        %v3543 = vunpack.c.l.b16 %v3392
        %v3544 = vunpack.c.l.b16 %v3393
        %v3545 = vunpack.c.l.b16 %v3394
        %v3546 = vunpack.c.l.b16 %v3395
        %v3547 = vunpack.c.l.b16 %v3396
        %v3548 = vunpack.c.l.b16 %v3397
        %v3549 = vunpack.c.l.b16 %v3398
        %v3550 = vunpack.c.l.b16 %v3399
        %v3551 = vunpack.c.l.b16 %v3400
        %v3552 = vunpack.c.l.b16 %v3401
        %v3553 = vunpack.c.l.b16 %v3402
        %v3554 = vunpack.c.l.b16 %v3403
        %v3555 = vunpack.c.l.b16 %v3404
        %v3556 = vunpack.c.l.b16 %v3405
        %v3557 = vunpack.c.l.b16 %v3406
        %v3558 = vunpack.c.l.b16 %v3407
        %v3559 = vunpack.c.l.b16 %v3408
        %v3560 = vunpack.c.l.b16 %v3409
        %v3561 = vunpack.c.l.b16 %v3410
        %v3562 = vunpack.c.l.b16 %v3411
        %v3563 = vunpack.c.l.b16 %v3412
        %v3564 = vunpack.c.l.b16 %v3413
        %v3565 = vunpack.c.l.b16 %v3414
        %v3566 = vunpack.c.l.b16 %v3415
        %v3567 = vunpack.c.l.b16 %v3416
        %v3568 = vunpack.c.l.b16 %v3417
        %v3569 = vunpack.c.l.b16 %v3418
        %v3570 = vunpack.c.l.b16 %v3419
        %v3571 = vunpack.c.l.b16 %v3420
        %v3572 = vunpack.c.l.b16 %v3421
        %v3573 = vunpack.c.l.b16 %v3422
        %v3574 = vunpack.c.l.b16 %v3423
        %v3575 = vunpack.c.l.b16 %v3424
        %v3576 = vunpack.c.l.b16 %v3425
        %v3577 = vunpack.c.l.b16 %v3426
        %v3578 = vunpack.c.l.b16 %v3427
        %v3579 = vunpack.c.l.b16 %v3428
        %v3580 = vunpack.c.l.b16 %v3429
        %v3581 = vunpack.c.l.b16 %v3430
        %v3582 = vunpack.c.l.b16 %v3431
        %v3583 = vunpack.c.l.b16 %v3432
        %v3584 = vunpack.c.l.b16 %v3433
        %v3585 = vunpack.c.l.b16 %v3434
        %v3586 = vunpack.c.l.b16 %v3435
        %v3587 = vunpack.c.l.b16 %v3436
        %v3588 = vunpack.c.l.b16 %v3437
        %v3589 = vunpack.c.l.b16 %v3438
        %v3590 = vunpack.c.l.b16 %v3439
        %v3591 = vunpack.c.l.b16 %v3440
        %v3592 = vunpack.c.l.b16 %v3441
        %v3593 = vunpack.c.l.b16 %v3442
        %v3594 = vunpack.c.l.b16 %v3443
        %v3595 = vpack.c.b16 %v3524, %v3523
        %v3596 = vpack.c.b16 %v3526, %v3525
        %v3597 = vpack.c.b16 %v3528, %v3527
        %v3598 = vpack.c.b16 %v3530, %v3529
        %v3599 = vpack.c.b16 %v3532, %v3531
        %v3600 = vpack.c.b16 %v3534, %v3533
        %v3601 = vpack.c.b16 %v3536, %v3535
        %v3602 = vpack.c.b16 %v3538, %v3537
        %v3603 = vpack.c.b16 %v3540, %v3539
        %v3604 = vpack.c.b16 %v3542, %v3541
        %v3605 = vpack.c.b16 %v3544, %v3543
        %v3606 = vpack.c.b16 %v3546, %v3545
        %v3607 = vpack.c.b16 %v3548, %v3547
        %v3608 = vpack.c.b16 %v3550, %v3549
        %v3609 = vpack.c.b16 %v3552, %v3551
        %v3610 = vpack.c.b16 %v3554, %v3553
        %v3611 = vpack.c.b16 %v3556, %v3555
        %v3612 = vpack.c.b16 %v3558, %v3557
        %v3613 = vpack.c.b16 %v3560, %v3559
        %v3614 = vpack.c.b16 %v3562, %v3561
        %v3615 = vpack.c.b16 %v3564, %v3563
        %v3616 = vpack.c.b16 %v3566, %v3565
        %v3617 = vpack.c.b16 %v3568, %v3567
        %v3618 = vpack.c.b16 %v3570, %v3569
        %v3619 = vpack.c.b16 %v3572, %v3571
        %v3620 = vpack.c.b16 %v3574, %v3573
        %v3621 = vpack.c.b16 %v3576, %v3575
        %v3622 = vpack.c.b16 %v3578, %v3577
        %v3623 = vpack.c.b16 %v3580, %v3579
        %v3624 = vpack.c.b16 %v3582, %v3581
        %v3625 = vpack.c.b16 %v3584, %v3583
        %v3626 = vpack.c.b16 %v3586, %v3585
        %v3627 = vpack.c.b16 %v3588, %v3587
        %v3628 = vpack.c.b16 %v3590, %v3589
        %v3629 = vpack.c.b16 %v3592, %v3591
        %v3630 = vpack.c.b16 %v3594, %v3593
        %vm3667 = vcmask 523264
        %v3669 = vsel %vm3667, %v3371, 0
        %3671 = vmatprep.subr.bf16.mxu0 0
        %3672 = vmatpush1.bf16.msra.mxu0 %v3602
        %3673 = vmatprep.subr.bf16.mxu0 0
        %3674 = vmatpush1.bf16.msra.mxu0 %v3601
        %3675 = vmatprep.subr.bf16.mxu0 0
        %3676 = vmatpush1.bf16.msra.mxu0 %v3600
        %3677 = vmatprep.subr.bf16.mxu0 0
        %3678 = vmatpush1.bf16.msra.mxu0 %v3599
        %3679 = vmatprep.subr.bf16.mxu0 0
        %3680 = vmatpush1.bf16.msra.mxu0 %v3598
        %3681 = vmatprep.subr.bf16.mxu0 0
        %3682 = vmatpush1.bf16.msra.mxu0 %v3597
        %3683 = vmatprep.subr.bf16.mxu0 0
        %3684 = vmatpush1.bf16.msra.mxu0 %v3596
        %3685 = vmatprep.subr.bf16.mxu0 0
        %3686 = vmatpush1.bf16.msra.mxu0 %v3595
        %3687 = vmatprep.subr.bf16.mxu0 0
        %3688 = vmatpush2.bf16.msra.mxu0 %v3610
        %3689 = vmatprep.subr.bf16.mxu0 0
        %3690 = vmatpush2.bf16.msra.mxu0 %v3609
        %3691 = vmatprep.subr.bf16.mxu0 0
        %3692 = vmatpush2.bf16.msra.mxu0 %v3608
        %3693 = vmatprep.subr.bf16.mxu0 0
        %3694 = vmatpush2.bf16.msra.mxu0 %v3607
        %3695 = vmatprep.subr.bf16.mxu0 0
        %3696 = vmatpush2.bf16.msra.mxu0 %v3606
        %3697 = vmatprep.subr.bf16.mxu0 0
        %3698 = vmatpush2.bf16.msra.mxu0 %v3605
        %3699 = vmatprep.subr.bf16.mxu0 0
        %3700 = vmatpush2.bf16.msra.mxu0 %v3604
        %3701 = vmatprep.subr.bf16.mxu0 0
        %3702 = vmatpush2.bf16.msra.mxu0 %v3603
        %3703 = vmatprep.mubr.bf16.mxu0 %v3368
        %3704 = vmatmul.mubr.bf16.gmra.mxu0 %v3367
        %v3705 = vpop.f32.mrf.mxu0
        %v3706 = vadd.f32 %v3449, %v3705
        %v3707 = vpop.f32.mrf.mxu0
        %v3708 = vpop.f32.mrf.mxu0
        %v3709 = vpop.f32.mrf.mxu0
        %3710 = vdwg.mxu0
        %3711 = vmatprep.subr.bf16.mxu0 0
        %3712 = vmatpush1.bf16.msra.mxu0 %v3618
        %3713 = vmatprep.subr.bf16.mxu0 0
        %3714 = vmatpush1.bf16.msra.mxu0 %v3617
        %3715 = vmatprep.subr.bf16.mxu0 0
        %3716 = vmatpush1.bf16.msra.mxu0 %v3616
        %3717 = vmatprep.subr.bf16.mxu0 0
        %3718 = vmatpush1.bf16.msra.mxu0 %v3615
        %3719 = vmatprep.subr.bf16.mxu0 0
        %3720 = vmatpush1.bf16.msra.mxu0 %v3614
        %3721 = vmatprep.subr.bf16.mxu0 0
        %3722 = vmatpush1.bf16.msra.mxu0 %v3613
        %3723 = vmatprep.subr.bf16.mxu0 0
        %3724 = vmatpush1.bf16.msra.mxu0 %v3612
        %3725 = vmatprep.subr.bf16.mxu0 0
        %3726 = vmatpush1.bf16.msra.mxu0 %v3611
        %3727 = vmatprep.subr.bf16.mxu0 0
        %3728 = vmatpush2.bf16.msra.mxu0 %v3626
        %3729 = vmatprep.subr.bf16.mxu0 0
        %3730 = vmatpush2.bf16.msra.mxu0 %v3625
        %3731 = vmatprep.subr.bf16.mxu0 0
        %3732 = vmatpush2.bf16.msra.mxu0 %v3624
        %3733 = vmatprep.subr.bf16.mxu0 0
        %3734 = vmatpush2.bf16.msra.mxu0 %v3623
        %3735 = vmatprep.subr.bf16.mxu0 0
        %3736 = vmatpush2.bf16.msra.mxu0 %v3622
        %3737 = vmatprep.subr.bf16.mxu0 0
        %3738 = vmatpush2.bf16.msra.mxu0 %v3621
        %3739 = vmatprep.subr.bf16.mxu0 0
        %3740 = vmatpush2.bf16.msra.mxu0 %v3620
        %3741 = vmatprep.subr.bf16.mxu0 0
        %3742 = vmatpush2.bf16.msra.mxu0 %v3619
        %3743 = vmatprep.mubr.bf16.mxu0 %v3370
        %3744 = vmatmul.mubr.bf16.gmra.mxu0 %v3369
        %v3745 = vpop.f32.mrf.mxu0
        %v3746 = vadd.f32 %v3706, %v3745
        %v3747 = vpop.f32.mrf.mxu0
        %v3748 = vpop.f32.mrf.mxu0
        %v3749 = vpop.f32.mrf.mxu0
        %3750 = vdwg.mxu0
        %3751 = vmatprep.subr.bf16.mxu0 0
        %3752 = vmatpush1.bf16.msra.mxu0 0
        %3753 = vmatprep.subr.bf16.mxu0 0
        %3754 = vmatpush1.bf16.msra.mxu0 0
        %3755 = vmatprep.subr.bf16.mxu0 0
        %3756 = vmatpush1.bf16.msra.mxu0 0
        %3757 = vmatprep.subr.bf16.mxu0 0
        %3758 = vmatpush1.bf16.msra.mxu0 0
        %3759 = vmatprep.subr.bf16.mxu0 0
        %3760 = vmatpush1.bf16.msra.mxu0 %v3630
        %3761 = vmatprep.subr.bf16.mxu0 0
        %3762 = vmatpush1.bf16.msra.mxu0 %v3629
        %3763 = vmatprep.subr.bf16.mxu0 0
        %3764 = vmatpush1.bf16.msra.mxu0 %v3628
        %3765 = vmatprep.subr.bf16.mxu0 0
        %3766 = vmatpush1.bf16.msra.mxu0 %v3627
        %3767 = vmatprep.subr.bf16.mxu0 0
        %3768 = vmatpush2.bf16.msra.mxu0 0
        %3769 = vmatprep.subr.bf16.mxu0 0
        %3770 = vmatpush2.bf16.msra.mxu0 0
        %3771 = vmatprep.subr.bf16.mxu0 0
        %3772 = vmatpush2.bf16.msra.mxu0 0
        %3773 = vmatprep.subr.bf16.mxu0 0
        %3774 = vmatpush2.bf16.msra.mxu0 0
        %3775 = vmatprep.subr.bf16.mxu0 0
        %3776 = vmatpush2.bf16.msra.mxu0 0
        %3777 = vmatprep.subr.bf16.mxu0 0
        %3778 = vmatpush2.bf16.msra.mxu0 0
        %3779 = vmatprep.subr.bf16.mxu0 0
        %3780 = vmatpush2.bf16.msra.mxu0 0
        %3781 = vmatprep.subr.bf16.mxu0 0
        %3782 = vmatpush2.bf16.msra.mxu0 0
        %3783 = vmatprep.mubr.bf16.mxu0 0
        %3784 = vmatmul.mubr.bf16.gmra.mxu0 %v3669
        %v3785 = vpop.f32.mrf.mxu0
        %v3786 = vadd.f32 %v3746, %v3785
        %v3787 = vpop.f32.mrf.mxu0
        %v3788 = vpop.f32.mrf.mxu0
        %v3789 = vpop.f32.mrf.mxu0
        %3790 = vdwg.mxu0
        %3791 = vst [vmem:[%s217] sm:$0xff] %v3786
        %s3792 = sand.u32 %s137, 1
        %s3793 = scalar_lea.sflag [#allocation3], %s3792
        %s3794 = sand.u32 %s137, 1
        %s3795 = smul.addr %s3794, 8
        %s3796 = scalar_lea.vmem [#allocation2], %s3795
        // Predicated region
        $region41: #{tpu_custom_call.1} parent=39 // pred_check
          %p3797 = pneg %p147
        $region42: #{tpu_custom_call.1} parent=39 // pred_check_branch
          %3799 = sbr.rel (%p3797) target = $region44
        $region43: #{tpu_custom_call.1} parent=39 // pred_region
          %s3801 = ssub.s32 128, 128
          %3802 = vsyncadd %s3793, %s3801
          %s3803 = smul.addr %s19, 128
          %s3804 = scalar_lea.hbm %s5, %s3803
          %s3806 = sshll.u32 %s3796, 4
          %s3807 = int_to_ptr.vmem [resolvable:$true] %s3806
          %3809 = dma.vmem_to_hbm [thread:$0]  %s3807, 128, %s3804, %s3793
        $region44: #{tpu_custom_call.1} parent=39 // pred_fallthru
          _
      $region40: #{tpu_custom_call.1} parent=5 // pred_fallthru
        _
      %p3810 = scmp.le.s32.totalorder 2, %s14
      // Predicated region
      $region45: #{tpu_custom_call.1} parent=5 // pred_check
        %p3811 = pneg %p3810
      $region46: #{tpu_custom_call.1} parent=5 // pred_check_branch
        %3813 = sbr.rel (%p3811) target = $region48
      $region47: #{tpu_custom_call.1} parent=5 // pred_region
        %s3814 = ssub.s32 %s14, 2
        // Predicated region
        $region49: #{tpu_custom_call.1} parent=47 // pred_check
          %p3815 = pneg %p153
        $region50: #{tpu_custom_call.1} parent=47 // pred_check_branch
          %3817 = sbr.rel (%p3815) target = $region52
        $region51: #{tpu_custom_call.1} parent=47 // pred_region
          %s3818 = sand.u32 %s138, 1
          %s3819 = scalar_lea.sflag [#allocation3], %s3818
          %s3820 = sand.u32 %s138, 1
          %s3821 = smul.addr %s3820, 8
          %s3822 = scalar_lea.vmem [#allocation2], %s3821
          %3823 = dma.done %s3819, 128
        $region52: #{tpu_custom_call.1} parent=47 // pred_fallthru
          _
      $region48: #{tpu_custom_call.1} parent=5 // pred_fallthru
        _
    $region6: #{tpu_custom_call.1} parent=1 // loop_footer
      %s18 = sadd.s32 1, %s14
    $region7: #{tpu_custom_call.1} parent=1 // loop_footer_branch
      %13 = sbr.rel target = $region3
    $region8: #{tpu_custom_call.1} parent=1 // loop_exit
      _
    %3824 = vsyncpa [#allocation3], 1
    %s3825 = scalar_lea.sflag [#allocation3], 1
    %3826 = vsyncpa %s3825, 1

</llo_original>
